<compile_context>
chip_gen: v7x
topology: tpu7x:2x2x1
jax: 0.10.0
libtpu: 0.0.40
codegen_flags: <defaults>
</compile_context>

<pallas_src>
import functools
import math

import jax
import jax.numpy as jnp
from jax import lax
from jax.experimental import pallas as pl
from jax.experimental.pallas import tpu as pltpu


def _layernorm(x, gamma, beta, eps=1e-5):
    mu = jnp.mean(x, axis=-1, keepdims=True)
    var = jnp.mean(jnp.square(x - mu), axis=-1, keepdims=True)
    return (x - mu) * lax.rsqrt(var + eps) * gamma + beta


def transformer_block_kernel(
        x_q_ref, x_kv_ref,
        wq_ref, wk_ref, wv_ref, wo_ref, w1_ref, w2_ref,
        pe_ref, bf1_ref,
        out_ref,
        k_cache_ref, v_cache_ref,
        *, num_heads, head_dim):
    """One grid step = one (batch, query-row-tile).

    x_q_ref:  (TQ, E) f32  -- query rows / residual path.
    x_kv_ref: (S, E)  bf16 -- whole sequence for K/V (consumed only on the first q-tile).
    pe_ref:   (9, E)  f32  -- stacked [bq, bk, bv, bo, g1, be1, bf2, g2, be2].
    """
    f32 = jnp.float32
    cdt = wq_ref.dtype                                   # MXU compute dtype (bf16)

    TQ, E = x_q_ref.shape
    S = x_kv_ref.shape[0]
    H, D = num_heads, head_dim
    scale = 1.0 / math.sqrt(D)

    pe = pe_ref[...]
    bq, bk, bv, bo = pe[0:1], pe[1:2], pe[2:3], pe[3:4]
    g1, be1 = pe[4:5], pe[5:6]
    bf2 = pe[6:7]
    g2, be2 = pe[7:8], pe[8:9]

    # ---- K/V projections: computed once per batch row (inner q-tile axis is "arbitrary"),
    #      cached in VMEM scratch and reused by every query tile of this batch row. ----
    @pl.when(pl.program_id(1) == 0)
    def _compute_kv():
        xkv = x_kv_ref[...]                                            # bf16
        k = jnp.dot(xkv, wk_ref[...], preferred_element_type=f32) + bk
        v = jnp.dot(xkv, wv_ref[...], preferred_element_type=f32) + bv
        k_cache_ref[...] = k.astype(cdt)
        v_cache_ref[...] = v.astype(cdt)

    x_q = x_q_ref[...]                                                 # f32 residual path
    q = jnp.dot(x_q.astype(cdt), wq_ref[...], preferred_element_type=f32) + bq
    q = q * scale

    # ---- head-batched attention: (H, TQ, D) x (H, S, D), no per-head unroll/concat ----
    q3 = jnp.swapaxes(q.reshape(TQ, H, D), 0, 1).astype(cdt)          # (H, TQ, D)
    k3 = jnp.swapaxes(k_cache_ref[...].reshape(S, H, D), 0, 1)        # (H, S, D)
    v3 = jnp.swapaxes(v_cache_ref[...].reshape(S, H, D), 0, 1)        # (H, S, D)

    s = jnp.einsum('hqd,hkd->hqk', q3, k3, preferred_element_type=f32)  # (H, TQ, S) f32
    s = s - jnp.max(s, axis=-1, keepdims=True)
    p = jnp.exp(s)                                                     # unnormalized probs
    denom = jnp.sum(p, axis=-1, keepdims=True)                         # (H, TQ, 1)
    ctx = jnp.einsum('hqk,hkd->hqd', p.astype(cdt), v3, preferred_element_type=f32)
    # Normalize AFTER the PV matmul: the multiply is on (H, TQ, D), not (H, TQ, S).
    ctx = ctx * pl.reciprocal(denom, approx=True)
    attn = jnp.swapaxes(ctx, 0, 1).reshape(TQ, E)

    attn_out = jnp.dot(attn.astype(cdt), wo_ref[...], preferred_element_type=f32) + bo

    # ---- residual + norm1 (f32) ----
    x1 = _layernorm(x_q + attn_out, g1, be1)

    # ---- FFN: Linear -> exact GELU -> (dropout = identity) -> Linear ----
    h1 = jnp.dot(x1.astype(cdt), w1_ref[...], preferred_element_type=f32) + bf1_ref[...]
    h1 = 0.5 * h1 * (1.0 + lax.erf(h1 * (1.0 / math.sqrt(2.0))))
    h2 = jnp.dot(h1.astype(cdt), w2_ref[...], preferred_element_type=f32) + bf2

    # ---- residual + norm2 (f32) ----
    out_ref[...] = _layernorm(x1 + h2, g2, be2).astype(out_ref.dtype)


def _vmem_capacity_bytes():
    try:
        return int(pltpu.get_tpu_info().vmem_capacity_bytes)
    except Exception:
        return 128 * 1024 * 1024           # v5e/v6e-class default


def _pick_q_tile(S, E, F, H, B, vmem_cap):
    """Largest q tile whose f32 activation temporaries fit in a fraction of VMEM
    (generation-aware: v7x has 64 MiB/TC, v5e/v6e have 128 MiB)."""
    cands = [t for t in (512, 256, 128) if S % t == 0]
    if not cands:
        tq = S                              # small / odd sequences: single full-S tile
    else:
        tq = cands[-1]
        budget = vmem_cap // 4
        for t in cands:                     # largest first
            # dominant f32 temporaries: attention scores, FFN hidden, a few (t, E) tensors
            act_bytes = 4 * (H * t * S + t * F + 6 * t * E)
            if act_bytes <= budget:
                tq = t
                break
    # Guarantee >= 2 grid steps along parallel axes so both TensorCores of a 2-TC chip
    # (v7x) get work.
    if B * (S // tq) < 2 and tq % 16 == 0:
        tq //= 2
    return tq


def transformer_block(x, params, *, num_heads, compute_dtype=jnp.bfloat16):
    B, S, E = x.shape
    F = params["w1_t"].shape[1]
    assert E % num_heads == 0
    head_dim = E // num_heads

    vmem_cap = _vmem_capacity_bytes()
    TQ = _pick_q_tile(S, E, F, num_heads, B, vmem_cap)
    n_qt = S // TQ
    vmem_limit = int(min(96 * 2**20, max(32 * 2**20, (vmem_cap * 7) // 8)))

    cdt = compute_dtype
    # bf16 weights pre-cast host-side (halves weight DMA bytes + VMEM residency). The K/V copy
    # of x is also pre-cast to bf16; the query tile stays f32 for the residual path.
    wq = params["wq_t"].astype(cdt); wk = params["wk_t"].astype(cdt)
    wv = params["wv_t"].astype(cdt); wo = params["wo_t"].astype(cdt)
    w1 = params["w1_t"].astype(cdt); w2 = params["w2_t"].astype(cdt)
    x_kv = x.astype(cdt)

    # Stack the ten tiny (1, E)/(1, F) bias / LayerNorm params into two arrays.
    pe = jnp.concatenate(
        [params["bq"], params["bk"], params["bv"], params["bo"],
         params["g1"], params["be1"], params["bf2"], params["g2"], params["be2"]],
        axis=0).astype(jnp.float32)                                    # (9, E)
    bf1 = params["bf1"].astype(jnp.float32)                            # (1, F)

    kernel = functools.partial(transformer_block_kernel,
                               num_heads=num_heads, head_dim=head_dim)

    flops = int(B * (8 * S * E * E + 4 * S * S * E + 4 * S * E * F))
    transcendentals = int(B * (num_heads * S * S + S * F))             # exp + erf
    bytes_accessed = int(B * S * E * (4 + 2 + 4)
                         + (4 * E * E + 2 * E * F) * jnp.dtype(cdt).itemsize
                         + (9 * E + F) * 4)

    def run(single_buffer_weights):
        def resident(shape):
            kwargs = {}
            if single_buffer_weights:
                # Constant index map => the second pipeline buffer is never used;
                # single-buffering halves resident-weight VMEM.
                kwargs["pipeline_mode"] = pl.Buffered(1)
            return pl.BlockSpec(shape, lambda b, qi: (0,) * len(shape), **kwargs)

        in_specs = [
            pl.BlockSpec((None, TQ, E), lambda b, qi: (b, qi, 0)),     # x: query tile (f32)
            pl.BlockSpec((None, S, E),  lambda b, qi: (b, 0, 0)),      # x: full seq for K/V (bf16)
            resident((E, E)), resident((E, E)),                        # Wq^T, Wk^T
            resident((E, E)), resident((E, E)),                        # Wv^T, Wo^T
            resident((E, F)), resident((F, E)),                        # ffn.0 W^T, ffn.3 W^T
            resident((9, E)), resident((1, F)),                        # stacked params, bf1
        ]

        return pl.pallas_call(
            kernel,
            out_shape=jax.ShapeDtypeStruct((B, S, E), x.dtype),
            grid=(B, n_qt),
            in_specs=in_specs,
            out_specs=pl.BlockSpec((None, TQ, E), lambda b, qi: (b, qi, 0)),
            scratch_shapes=[pltpu.VMEM((S, E), cdt),                   # K cache
                            pltpu.VMEM((S, E), cdt)],                  # V cache
            compiler_params=pltpu.CompilerParams(
                dimension_semantics=("parallel", "arbitrary"),
                vmem_limit_bytes=vmem_limit),
            cost_estimate=pl.CostEstimate(flops=flops,
                                          transcendentals=transcendentals,
                                          bytes_accessed=bytes_accessed),
        )(x, x_kv, wq, wk, wv, wo, w1, w2, pe, bf1)

    try:
        return run(True)
    except Exception:
        # TODO(synk): pipeline_mode=pl.Buffered(1) unsupported by this JAX build;
        # fall back to default double-buffered resident weights.
        return run(False)


def transformer_block_reference(x, params, *, num_heads):
    """Pure-JAX f32 reference matching the PyTorch module (eval mode, no mask)."""
    B, S, E = x.shape
    H = num_heads
    D = E // H
    q = x @ params["wq_t"] + params["bq"]
    k = x @ params["wk_t"] + params["bk"]
    v = x @ params["wv_t"] + params["bv"]
    q = q.reshape(B, S, H, D).transpose(0, 2, 1, 3) / math.sqrt(D)
    k = k.reshape(B, S, H, D).transpose(0, 2, 1, 3)
    v = v.reshape(B, S, H, D).transpose(0, 2, 1, 3)
    s = jnp.einsum('bhqd,bhkd->bhqk', q, k)
    p = jax.nn.softmax(s, axis=-1)
    ctx = jnp.einsum('bhqk,bhkd->bhqd', p, v).transpose(0, 2, 1, 3).reshape(B, S, E)
    attn = ctx @ params["wo_t"] + params["bo"]

    def ln(y, g, b):
        mu = y.mean(-1, keepdims=True)
        var = ((y - mu) ** 2).mean(-1, keepdims=True)
        return (y - mu) / jnp.sqrt(var + 1e-5) * g + b

    x1 = ln(x + attn, params["g1"], params["be1"])
    h = x1 @ params["w1_t"] + params["bf1"]
    h = 0.5 * h * (1.0 + lax.erf(h / math.sqrt(2.0)))
    h = h @ params["w2_t"] + params["bf2"]
    return ln(x1 + h, params["g2"], params["be2"])


if __name__ == "__main__":
    # small shapes implied by the module: batch=2, seq=8, hidden=32, heads=4, ffn=64
    B, S, E, H, F = 2, 8, 32, 4, 64

    key = jax.random.PRNGKey(0)
    ks = jax.random.split(key, 13)

    params = {
        "wq_t": 0.02 * jax.random.normal(ks[0], (E, E), jnp.float32),
        "bq":   0.01 * jax.random.normal(ks[1], (1, E), jnp.float32),
        "wk_t": 0.02 * jax.random.normal(ks[2], (E, E), jnp.float32),
        "bk":   0.01 * jax.random.normal(ks[3], (1, E), jnp.float32),
        "wv_t": 0.02 * jax.random.normal(ks[4], (E, E), jnp.float32),
        "bv":   0.01 * jax.random.normal(ks[5], (1, E), jnp.float32),
        "wo_t": 0.02 * jax.random.normal(ks[6], (E, E), jnp.float32),
        "bo":   0.01 * jax.random.normal(ks[7], (1, E), jnp.float32),
        "g1":   jnp.ones((1, E), jnp.float32),
        "be1":  jnp.zeros((1, E), jnp.float32),
        "w1_t": 0.02 * jax.random.normal(ks[8], (E, F), jnp.float32),
        "bf1":  0.01 * jax.random.normal(ks[9], (1, F), jnp.float32),
        "w2_t": 0.02 * jax.random.normal(ks[10], (F, E), jnp.float32),
        "bf2":  0.01 * jax.random.normal(ks[11], (1, E), jnp.float32),
        "g2":   jnp.ones((1, E), jnp.float32),
        "be2":  jnp.zeros((1, E), jnp.float32),
    }

    x = jax.random.normal(ks[12], (B, S, E), jnp.float32)

    out = transformer_block(x, params, num_heads=H)
    jax.block_until_ready(out)

    ref = transformer_block_reference(x, params, num_heads=H)
    assert out.shape == (B, S, E)
    assert bool(jnp.all(jnp.isfinite(out)))
    assert bool(jnp.allclose(out, ref, atol=3e-2, rtol=3e-2))
    print("KERNEL_OK")
</pallas_src>

<mosaic_0001>
module attributes {stable_mosaic.version = 11 : i64} {
  func.func @transformer_block_kernel(%arg0: i32, %arg1: i32, %arg2: memref<1x8x32xf32, #tpu.memory_space<vmem>>, %arg3: memref<1x8x32xbf16, #tpu.memory_space<vmem>>, %arg4: memref<32x32xbf16, #tpu.memory_space<vmem>>, %arg5: memref<32x32xbf16, #tpu.memory_space<vmem>>, %arg6: memref<32x32xbf16, #tpu.memory_space<vmem>>, %arg7: memref<32x32xbf16, #tpu.memory_space<vmem>>, %arg8: memref<32x64xbf16, #tpu.memory_space<vmem>>, %arg9: memref<64x32xbf16, #tpu.memory_space<vmem>>, %arg10: memref<9x32xf32, #tpu.memory_space<vmem>>, %arg11: memref<1x64xf32, #tpu.memory_space<vmem>>, %arg12: memref<1x8x32xf32, #tpu.memory_space<vmem>>, %arg13: memref<8x32xbf16, #tpu.memory_space<vmem>>, %arg14: memref<8x32xbf16, #tpu.memory_space<vmem>>) attributes {dimension_semantics = [#tpu.dimension_semantics<parallel>, #tpu.dimension_semantics<arbitrary>], iteration_bounds = array<i64: 2, 1>, scalar_prefetch = 0 : i64, scratch_operands = 2 : i64, tpu.core_type = #tpu.core_type<tc>, window_params = [{transform_indices = @transform_0, window_bounds = array<i64: 1, 8, 32>}, {transform_indices = @transform_1, window_bounds = array<i64: 1, 8, 32>}, {pipeline_mode = #tpu.pipeline_mode<synchronous>, transform_indices = @transform_2, window_bounds = array<i64: 32, 32>}, {pipeline_mode = #tpu.pipeline_mode<synchronous>, transform_indices = @transform_3, window_bounds = array<i64: 32, 32>}, {pipeline_mode = #tpu.pipeline_mode<synchronous>, transform_indices = @transform_4, window_bounds = array<i64: 32, 32>}, {pipeline_mode = #tpu.pipeline_mode<synchronous>, transform_indices = @transform_5, window_bounds = array<i64: 32, 32>}, {pipeline_mode = #tpu.pipeline_mode<synchronous>, transform_indices = @transform_6, window_bounds = array<i64: 32, 64>}, {pipeline_mode = #tpu.pipeline_mode<synchronous>, transform_indices = @transform_7, window_bounds = array<i64: 64, 32>}, {pipeline_mode = #tpu.pipeline_mode<synchronous>, transform_indices = @transform_8, window_bounds = array<i64: 9, 32>}, {pipeline_mode = #tpu.pipeline_mode<synchronous>, transform_indices = @transform_9, window_bounds = array<i64: 1, 64>}, {transform_indices = @transform_10, window_bounds = array<i64: 1, 8, 32>}]} {
    %c0 = arith.constant 0 : index
    %c0_0 = arith.constant 0 : index
    %0 = vector.load %arg10[%c0, %c0_0] : memref<9x32xf32, #tpu.memory_space<vmem>>, vector<9x32xf32>
    %1 = vector.extract_strided_slice %0 {offsets = [0, 0], sizes = [1, 32], strides = [1, 1]} : vector<9x32xf32> to vector<1x32xf32>
    %2 = vector.extract_strided_slice %0 {offsets = [1, 0], sizes = [1, 32], strides = [1, 1]} : vector<9x32xf32> to vector<1x32xf32>
    %3 = vector.extract_strided_slice %0 {offsets = [2, 0], sizes = [1, 32], strides = [1, 1]} : vector<9x32xf32> to vector<1x32xf32>
    %4 = vector.extract_strided_slice %0 {offsets = [3, 0], sizes = [1, 32], strides = [1, 1]} : vector<9x32xf32> to vector<1x32xf32>
    %5 = vector.extract_strided_slice %0 {offsets = [4, 0], sizes = [1, 32], strides = [1, 1]} : vector<9x32xf32> to vector<1x32xf32>
    %6 = vector.extract_strided_slice %0 {offsets = [5, 0], sizes = [1, 32], strides = [1, 1]} : vector<9x32xf32> to vector<1x32xf32>
    %7 = vector.extract_strided_slice %0 {offsets = [6, 0], sizes = [1, 32], strides = [1, 1]} : vector<9x32xf32> to vector<1x32xf32>
    %8 = vector.extract_strided_slice %0 {offsets = [7, 0], sizes = [1, 32], strides = [1, 1]} : vector<9x32xf32> to vector<1x32xf32>
    %9 = vector.extract_strided_slice %0 {offsets = [8, 0], sizes = [1, 32], strides = [1, 1]} : vector<9x32xf32> to vector<1x32xf32>
    %c0_i32 = arith.constant 0 : i32
    %10 = arith.cmpi eq, %arg1, %c0_i32 : i32
    %11 = arith.extui %10 : i1 to i32
    %c0_i32_1 = arith.constant 0 : i32
    %12 = arith.cmpi ne, %11, %c0_i32_1 : i32
    scf.if %12 {
      %c0_43 = arith.constant 0 : index
      %c0_44 = arith.constant 0 : index
      %c0_45 = arith.constant 0 : index
      %119 = vector.load %arg3[%c0_43, %c0_44, %c0_45] : memref<1x8x32xbf16, #tpu.memory_space<vmem>>, vector<1x8x32xbf16>
      %120 = vector.shape_cast %119 : vector<1x8x32xbf16> to vector<8x32xbf16>
      %c0_46 = arith.constant 0 : index
      %c0_47 = arith.constant 0 : index
      %121 = vector.load %arg5[%c0_46, %c0_47] : memref<32x32xbf16, #tpu.memory_space<vmem>>, vector<32x32xbf16>
      %cst_48 = arith.constant dense<0.000000e+00> : vector<8x32xf32>
      %122 = tpu.matmul %120, %121, %cst_48 {dimension_numbers = #tpu.dot_dimension_numbers<[1], [0], [0], [1], [0, 0, 1, 1], [], []>} : vector<8x32xbf16>, vector<32x32xbf16>, vector<8x32xf32> -> vector<8x32xf32>
      %123 = vector.broadcast %2 : vector<1x32xf32> to vector<8x32xf32>
      %124 = arith.addf %122, %123 : vector<8x32xf32>
      %c0_49 = arith.constant 0 : index
      %c0_50 = arith.constant 0 : index
      %125 = vector.load %arg6[%c0_49, %c0_50] : memref<32x32xbf16, #tpu.memory_space<vmem>>, vector<32x32xbf16>
      %cst_51 = arith.constant dense<0.000000e+00> : vector<8x32xf32>
      %126 = tpu.matmul %120, %125, %cst_51 {dimension_numbers = #tpu.dot_dimension_numbers<[1], [0], [0], [1], [0, 0, 1, 1], [], []>} : vector<8x32xbf16>, vector<32x32xbf16>, vector<8x32xf32> -> vector<8x32xf32>
      %127 = vector.broadcast %3 : vector<1x32xf32> to vector<8x32xf32>
      %128 = arith.addf %126, %127 : vector<8x32xf32>
      %129 = arith.truncf %124 : vector<8x32xf32> to vector<8x32xbf16>
      %c0_52 = arith.constant 0 : index
      %c0_53 = arith.constant 0 : index
      %130 = vector.load %arg13[%c0_52, %c0_53] : memref<8x32xbf16, #tpu.memory_space<vmem>>, vector<8x32xbf16>
      tpu.vector_store %arg13[%c0_52, %c0_53], %129 {strides = array<i32>} : memref<8x32xbf16, #tpu.memory_space<vmem>>, vector<8x32xbf16>,
      %131 = arith.truncf %128 : vector<8x32xf32> to vector<8x32xbf16>
      %c0_54 = arith.constant 0 : index
      %c0_55 = arith.constant 0 : index
      %132 = vector.load %arg14[%c0_54, %c0_55] : memref<8x32xbf16, #tpu.memory_space<vmem>>, vector<8x32xbf16>
      tpu.vector_store %arg14[%c0_54, %c0_55], %131 {strides = array<i32>} : memref<8x32xbf16, #tpu.memory_space<vmem>>, vector<8x32xbf16>,
    } else {
    }
    %c0_2 = arith.constant 0 : index
    %c0_3 = arith.constant 0 : index
    %c0_4 = arith.constant 0 : index
    %13 = vector.load %arg2[%c0_2, %c0_3, %c0_4] : memref<1x8x32xf32, #tpu.memory_space<vmem>>, vector<1x8x32xf32>
    %14 = vector.shape_cast %13 : vector<1x8x32xf32> to vector<8x32xf32>
    %15 = arith.truncf %14 : vector<8x32xf32> to vector<8x32xbf16>
    %c0_5 = arith.constant 0 : index
    %c0_6 = arith.constant 0 : index
    %16 = vector.load %arg4[%c0_5, %c0_6] : memref<32x32xbf16, #tpu.memory_space<vmem>>, vector<32x32xbf16>
    %cst = arith.constant dense<0.000000e+00> : vector<8x32xf32>
    %17 = tpu.matmul %15, %16, %cst {dimension_numbers = #tpu.dot_dimension_numbers<[1], [0], [0], [1], [0, 0, 1, 1], [], []>} : vector<8x32xbf16>, vector<32x32xbf16>, vector<8x32xf32> -> vector<8x32xf32>
    %18 = vector.broadcast %1 : vector<1x32xf32> to vector<8x32xf32>
    %19 = arith.addf %17, %18 : vector<8x32xf32>
    %cst_7 = arith.constant 0.353553385 : f32
    %20 = vector.broadcast %cst_7 : f32 to vector<8x32xf32>
    %21 = arith.mulf %19, %20 : vector<8x32xf32>
    %22 = vector.shape_cast %21 : vector<8x32xf32> to vector<8x4x8xf32>
    %23 = tpu.transpose %22, [1, 0, 2] : vector<8x4x8xf32> -> vector<4x8x8xf32>
    %24 = arith.truncf %23 : vector<4x8x8xf32> to vector<4x8x8xbf16>
    %c0_8 = arith.constant 0 : index
    %c0_9 = arith.constant 0 : index
    %25 = vector.load %arg13[%c0_8, %c0_9] : memref<8x32xbf16, #tpu.memory_space<vmem>>, vector<8x32xbf16>
    %26 = vector.shape_cast %25 : vector<8x32xbf16> to vector<8x4x8xbf16>
    %27 = tpu.transpose %26, [1, 0, 2] : vector<8x4x8xbf16> -> vector<4x8x8xbf16>
    %c0_10 = arith.constant 0 : index
    %c0_11 = arith.constant 0 : index
    %28 = vector.load %arg14[%c0_10, %c0_11] : memref<8x32xbf16, #tpu.memory_space<vmem>>, vector<8x32xbf16>
    %29 = vector.shape_cast %28 : vector<8x32xbf16> to vector<8x4x8xbf16>
    %30 = tpu.transpose %29, [1, 0, 2] : vector<8x4x8xbf16> -> vector<4x8x8xbf16>
    "tpu.trace_start"() <{level = 10 : i32, message = "hqd,hkd->hqk"}> : () -> ()
    %cst_12 = arith.constant dense<0.000000e+00> : vector<4x8x8xf32>
    %31 = tpu.matmul %24, %27, %cst_12 {dimension_numbers = #tpu.dot_dimension_numbers<[2], [2], [1], [1], [0, 0, 0, 1, 1, 1], [0], [0]>} : vector<4x8x8xbf16>, vector<4x8x8xbf16>, vector<4x8x8xf32> -> vector<4x8x8xf32>
    "tpu.trace_stop"() : () -> ()
    %cst_13 = arith.constant dense<0xFF800000> : vector<4x8xf32>
    %32 = vector.multi_reduction <maximumf>, %31, %cst_13 [2] : vector<4x8x8xf32> to vector<4x8xf32>
    %33 = vector.shape_cast %32 : vector<4x8xf32> to vector<4x8x1xf32>
    %34 = vector.broadcast %33 : vector<4x8x1xf32> to vector<4x8x8xf32>
    %35 = arith.subf %31, %34 : vector<4x8x8xf32>
    %36 = math.exp %35 : vector<4x8x8xf32>
    %cst_14 = arith.constant dense<0.000000e+00> : vector<4x8xf32>
    %37 = vector.multi_reduction <add>, %36, %cst_14 [2] : vector<4x8x8xf32> to vector<4x8xf32>
    %38 = vector.shape_cast %37 : vector<4x8xf32> to vector<4x8x1xf32>
    %39 = arith.truncf %36 : vector<4x8x8xf32> to vector<4x8x8xbf16>
    "tpu.trace_start"() <{level = 10 : i32, message = "hqk,hkd->hqd"}> : () -> ()
    %cst_15 = arith.constant dense<0.000000e+00> : vector<4x8x8xf32>
    %40 = tpu.matmul %39, %30, %cst_15 {dimension_numbers = #tpu.dot_dimension_numbers<[2], [1], [1], [2], [0, 0, 0, 1, 1, 2], [0], [0]>} : vector<4x8x8xbf16>, vector<4x8x8xbf16>, vector<4x8x8xf32> -> vector<4x8x8xf32>
    "tpu.trace_stop"() : () -> ()
    %41 = tpu.reciprocal %38 {approx = true} : vector<4x8x1xf32> -> vector<4x8x1xf32>
    %42 = vector.broadcast %41 : vector<4x8x1xf32> to vector<4x8x8xf32>
    %43 = arith.mulf %40, %42 : vector<4x8x8xf32>
    %44 = tpu.transpose %43, [1, 0, 2] : vector<4x8x8xf32> -> vector<8x4x8xf32>
    %45 = vector.shape_cast %44 : vector<8x4x8xf32> to vector<8x32xf32>
    %46 = arith.truncf %45 : vector<8x32xf32> to vector<8x32xbf16>
    %c0_16 = arith.constant 0 : index
    %c0_17 = arith.constant 0 : index
    %47 = vector.load %arg7[%c0_16, %c0_17] : memref<32x32xbf16, #tpu.memory_space<vmem>>, vector<32x32xbf16>
    %cst_18 = arith.constant dense<0.000000e+00> : vector<8x32xf32>
    %48 = tpu.matmul %46, %47, %cst_18 {dimension_numbers = #tpu.dot_dimension_numbers<[1], [0], [0], [1], [0, 0, 1, 1], [], []>} : vector<8x32xbf16>, vector<32x32xbf16>, vector<8x32xf32> -> vector<8x32xf32>
    %49 = vector.broadcast %4 : vector<1x32xf32> to vector<8x32xf32>
    %50 = arith.addf %48, %49 : vector<8x32xf32>
    %51 = arith.addf %14, %50 : vector<8x32xf32>
    %cst_19 = arith.constant dense<0.000000e+00> : vector<8xf32>
    %52 = vector.multi_reduction <add>, %51, %cst_19 [1] : vector<8x32xf32> to vector<8xf32>
    %53 = vector.shape_cast %52 : vector<8xf32> to vector<8x1xf32>
    %cst_20 = arith.constant 3.200000e+01 : f32
    %54 = vector.broadcast %cst_20 : f32 to vector<8x1xf32>
    %55 = arith.divf %53, %54 : vector<8x1xf32>
    %56 = vector.broadcast %55 : vector<8x1xf32> to vector<8x32xf32>
    %57 = arith.subf %51, %56 : vector<8x32xf32>
    %58 = arith.mulf %57, %57 : vector<8x32xf32>
    %cst_21 = arith.constant dense<0.000000e+00> : vector<8xf32>
    %59 = vector.multi_reduction <add>, %58, %cst_21 [1] : vector<8x32xf32> to vector<8xf32>
    %60 = vector.shape_cast %59 : vector<8xf32> to vector<8x1xf32>
    %cst_22 = arith.constant 3.200000e+01 : f32
    %61 = vector.broadcast %cst_22 : f32 to vector<8x1xf32>
    %62 = arith.divf %60, %61 : vector<8x1xf32>
    %63 = vector.broadcast %55 : vector<8x1xf32> to vector<8x32xf32>
    %64 = arith.subf %51, %63 : vector<8x32xf32>
    %cst_23 = arith.constant 9.99999974E-6 : f32
    %65 = vector.broadcast %cst_23 : f32 to vector<8x1xf32>
    %66 = arith.addf %62, %65 : vector<8x1xf32>
    %67 = math.rsqrt %66 : vector<8x1xf32>
    %68 = vector.broadcast %67 : vector<8x1xf32> to vector<8x32xf32>
    %69 = arith.mulf %64, %68 : vector<8x32xf32>
    %70 = vector.broadcast %5 : vector<1x32xf32> to vector<8x32xf32>
    %71 = arith.mulf %69, %70 : vector<8x32xf32>
    %72 = vector.broadcast %6 : vector<1x32xf32> to vector<8x32xf32>
    %73 = arith.addf %71, %72 : vector<8x32xf32>
    %74 = arith.truncf %73 : vector<8x32xf32> to vector<8x32xbf16>
    %c0_24 = arith.constant 0 : index
    %c0_25 = arith.constant 0 : index
    %75 = vector.load %arg8[%c0_24, %c0_25] : memref<32x64xbf16, #tpu.memory_space<vmem>>, vector<32x64xbf16>
    %cst_26 = arith.constant dense<0.000000e+00> : vector<8x64xf32>
    %76 = tpu.matmul %74, %75, %cst_26 {dimension_numbers = #tpu.dot_dimension_numbers<[1], [0], [0], [1], [0, 0, 1, 1], [], []>} : vector<8x32xbf16>, vector<32x64xbf16>, vector<8x64xf32> -> vector<8x64xf32>
    %c0_27 = arith.constant 0 : index
    %c0_28 = arith.constant 0 : index
    %77 = vector.load %arg11[%c0_27, %c0_28] : memref<1x64xf32, #tpu.memory_space<vmem>>, vector<1x64xf32>
    %78 = vector.broadcast %77 : vector<1x64xf32> to vector<8x64xf32>
    %79 = arith.addf %76, %78 : vector<8x64xf32>
    %cst_29 = arith.constant 5.000000e-01 : f32
    %80 = vector.broadcast %cst_29 : f32 to vector<8x64xf32>
    %81 = arith.mulf %80, %79 : vector<8x64xf32>
    %cst_30 = arith.constant 0.707106769 : f32
    %82 = vector.broadcast %cst_30 : f32 to vector<8x64xf32>
    %83 = arith.mulf %79, %82 : vector<8x64xf32>
    %84 = math.erf %83 : vector<8x64xf32>
    %cst_31 = arith.constant 1.000000e+00 : f32
    %85 = vector.broadcast %cst_31 : f32 to vector<8x64xf32>
    %86 = arith.addf %85, %84 : vector<8x64xf32>
    %87 = arith.mulf %81, %86 : vector<8x64xf32>
    %88 = arith.truncf %87 : vector<8x64xf32> to vector<8x64xbf16>
    %c0_32 = arith.constant 0 : index
    %c0_33 = arith.constant 0 : index
    %89 = vector.load %arg9[%c0_32, %c0_33] : memref<64x32xbf16, #tpu.memory_space<vmem>>, vector<64x32xbf16>
    %cst_34 = arith.constant dense<0.000000e+00> : vector<8x32xf32>
    %90 = tpu.matmul %88, %89, %cst_34 {dimension_numbers = #tpu.dot_dimension_numbers<[1], [0], [0], [1], [0, 0, 1, 1], [], []>} : vector<8x64xbf16>, vector<64x32xbf16>, vector<8x32xf32> -> vector<8x32xf32>
    %91 = vector.broadcast %7 : vector<1x32xf32> to vector<8x32xf32>
    %92 = arith.addf %90, %91 : vector<8x32xf32>
    %93 = arith.addf %73, %92 : vector<8x32xf32>
    %cst_35 = arith.constant dense<0.000000e+00> : vector<8xf32>
    %94 = vector.multi_reduction <add>, %93, %cst_35 [1] : vector<8x32xf32> to vector<8xf32>
    %95 = vector.shape_cast %94 : vector<8xf32> to vector<8x1xf32>
    %cst_36 = arith.constant 3.200000e+01 : f32
    %96 = vector.broadcast %cst_36 : f32 to vector<8x1xf32>
    %97 = arith.divf %95, %96 : vector<8x1xf32>
    %98 = vector.broadcast %97 : vector<8x1xf32> to vector<8x32xf32>
    %99 = arith.subf %93, %98 : vector<8x32xf32>
    %100 = arith.mulf %99, %99 : vector<8x32xf32>
    %cst_37 = arith.constant dense<0.000000e+00> : vector<8xf32>
    %101 = vector.multi_reduction <add>, %100, %cst_37 [1] : vector<8x32xf32> to vector<8xf32>
    %102 = vector.shape_cast %101 : vector<8xf32> to vector<8x1xf32>
    %cst_38 = arith.constant 3.200000e+01 : f32
    %103 = vector.broadcast %cst_38 : f32 to vector<8x1xf32>
    %104 = arith.divf %102, %103 : vector<8x1xf32>
    %105 = vector.broadcast %97 : vector<8x1xf32> to vector<8x32xf32>
    %106 = arith.subf %93, %105 : vector<8x32xf32>
    %cst_39 = arith.constant 9.99999974E-6 : f32
    %107 = vector.broadcast %cst_39 : f32 to vector<8x1xf32>
    %108 = arith.addf %104, %107 : vector<8x1xf32>
    %109 = math.rsqrt %108 : vector<8x1xf32>
    %110 = vector.broadcast %109 : vector<8x1xf32> to vector<8x32xf32>
    %111 = arith.mulf %106, %110 : vector<8x32xf32>
    %112 = vector.broadcast %8 : vector<1x32xf32> to vector<8x32xf32>
    %113 = arith.mulf %111, %112 : vector<8x32xf32>
    %114 = vector.broadcast %9 : vector<1x32xf32> to vector<8x32xf32>
    %115 = arith.addf %113, %114 : vector<8x32xf32>
    %c0_40 = arith.constant 0 : index
    %c0_41 = arith.constant 0 : index
    %c0_42 = arith.constant 0 : index
    %116 = vector.load %arg12[%c0_40, %c0_41, %c0_42] : memref<1x8x32xf32, #tpu.memory_space<vmem>>, vector<1x8x32xf32>
    %117 = vector.shape_cast %116 : vector<1x8x32xf32> to vector<8x32xf32>
    %118 = vector.shape_cast %115 : vector<8x32xf32> to vector<1x8x32xf32>
    tpu.vector_store %arg12[%c0_40, %c0_41, %c0_42], %118 {strides = array<i32>} : memref<1x8x32xf32, #tpu.memory_space<vmem>>, vector<1x8x32xf32>,
    return
  }
  func.func @transform_0(%arg0: i32, %arg1: i32) -> (i32, i32, i32) {
    %c0_i32 = arith.constant 0 : i32
    %c0_i32_0 = arith.constant 0 : i32
    return %arg0, %arg1, %c0_i32 : i32, i32, i32
  }
  func.func @transform_1(%arg0: i32, %arg1: i32) -> (i32, i32, i32) {
    %c0_i32 = arith.constant 0 : i32
    %c0_i32_0 = arith.constant 0 : i32
    %c0_i32_1 = arith.constant 0 : i32
    return %arg0, %c0_i32, %c0_i32_0 : i32, i32, i32
  }
  func.func @transform_2(%arg0: i32, %arg1: i32) -> (i32, i32) {
    %c0_i32 = arith.constant 0 : i32
    %c0_i32_0 = arith.constant 0 : i32
    %c0_i32_1 = arith.constant 0 : i32
    return %c0_i32, %c0_i32_0 : i32, i32
  }
  func.func @transform_3(%arg0: i32, %arg1: i32) -> (i32, i32) {
    %c0_i32 = arith.constant 0 : i32
    %c0_i32_0 = arith.constant 0 : i32
    %c0_i32_1 = arith.constant 0 : i32
    return %c0_i32, %c0_i32_0 : i32, i32
  }
  func.func @transform_4(%arg0: i32, %arg1: i32) -> (i32, i32) {
    %c0_i32 = arith.constant 0 : i32
    %c0_i32_0 = arith.constant 0 : i32
    %c0_i32_1 = arith.constant 0 : i32
    return %c0_i32, %c0_i32_0 : i32, i32
  }
  func.func @transform_5(%arg0: i32, %arg1: i32) -> (i32, i32) {
    %c0_i32 = arith.constant 0 : i32
    %c0_i32_0 = arith.constant 0 : i32
    %c0_i32_1 = arith.constant 0 : i32
    return %c0_i32, %c0_i32_0 : i32, i32
  }
  func.func @transform_6(%arg0: i32, %arg1: i32) -> (i32, i32) {
    %c0_i32 = arith.constant 0 : i32
    %c0_i32_0 = arith.constant 0 : i32
    %c0_i32_1 = arith.constant 0 : i32
    return %c0_i32, %c0_i32_0 : i32, i32
  }
  func.func @transform_7(%arg0: i32, %arg1: i32) -> (i32, i32) {
    %c0_i32 = arith.constant 0 : i32
    %c0_i32_0 = arith.constant 0 : i32
    %c0_i32_1 = arith.constant 0 : i32
    return %c0_i32, %c0_i32_0 : i32, i32
  }
  func.func @transform_8(%arg0: i32, %arg1: i32) -> (i32, i32) {
    %c0_i32 = arith.constant 0 : i32
    %c0_i32_0 = arith.constant 0 : i32
    %c0_i32_1 = arith.constant 0 : i32
    return %c0_i32, %c0_i32_0 : i32, i32
  }
  func.func @transform_9(%arg0: i32, %arg1: i32) -> (i32, i32) {
    %c0_i32 = arith.constant 0 : i32
    %c0_i32_0 = arith.constant 0 : i32
    %c0_i32_1 = arith.constant 0 : i32
    return %c0_i32, %c0_i32_0 : i32, i32
  }
  func.func @transform_10(%arg0: i32, %arg1: i32) -> (i32, i32, i32) {
    %c0_i32 = arith.constant 0 : i32
    %c0_i32_0 = arith.constant 0 : i32
    return %arg0, %arg1, %c0_i32 : i32, i32, i32
  }
}

module attributes {stable_mosaic.version = 11 : i64} {
  func.func @transformer_block_kernel(%arg0: i32, %arg1: i32, %arg2: memref<1x8x32xf32, #tpu.memory_space<vmem>>, %arg3: memref<1x8x32xbf16, #tpu.memory_space<vmem>>, %arg4: memref<32x32xbf16, #tpu.memory_space<vmem>>, %arg5: memref<32x32xbf16, #tpu.memory_space<vmem>>, %arg6: memref<32x32xbf16, #tpu.memory_space<vmem>>, %arg7: memref<32x32xbf16, #tpu.memory_space<vmem>>, %arg8: memref<32x64xbf16, #tpu.memory_space<vmem>>, %arg9: memref<64x32xbf16, #tpu.memory_space<vmem>>, %arg10: memref<9x32xf32, #tpu.memory_space<vmem>>, %arg11: memref<1x64xf32, #tpu.memory_space<vmem>>, %arg12: memref<1x8x32xf32, #tpu.memory_space<vmem>>, %arg13: memref<8x32xbf16, #tpu.memory_space<vmem>>, %arg14: memref<8x32xbf16, #tpu.memory_space<vmem>>) attributes {dimension_semantics = [#tpu.dimension_semantics<parallel>, #tpu.dimension_semantics<arbitrary>], iteration_bounds = array<i64: 2, 1>, scalar_prefetch = 0 : i64, scratch_operands = 2 : i64, tpu.core_type = #tpu.core_type<tc>, window_params = [{transform_indices = @transform_0, window_bounds = array<i64: 1, 8, 32>}, {transform_indices = @transform_1, window_bounds = array<i64: 1, 8, 32>}, {pipeline_mode = #tpu.pipeline_mode<synchronous>, transform_indices = @transform_2, window_bounds = array<i64: 32, 32>}, {pipeline_mode = #tpu.pipeline_mode<synchronous>, transform_indices = @transform_3, window_bounds = array<i64: 32, 32>}, {pipeline_mode = #tpu.pipeline_mode<synchronous>, transform_indices = @transform_4, window_bounds = array<i64: 32, 32>}, {pipeline_mode = #tpu.pipeline_mode<synchronous>, transform_indices = @transform_5, window_bounds = array<i64: 32, 32>}, {pipeline_mode = #tpu.pipeline_mode<synchronous>, transform_indices = @transform_6, window_bounds = array<i64: 32, 64>}, {pipeline_mode = #tpu.pipeline_mode<synchronous>, transform_indices = @transform_7, window_bounds = array<i64: 64, 32>}, {pipeline_mode = #tpu.pipeline_mode<synchronous>, transform_indices = @transform_8, window_bounds = array<i64: 9, 32>}, {pipeline_mode = #tpu.pipeline_mode<synchronous>, transform_indices = @transform_9, window_bounds = array<i64: 1, 64>}, {transform_indices = @transform_10, window_bounds = array<i64: 1, 8, 32>}]} {
    %c0 = arith.constant 0 : index
    %c0_0 = arith.constant 0 : index
    %0 = vector.load %arg10[%c0, %c0_0] : memref<9x32xf32, #tpu.memory_space<vmem>>, vector<9x32xf32>
    %1 = vector.extract_strided_slice %0 {offsets = [0, 0], sizes = [1, 32], strides = [1, 1]} : vector<9x32xf32> to vector<1x32xf32>
    %2 = vector.extract_strided_slice %0 {offsets = [1, 0], sizes = [1, 32], strides = [1, 1]} : vector<9x32xf32> to vector<1x32xf32>
    %3 = vector.extract_strided_slice %0 {offsets = [2, 0], sizes = [1, 32], strides = [1, 1]} : vector<9x32xf32> to vector<1x32xf32>
    %4 = vector.extract_strided_slice %0 {offsets = [3, 0], sizes = [1, 32], strides = [1, 1]} : vector<9x32xf32> to vector<1x32xf32>
    %5 = vector.extract_strided_slice %0 {offsets = [4, 0], sizes = [1, 32], strides = [1, 1]} : vector<9x32xf32> to vector<1x32xf32>
    %6 = vector.extract_strided_slice %0 {offsets = [5, 0], sizes = [1, 32], strides = [1, 1]} : vector<9x32xf32> to vector<1x32xf32>
    %7 = vector.extract_strided_slice %0 {offsets = [6, 0], sizes = [1, 32], strides = [1, 1]} : vector<9x32xf32> to vector<1x32xf32>
    %8 = vector.extract_strided_slice %0 {offsets = [7, 0], sizes = [1, 32], strides = [1, 1]} : vector<9x32xf32> to vector<1x32xf32>
    %9 = vector.extract_strided_slice %0 {offsets = [8, 0], sizes = [1, 32], strides = [1, 1]} : vector<9x32xf32> to vector<1x32xf32>
    %c0_i32 = arith.constant 0 : i32
    %10 = arith.cmpi eq, %arg1, %c0_i32 : i32
    %11 = arith.extui %10 : i1 to i32
    %c0_i32_1 = arith.constant 0 : i32
    %12 = arith.cmpi ne, %11, %c0_i32_1 : i32
    scf.if %12 {
      %c0_43 = arith.constant 0 : index
      %c0_44 = arith.constant 0 : index
      %c0_45 = arith.constant 0 : index
      %119 = vector.load %arg3[%c0_43, %c0_44, %c0_45] : memref<1x8x32xbf16, #tpu.memory_space<vmem>>, vector<1x8x32xbf16>
      %120 = vector.shape_cast %119 : vector<1x8x32xbf16> to vector<8x32xbf16>
      %c0_46 = arith.constant 0 : index
      %c0_47 = arith.constant 0 : index
      %121 = vector.load %arg5[%c0_46, %c0_47] : memref<32x32xbf16, #tpu.memory_space<vmem>>, vector<32x32xbf16>
      %cst_48 = arith.constant dense<0.000000e+00> : vector<8x32xf32>
      %122 = tpu.matmul %120, %121, %cst_48 {dimension_numbers = #tpu.dot_dimension_numbers<[1], [0], [0], [1], [0, 0, 1, 1], [], []>} : vector<8x32xbf16>, vector<32x32xbf16>, vector<8x32xf32> -> vector<8x32xf32>
      %123 = vector.broadcast %2 : vector<1x32xf32> to vector<8x32xf32>
      %124 = arith.addf %122, %123 : vector<8x32xf32>
      %c0_49 = arith.constant 0 : index
      %c0_50 = arith.constant 0 : index
      %125 = vector.load %arg6[%c0_49, %c0_50] : memref<32x32xbf16, #tpu.memory_space<vmem>>, vector<32x32xbf16>
      %cst_51 = arith.constant dense<0.000000e+00> : vector<8x32xf32>
      %126 = tpu.matmul %120, %125, %cst_51 {dimension_numbers = #tpu.dot_dimension_numbers<[1], [0], [0], [1], [0, 0, 1, 1], [], []>} : vector<8x32xbf16>, vector<32x32xbf16>, vector<8x32xf32> -> vector<8x32xf32>
      %127 = vector.broadcast %3 : vector<1x32xf32> to vector<8x32xf32>
      %128 = arith.addf %126, %127 : vector<8x32xf32>
      %129 = arith.truncf %124 : vector<8x32xf32> to vector<8x32xbf16>
      %c0_52 = arith.constant 0 : index
      %c0_53 = arith.constant 0 : index
      %130 = vector.load %arg13[%c0_52, %c0_53] : memref<8x32xbf16, #tpu.memory_space<vmem>>, vector<8x32xbf16>
      tpu.vector_store %arg13[%c0_52, %c0_53], %129 {strides = array<i32>} : memref<8x32xbf16, #tpu.memory_space<vmem>>, vector<8x32xbf16>,
      %131 = arith.truncf %128 : vector<8x32xf32> to vector<8x32xbf16>
      %c0_54 = arith.constant 0 : index
      %c0_55 = arith.constant 0 : index
      %132 = vector.load %arg14[%c0_54, %c0_55] : memref<8x32xbf16, #tpu.memory_space<vmem>>, vector<8x32xbf16>
      tpu.vector_store %arg14[%c0_54, %c0_55], %131 {strides = array<i32>} : memref<8x32xbf16, #tpu.memory_space<vmem>>, vector<8x32xbf16>,
    } else {
    }
    %c0_2 = arith.constant 0 : index
    %c0_3 = arith.constant 0 : index
    %c0_4 = arith.constant 0 : index
    %13 = vector.load %arg2[%c0_2, %c0_3, %c0_4] : memref<1x8x32xf32, #tpu.memory_space<vmem>>, vector<1x8x32xf32>
    %14 = vector.shape_cast %13 : vector<1x8x32xf32> to vector<8x32xf32>
    %15 = arith.truncf %14 : vector<8x32xf32> to vector<8x32xbf16>
    %c0_5 = arith.constant 0 : index
    %c0_6 = arith.constant 0 : index
    %16 = vector.load %arg4[%c0_5, %c0_6] : memref<32x32xbf16, #tpu.memory_space<vmem>>, vector<32x32xbf16>
    %cst = arith.constant dense<0.000000e+00> : vector<8x32xf32>
    %17 = tpu.matmul %15, %16, %cst {dimension_numbers = #tpu.dot_dimension_numbers<[1], [0], [0], [1], [0, 0, 1, 1], [], []>} : vector<8x32xbf16>, vector<32x32xbf16>, vector<8x32xf32> -> vector<8x32xf32>
    %18 = vector.broadcast %1 : vector<1x32xf32> to vector<8x32xf32>
    %19 = arith.addf %17, %18 : vector<8x32xf32>
    %cst_7 = arith.constant 0.353553385 : f32
    %20 = vector.broadcast %cst_7 : f32 to vector<8x32xf32>
    %21 = arith.mulf %19, %20 : vector<8x32xf32>
    %22 = vector.shape_cast %21 : vector<8x32xf32> to vector<8x4x8xf32>
    %23 = tpu.transpose %22, [1, 0, 2] : vector<8x4x8xf32> -> vector<4x8x8xf32>
    %24 = arith.truncf %23 : vector<4x8x8xf32> to vector<4x8x8xbf16>
    %c0_8 = arith.constant 0 : index
    %c0_9 = arith.constant 0 : index
    %25 = vector.load %arg13[%c0_8, %c0_9] : memref<8x32xbf16, #tpu.memory_space<vmem>>, vector<8x32xbf16>
    %26 = vector.shape_cast %25 : vector<8x32xbf16> to vector<8x4x8xbf16>
    %27 = tpu.transpose %26, [1, 0, 2] : vector<8x4x8xbf16> -> vector<4x8x8xbf16>
    %c0_10 = arith.constant 0 : index
    %c0_11 = arith.constant 0 : index
    %28 = vector.load %arg14[%c0_10, %c0_11] : memref<8x32xbf16, #tpu.memory_space<vmem>>, vector<8x32xbf16>
    %29 = vector.shape_cast %28 : vector<8x32xbf16> to vector<8x4x8xbf16>
    %30 = tpu.transpose %29, [1, 0, 2] : vector<8x4x8xbf16> -> vector<4x8x8xbf16>
    "tpu.trace_start"() <{level = 10 : i32, message = "hqd,hkd->hqk"}> : () -> ()
    %cst_12 = arith.constant dense<0.000000e+00> : vector<4x8x8xf32>
    %31 = tpu.matmul %24, %27, %cst_12 {dimension_numbers = #tpu.dot_dimension_numbers<[2], [2], [1], [1], [0, 0, 0, 1, 1, 1], [0], [0]>} : vector<4x8x8xbf16>, vector<4x8x8xbf16>, vector<4x8x8xf32> -> vector<4x8x8xf32>
    "tpu.trace_stop"() : () -> ()
    %cst_13 = arith.constant dense<0xFF800000> : vector<4x8xf32>
    %32 = vector.multi_reduction <maximumf>, %31, %cst_13 [2] : vector<4x8x8xf32> to vector<4x8xf32>
    %33 = vector.shape_cast %32 : vector<4x8xf32> to vector<4x8x1xf32>
    %34 = vector.broadcast %33 : vector<4x8x1xf32> to vector<4x8x8xf32>
    %35 = arith.subf %31, %34 : vector<4x8x8xf32>
    %36 = math.exp %35 : vector<4x8x8xf32>
    %cst_14 = arith.constant dense<0.000000e+00> : vector<4x8xf32>
    %37 = vector.multi_reduction <add>, %36, %cst_14 [2] : vector<4x8x8xf32> to vector<4x8xf32>
    %38 = vector.shape_cast %37 : vector<4x8xf32> to vector<4x8x1xf32>
    %39 = arith.truncf %36 : vector<4x8x8xf32> to vector<4x8x8xbf16>
    "tpu.trace_start"() <{level = 10 : i32, message = "hqk,hkd->hqd"}> : () -> ()
    %cst_15 = arith.constant dense<0.000000e+00> : vector<4x8x8xf32>
    %40 = tpu.matmul %39, %30, %cst_15 {dimension_numbers = #tpu.dot_dimension_numbers<[2], [1], [1], [2], [0, 0, 0, 1, 1, 2], [0], [0]>} : vector<4x8x8xbf16>, vector<4x8x8xbf16>, vector<4x8x8xf32> -> vector<4x8x8xf32>
    "tpu.trace_stop"() : () -> ()
    %41 = tpu.reciprocal %38 {approx = true} : vector<4x8x1xf32> -> vector<4x8x1xf32>
    %42 = vector.broadcast %41 : vector<4x8x1xf32> to vector<4x8x8xf32>
    %43 = arith.mulf %40, %42 : vector<4x8x8xf32>
    %44 = tpu.transpose %43, [1, 0, 2] : vector<4x8x8xf32> -> vector<8x4x8xf32>
    %45 = vector.shape_cast %44 : vector<8x4x8xf32> to vector<8x32xf32>
    %46 = arith.truncf %45 : vector<8x32xf32> to vector<8x32xbf16>
    %c0_16 = arith.constant 0 : index
    %c0_17 = arith.constant 0 : index
    %47 = vector.load %arg7[%c0_16, %c0_17] : memref<32x32xbf16, #tpu.memory_space<vmem>>, vector<32x32xbf16>
    %cst_18 = arith.constant dense<0.000000e+00> : vector<8x32xf32>
    %48 = tpu.matmul %46, %47, %cst_18 {dimension_numbers = #tpu.dot_dimension_numbers<[1], [0], [0], [1], [0, 0, 1, 1], [], []>} : vector<8x32xbf16>, vector<32x32xbf16>, vector<8x32xf32> -> vector<8x32xf32>
    %49 = vector.broadcast %4 : vector<1x32xf32> to vector<8x32xf32>
    %50 = arith.addf %48, %49 : vector<8x32xf32>
    %51 = arith.addf %14, %50 : vector<8x32xf32>
    %cst_19 = arith.constant dense<0.000000e+00> : vector<8xf32>
    %52 = vector.multi_reduction <add>, %51, %cst_19 [1] : vector<8x32xf32> to vector<8xf32>
    %53 = vector.shape_cast %52 : vector<8xf32> to vector<8x1xf32>
    %cst_20 = arith.constant 3.200000e+01 : f32
    %54 = vector.broadcast %cst_20 : f32 to vector<8x1xf32>
    %55 = arith.divf %53, %54 : vector<8x1xf32>
    %56 = vector.broadcast %55 : vector<8x1xf32> to vector<8x32xf32>
    %57 = arith.subf %51, %56 : vector<8x32xf32>
    %58 = arith.mulf %57, %57 : vector<8x32xf32>
    %cst_21 = arith.constant dense<0.000000e+00> : vector<8xf32>
    %59 = vector.multi_reduction <add>, %58, %cst_21 [1] : vector<8x32xf32> to vector<8xf32>
    %60 = vector.shape_cast %59 : vector<8xf32> to vector<8x1xf32>
    %cst_22 = arith.constant 3.200000e+01 : f32
    %61 = vector.broadcast %cst_22 : f32 to vector<8x1xf32>
    %62 = arith.divf %60, %61 : vector<8x1xf32>
    %63 = vector.broadcast %55 : vector<8x1xf32> to vector<8x32xf32>
    %64 = arith.subf %51, %63 : vector<8x32xf32>
    %cst_23 = arith.constant 9.99999974E-6 : f32
    %65 = vector.broadcast %cst_23 : f32 to vector<8x1xf32>
    %66 = arith.addf %62, %65 : vector<8x1xf32>
    %67 = math.rsqrt %66 : vector<8x1xf32>
    %68 = vector.broadcast %67 : vector<8x1xf32> to vector<8x32xf32>
    %69 = arith.mulf %64, %68 : vector<8x32xf32>
    %70 = vector.broadcast %5 : vector<1x32xf32> to vector<8x32xf32>
    %71 = arith.mulf %69, %70 : vector<8x32xf32>
    %72 = vector.broadcast %6 : vector<1x32xf32> to vector<8x32xf32>
    %73 = arith.addf %71, %72 : vector<8x32xf32>
    %74 = arith.truncf %73 : vector<8x32xf32> to vector<8x32xbf16>
    %c0_24 = arith.constant 0 : index
    %c0_25 = arith.constant 0 : index
    %75 = vector.load %arg8[%c0_24, %c0_25] : memref<32x64xbf16, #tpu.memory_space<vmem>>, vector<32x64xbf16>
    %cst_26 = arith.constant dense<0.000000e+00> : vector<8x64xf32>
    %76 = tpu.matmul %74, %75, %cst_26 {dimension_numbers = #tpu.dot_dimension_numbers<[1], [0], [0], [1], [0, 0, 1, 1], [], []>} : vector<8x32xbf16>, vector<32x64xbf16>, vector<8x64xf32> -> vector<8x64xf32>
    %c0_27 = arith.constant 0 : index
    %c0_28 = arith.constant 0 : index
    %77 = vector.load %arg11[%c0_27, %c0_28] : memref<1x64xf32, #tpu.memory_space<vmem>>, vector<1x64xf32>
    %78 = vector.broadcast %77 : vector<1x64xf32> to vector<8x64xf32>
    %79 = arith.addf %76, %78 : vector<8x64xf32>
    %cst_29 = arith.constant 5.000000e-01 : f32
    %80 = vector.broadcast %cst_29 : f32 to vector<8x64xf32>
    %81 = arith.mulf %80, %79 : vector<8x64xf32>
    %cst_30 = arith.constant 0.707106769 : f32
    %82 = vector.broadcast %cst_30 : f32 to vector<8x64xf32>
    %83 = arith.mulf %79, %82 : vector<8x64xf32>
    %84 = math.erf %83 : vector<8x64xf32>
    %cst_31 = arith.constant 1.000000e+00 : f32
    %85 = vector.broadcast %cst_31 : f32 to vector<8x64xf32>
    %86 = arith.addf %85, %84 : vector<8x64xf32>
    %87 = arith.mulf %81, %86 : vector<8x64xf32>
    %88 = arith.truncf %87 : vector<8x64xf32> to vector<8x64xbf16>
    %c0_32 = arith.constant 0 : index
    %c0_33 = arith.constant 0 : index
    %89 = vector.load %arg9[%c0_32, %c0_33] : memref<64x32xbf16, #tpu.memory_space<vmem>>, vector<64x32xbf16>
    %cst_34 = arith.constant dense<0.000000e+00> : vector<8x32xf32>
    %90 = tpu.matmul %88, %89, %cst_34 {dimension_numbers = #tpu.dot_dimension_numbers<[1], [0], [0], [1], [0, 0, 1, 1], [], []>} : vector<8x64xbf16>, vector<64x32xbf16>, vector<8x32xf32> -> vector<8x32xf32>
    %91 = vector.broadcast %7 : vector<1x32xf32> to vector<8x32xf32>
    %92 = arith.addf %90, %91 : vector<8x32xf32>
    %93 = arith.addf %73, %92 : vector<8x32xf32>
    %cst_35 = arith.constant dense<0.000000e+00> : vector<8xf32>
    %94 = vector.multi_reduction <add>, %93, %cst_35 [1] : vector<8x32xf32> to vector<8xf32>
    %95 = vector.shape_cast %94 : vector<8xf32> to vector<8x1xf32>
    %cst_36 = arith.constant 3.200000e+01 : f32
    %96 = vector.broadcast %cst_36 : f32 to vector<8x1xf32>
    %97 = arith.divf %95, %96 : vector<8x1xf32>
    %98 = vector.broadcast %97 : vector<8x1xf32> to vector<8x32xf32>
    %99 = arith.subf %93, %98 : vector<8x32xf32>
    %100 = arith.mulf %99, %99 : vector<8x32xf32>
    %cst_37 = arith.constant dense<0.000000e+00> : vector<8xf32>
    %101 = vector.multi_reduction <add>, %100, %cst_37 [1] : vector<8x32xf32> to vector<8xf32>
    %102 = vector.shape_cast %101 : vector<8xf32> to vector<8x1xf32>
    %cst_38 = arith.constant 3.200000e+01 : f32
    %103 = vector.broadcast %cst_38 : f32 to vector<8x1xf32>
    %104 = arith.divf %102, %103 : vector<8x1xf32>
    %105 = vector.broadcast %97 : vector<8x1xf32> to vector<8x32xf32>
    %106 = arith.subf %93, %105 : vector<8x32xf32>
    %cst_39 = arith.constant 9.99999974E-6 : f32
    %107 = vector.broadcast %cst_39 : f32 to vector<8x1xf32>
    %108 = arith.addf %104, %107 : vector<8x1xf32>
    %109 = math.rsqrt %108 : vector<8x1xf32>
    %110 = vector.broadcast %109 : vector<8x1xf32> to vector<8x32xf32>
    %111 = arith.mulf %106, %110 : vector<8x32xf32>
    %112 = vector.broadcast %8 : vector<1x32xf32> to vector<8x32xf32>
    %113 = arith.mulf %111, %112 : vector<8x32xf32>
    %114 = vector.broadcast %9 : vector<1x32xf32> to vector<8x32xf32>
    %115 = arith.addf %113, %114 : vector<8x32xf32>
    %c0_40 = arith.constant 0 : index
    %c0_41 = arith.constant 0 : index
    %c0_42 = arith.constant 0 : index
    %116 = vector.load %arg12[%c0_40, %c0_41, %c0_42] : memref<1x8x32xf32, #tpu.memory_space<vmem>>, vector<1x8x32xf32>
    %117 = vector.shape_cast %116 : vector<1x8x32xf32> to vector<8x32xf32>
    %118 = vector.shape_cast %115 : vector<8x32xf32> to vector<1x8x32xf32>
    tpu.vector_store %arg12[%c0_40, %c0_41, %c0_42], %118 {strides = array<i32>} : memref<1x8x32xf32, #tpu.memory_space<vmem>>, vector<1x8x32xf32>,
    return
  }
  func.func @transform_0(%arg0: i32, %arg1: i32) -> (i32, i32, i32) {
    %c0_i32 = arith.constant 0 : i32
    %c0_i32_0 = arith.constant 0 : i32
    return %arg0, %arg1, %c0_i32 : i32, i32, i32
  }
  func.func @transform_1(%arg0: i32, %arg1: i32) -> (i32, i32, i32) {
    %c0_i32 = arith.constant 0 : i32
    %c0_i32_0 = arith.constant 0 : i32
    %c0_i32_1 = arith.constant 0 : i32
    return %arg0, %c0_i32, %c0_i32_0 : i32, i32, i32
  }
  func.func @transform_2(%arg0: i32, %arg1: i32) -> (i32, i32) {
    %c0_i32 = arith.constant 0 : i32
    %c0_i32_0 = arith.constant 0 : i32
    %c0_i32_1 = arith.constant 0 : i32
    return %c0_i32, %c0_i32_0 : i32, i32
  }
  func.func @transform_3(%arg0: i32, %arg1: i32) -> (i32, i32) {
    %c0_i32 = arith.constant 0 : i32
    %c0_i32_0 = arith.constant 0 : i32
    %c0_i32_1 = arith.constant 0 : i32
    return %c0_i32, %c0_i32_0 : i32, i32
  }
  func.func @transform_4(%arg0: i32, %arg1: i32) -> (i32, i32) {
    %c0_i32 = arith.constant 0 : i32
    %c0_i32_0 = arith.constant 0 : i32
    %c0_i32_1 = arith.constant 0 : i32
    return %c0_i32, %c0_i32_0 : i32, i32
  }
  func.func @transform_5(%arg0: i32, %arg1: i32) -> (i32, i32) {
    %c0_i32 = arith.constant 0 : i32
    %c0_i32_0 = arith.constant 0 : i32
    %c0_i32_1 = arith.constant 0 : i32
    return %c0_i32, %c0_i32_0 : i32, i32
  }
  func.func @transform_6(%arg0: i32, %arg1: i32) -> (i32, i32) {
    %c0_i32 = arith.constant 0 : i32
    %c0_i32_0 = arith.constant 0 : i32
    %c0_i32_1 = arith.constant 0 : i32
    return %c0_i32, %c0_i32_0 : i32, i32
  }
  func.func @transform_7(%arg0: i32, %arg1: i32) -> (i32, i32) {
    %c0_i32 = arith.constant 0 : i32
    %c0_i32_0 = arith.constant 0 : i32
    %c0_i32_1 = arith.constant 0 : i32
    return %c0_i32, %c0_i32_0 : i32, i32
  }
  func.func @transform_8(%arg0: i32, %arg1: i32) -> (i32, i32) {
    %c0_i32 = arith.constant 0 : i32
    %c0_i32_0 = arith.constant 0 : i32
    %c0_i32_1 = arith.constant 0 : i32
    return %c0_i32, %c0_i32_0 : i32, i32
  }
  func.func @transform_9(%arg0: i32, %arg1: i32) -> (i32, i32) {
    %c0_i32 = arith.constant 0 : i32
    %c0_i32_0 = arith.constant 0 : i32
    %c0_i32_1 = arith.constant 0 : i32
    return %c0_i32, %c0_i32_0 : i32, i32
  }
  func.func @transform_10(%arg0: i32, %arg1: i32) -> (i32, i32, i32) {
    %c0_i32 = arith.constant 0 : i32
    %c0_i32_0 = arith.constant 0 : i32
    return %arg0, %arg1, %c0_i32 : i32, i32, i32
  }
}

</mosaic_0001>

<llo_original>
// kernel: tpu_custom_call.1
$region0: #{tpu_custom_call.1}
  #allocation0 [shape = 'u32[]', space=smem, size = 0x4, offset = 0x4, fixed_abs, tag = 'smem constant byte address 0x4 - core index']
  #allocation1 [shape = 'u32[144,128]{1,0:T(1,128)}', space=vmem, size = 0x12000, scoped, tag = 'internal scratch']
  #allocation2 [shape = 'bf16[8,32]{1,0:T(8,128)(2,1)}', space=vmem, size = 0x800, scoped, tag = 'scratch operand']
  #allocation3 [shape = 'bf16[8,32]{1,0:T(8,128)(2,1)}', space=vmem, size = 0x800, scoped, tag = 'scratch operand']
  %s0 = inlined_call_operand.hbm [shape: f32[2,8,32], index: 0, kind: input, shape index: {}]
  %s1 = inlined_call_operand.hbm [shape: bf16[2,8,32], index: 1, kind: input, shape index: {}]
  %s2 = inlined_call_operand.hbm [shape: bf16[32,32], index: 2, kind: input, shape index: {}]
  %s3 = inlined_call_operand.hbm [shape: bf16[32,32], index: 3, kind: input, shape index: {}]
  %s4 = inlined_call_operand.hbm [shape: bf16[32,32], index: 4, kind: input, shape index: {}]
  %s5 = inlined_call_operand.hbm [shape: bf16[32,32], index: 5, kind: input, shape index: {}]
  %s6 = inlined_call_operand.hbm [shape: bf16[32,64], index: 6, kind: input, shape index: {}]
  %s7 = inlined_call_operand.hbm [shape: bf16[64,32], index: 7, kind: input, shape index: {}]
  %s8 = inlined_call_operand.hbm [shape: f32[9,32], index: 8, kind: input, shape index: {}]
  %s9 = inlined_call_operand.hbm [shape: f32[1,64], index: 9, kind: input, shape index: {}]
  %s10 = inlined_call_operand.hbm [shape: f32[2,8,32], index: 10, kind: output, shape index: {}]
  %s11 = sld [smem:[#allocation0]]
  $region117: #{tpu_custom_call.1} parent=0
    _
  %s13 = ssub.s32 1, %s11
  %s14 = scalar_select 0, %s13, %s11
  $region1: #{tpu_custom_call.1} parent=0
    #allocation4 [shape = 'u8[8192]{0}', space=vmem, size = 0x2000, scoped, tag = 'input window, operand 0']
    #allocation5 [shape = 's32[2]{0}', space=sflag, size = 0x8, scoped, tag = 'scoped memory for tpu_custom_call.1']
    #allocation6 [shape = 's32[2]{0}', space=sflag, size = 0x8, scoped, tag = 'scoped memory for tpu_custom_call.1']
    #allocation7 [shape = 'u8[4096]{0}', space=vmem, size = 0x1000, scoped, tag = 'input window, operand 1']
    #allocation8 [shape = 's32[2]{0}', space=sflag, size = 0x8, scoped, tag = 'scoped memory for tpu_custom_call.1']
    #allocation9 [shape = 'u8[8192]{0}', space=vmem, size = 0x2000, scoped, tag = 'input window, operand 2, single buffered']
    #allocation10 [shape = 'u8[8192]{0}', space=vmem, size = 0x2000, scoped, tag = 'input window, operand 3, single buffered']
    #allocation11 [shape = 's32[1]{0}', space=sflag, size = 0x4, scoped, tag = 'scoped memory for tpu_custom_call.1']
    #allocation12 [shape = 'u8[8192]{0}', space=vmem, size = 0x2000, scoped, tag = 'input window, operand 4, single buffered']
    #allocation13 [shape = 'u8[8192]{0}', space=vmem, size = 0x2000, scoped, tag = 'input window, operand 5, single buffered']
    #allocation14 [shape = 's32[1]{0}', space=sflag, size = 0x4, scoped, tag = 'scoped memory for tpu_custom_call.1']
    #allocation15 [shape = 'u8[8192]{0}', space=vmem, size = 0x2000, scoped, tag = 'input window, operand 6, single buffered']
    #allocation16 [shape = 'u8[16384]{0}', space=vmem, size = 0x4000, scoped, tag = 'input window, operand 7, single buffered']
    #allocation17 [shape = 's32[1]{0}', space=sflag, size = 0x4, scoped, tag = 'scoped memory for tpu_custom_call.1']
    #allocation18 [shape = 'u8[8192]{0}', space=vmem, size = 0x2000, scoped, tag = 'input window, operand 8, single buffered']
    #allocation19 [shape = 'u8[512]{0}', space=vmem, size = 0x400, scoped, tag = 'input window, operand 9, single buffered']
    #allocation20 [shape = 's32[1]{0}', space=sflag, size = 0x4, scoped, tag = 'scoped memory for tpu_custom_call.1']
    #allocation21 [shape = 'u8[8192]{0}', space=vmem, size = 0x2000, scoped, tag = 'output window, operand 0']
    %15 = vsyncpa [#allocation5], 0
    %s16 = scalar_lea.sflag [#allocation5], 1
    %17 = vsyncpa %s16, 0
    %18 = vsyncpa [#allocation8], 0
    %s19 = scalar_lea.sflag [#allocation8], 1
    %20 = vsyncpa %s19, 0
    %21 = vsyncpa [#allocation11], 0
    %22 = vsyncpa [#allocation14], 0
    %23 = vsyncpa [#allocation17], 0
    %24 = vsyncpa [#allocation20], 0
    %25 = vsyncpa [#allocation6], 0
    %s26 = scalar_lea.sflag [#allocation6], 1
    %27 = vsyncpa %s26, 0
    loop: start=0, step=1, limit=4
    $region2: #{tpu_custom_call.1} parent=1 // loop_pre_header
      _
    $region3: #{tpu_custom_call.1} parent=1 // loop_header
      %s29 = sphi 0, %s33
      %p30 = scmp.ge.s32.totalorder %s29, 4
      %s36 = sphi 0, %s48
      %s37 = sphi 0, %s44
      %s38 = sphi 0, %s36
      %s39 = sphi 0, %s37
      %s40 = sphi 0, %s38
      %s41 = sphi 0, %s39
      %s53 = sphi 0, %s55
      %s56 = sphi 0, %s53
      %s57 = sphi 0, %s56
      %s73 = sphi 0, %s57
      %s79 = sphi 0, %s81
      %s82 = sphi 0, %s79
      %s83 = sphi 0, %s82
      %s99 = sphi 0, %s83
      %s103 = sphi 0, %s103
      %s105 = sphi 0, %s103
      %s106 = sphi 0, %s105
      %s120 = sphi 0, %s106
      %s124 = sphi 0, %s124
      %s126 = sphi 0, %s124
      %s127 = sphi 0, %s126
      %s141 = sphi 0, %s127
      %s145 = sphi 0, %s145
      %s147 = sphi 0, %s145
      %s148 = sphi 0, %s147
      %s162 = sphi 0, %s148
      %s166 = sphi 0, %s166
      %s168 = sphi 0, %s166
      %s169 = sphi 0, %s168
      %s183 = sphi 0, %s169
      %s187 = sphi 0, %s187
      %s189 = sphi 0, %s187
      %s190 = sphi 0, %s189
      %s204 = sphi 0, %s190
      %s208 = sphi 0, %s208
      %s210 = sphi 0, %s208
      %s211 = sphi 0, %s210
      %s225 = sphi 0, %s211
      %s229 = sphi 0, %s229
      %s231 = sphi 0, %s229
      %s232 = sphi 0, %s231
      %s246 = sphi 0, %s232
      %s250 = sphi 0, %s250
      %s252 = sphi 0, %s250
      %s253 = sphi 0, %s252
      %s267 = sphi 0, %s253
      %s275 = sphi 0, %s277
      %s278 = sphi 0, %s275
      %s279 = sphi 0, %s278
      %s295 = sphi 0, %s279
    $region4: #{tpu_custom_call.1} parent=1 // loop_header_branch
      %32 = sbr.rel (%p30) target = $region8
    $region5: #{tpu_custom_call.1} parent=1 // loop_body
      %s34 = ssub.s32 %s29, 1
      %s35 = ssub.s32 %s29, 2
      %s42 = sadd.s32 1, %s37
      %p43 = scmp.ge.s32.totalorder %s42, 1
      %s44 = scalar_select %p43, 0, %s42
      %s45 = sadd.s32 1, %s36
      %s46 = scalar_select %p43, %s45, %s36
      %p47 = scmp.ge.s32.totalorder %s46, 2
      %s48 = scalar_select %p47, 0, %s46
      %s49 = ssub.s32 %s36, %s48
      %s50 = ssub.s32 %s37, %s44
      %s51 = sor.u32 %s49, %s50
      %p52 = scmp.eq.s32.totalorder %s51, 0
      %s54 = sadd.s32 %s53, 1
      %s55 = scalar_select %p52, %s53, %s54
      %p58 = pneg %p52
      %p59 = scmp.eq.s32.totalorder %s29, 1
      %p60 = por %p58, %p59
      %p61 = scmp.ne.s32.totalorder %s53, %s56
      %p62 = scmp.eq.s32.totalorder %s29, 0
      %p63 = por %p61, %p62
      %p64 = scmp.ne.s32.totalorder %s53, %s56
      %p65 = scmp.eq.s32.totalorder %s34, 1
      %p66 = por %p64, %p65
      %p67 = scmp.ne.s32.totalorder %s56, %s57
      %p68 = scmp.eq.s32.totalorder %s34, 0
      %p69 = por %p67, %p68
      %p70 = scmp.ne.s32.totalorder %s56, %s57
      %p71 = scmp.eq.s32.totalorder %s35, 1
      %p72 = por %p70, %p71
      %p74 = scmp.ne.s32.totalorder %s57, %s73
      %p75 = scmp.eq.s32.totalorder %s35, 0
      %p76 = por %p74, %p75
      %s77 = ssub.s32 %s36, %s48
      %p78 = scmp.eq.s32.totalorder %s77, 0
      %s80 = sadd.s32 %s79, 1
      %s81 = scalar_select %p78, %s79, %s80
      %p84 = pneg %p78
      %p85 = scmp.eq.s32.totalorder %s29, 1
      %p86 = por %p84, %p85
      %p87 = scmp.ne.s32.totalorder %s79, %s82
      %p88 = scmp.eq.s32.totalorder %s29, 0
      %p89 = por %p87, %p88
      %p90 = scmp.ne.s32.totalorder %s79, %s82
      %p91 = scmp.eq.s32.totalorder %s34, 1
      %p92 = por %p90, %p91
      %p93 = scmp.ne.s32.totalorder %s82, %s83
      %p94 = scmp.eq.s32.totalorder %s34, 0
      %p95 = por %p93, %p94
      %p96 = scmp.ne.s32.totalorder %s82, %s83
      %p97 = scmp.eq.s32.totalorder %s35, 1
      %p98 = por %p96, %p97
      %p100 = scmp.ne.s32.totalorder %s83, %s99
      %p101 = scmp.eq.s32.totalorder %s35, 0
      %p102 = por %p100, %p101
      %s104 = sadd.s32 %s103, 1
      %p107 = scmp.eq.s32.totalorder %s29, 1
      %p108 = scmp.ne.s32.totalorder %s103, %s105
      %p109 = scmp.eq.s32.totalorder %s29, 0
      %p110 = por %p108, %p109
      %p111 = scmp.ne.s32.totalorder %s103, %s105
      %p112 = scmp.eq.s32.totalorder %s34, 1
      %p113 = por %p111, %p112
      %p114 = scmp.ne.s32.totalorder %s105, %s106
      %p115 = scmp.eq.s32.totalorder %s34, 0
      %p116 = por %p114, %p115
      %p117 = scmp.ne.s32.totalorder %s105, %s106
      %p118 = scmp.eq.s32.totalorder %s35, 1
      %p119 = por %p117, %p118
      %p121 = scmp.ne.s32.totalorder %s106, %s120
      %p122 = scmp.eq.s32.totalorder %s35, 0
      %p123 = por %p121, %p122
      %s125 = sadd.s32 %s124, 1
      %p128 = scmp.eq.s32.totalorder %s29, 1
      %p129 = scmp.ne.s32.totalorder %s124, %s126
      %p130 = scmp.eq.s32.totalorder %s29, 0
      %p131 = por %p129, %p130
      %p132 = scmp.ne.s32.totalorder %s124, %s126
      %p133 = scmp.eq.s32.totalorder %s34, 1
      %p134 = por %p132, %p133
      %p135 = scmp.ne.s32.totalorder %s126, %s127
      %p136 = scmp.eq.s32.totalorder %s34, 0
      %p137 = por %p135, %p136
      %p138 = scmp.ne.s32.totalorder %s126, %s127
      %p139 = scmp.eq.s32.totalorder %s35, 1
      %p140 = por %p138, %p139
      %p142 = scmp.ne.s32.totalorder %s127, %s141
      %p143 = scmp.eq.s32.totalorder %s35, 0
      %p144 = por %p142, %p143
      %s146 = sadd.s32 %s145, 1
      %p149 = scmp.eq.s32.totalorder %s29, 1
      %p150 = scmp.ne.s32.totalorder %s145, %s147
      %p151 = scmp.eq.s32.totalorder %s29, 0
      %p152 = por %p150, %p151
      %p153 = scmp.ne.s32.totalorder %s145, %s147
      %p154 = scmp.eq.s32.totalorder %s34, 1
      %p155 = por %p153, %p154
      %p156 = scmp.ne.s32.totalorder %s147, %s148
      %p157 = scmp.eq.s32.totalorder %s34, 0
      %p158 = por %p156, %p157
      %p159 = scmp.ne.s32.totalorder %s147, %s148
      %p160 = scmp.eq.s32.totalorder %s35, 1
      %p161 = por %p159, %p160
      %p163 = scmp.ne.s32.totalorder %s148, %s162
      %p164 = scmp.eq.s32.totalorder %s35, 0
      %p165 = por %p163, %p164
      %s167 = sadd.s32 %s166, 1
      %p170 = scmp.eq.s32.totalorder %s29, 1
      %p171 = scmp.ne.s32.totalorder %s166, %s168
      %p172 = scmp.eq.s32.totalorder %s29, 0
      %p173 = por %p171, %p172
      %p174 = scmp.ne.s32.totalorder %s166, %s168
      %p175 = scmp.eq.s32.totalorder %s34, 1
      %p176 = por %p174, %p175
      %p177 = scmp.ne.s32.totalorder %s168, %s169
      %p178 = scmp.eq.s32.totalorder %s34, 0
      %p179 = por %p177, %p178
      %p180 = scmp.ne.s32.totalorder %s168, %s169
      %p181 = scmp.eq.s32.totalorder %s35, 1
      %p182 = por %p180, %p181
      %p184 = scmp.ne.s32.totalorder %s169, %s183
      %p185 = scmp.eq.s32.totalorder %s35, 0
      %p186 = por %p184, %p185
      %s188 = sadd.s32 %s187, 1
      %p191 = scmp.eq.s32.totalorder %s29, 1
      %p192 = scmp.ne.s32.totalorder %s187, %s189
      %p193 = scmp.eq.s32.totalorder %s29, 0
      %p194 = por %p192, %p193
      %p195 = scmp.ne.s32.totalorder %s187, %s189
      %p196 = scmp.eq.s32.totalorder %s34, 1
      %p197 = por %p195, %p196
      %p198 = scmp.ne.s32.totalorder %s189, %s190
      %p199 = scmp.eq.s32.totalorder %s34, 0
      %p200 = por %p198, %p199
      %p201 = scmp.ne.s32.totalorder %s189, %s190
      %p202 = scmp.eq.s32.totalorder %s35, 1
      %p203 = por %p201, %p202
      %p205 = scmp.ne.s32.totalorder %s190, %s204
      %p206 = scmp.eq.s32.totalorder %s35, 0
      %p207 = por %p205, %p206
      %s209 = sadd.s32 %s208, 1
      %p212 = scmp.eq.s32.totalorder %s29, 1
      %p213 = scmp.ne.s32.totalorder %s208, %s210
      %p214 = scmp.eq.s32.totalorder %s29, 0
      %p215 = por %p213, %p214
      %p216 = scmp.ne.s32.totalorder %s208, %s210
      %p217 = scmp.eq.s32.totalorder %s34, 1
      %p218 = por %p216, %p217
      %p219 = scmp.ne.s32.totalorder %s210, %s211
      %p220 = scmp.eq.s32.totalorder %s34, 0
      %p221 = por %p219, %p220
      %p222 = scmp.ne.s32.totalorder %s210, %s211
      %p223 = scmp.eq.s32.totalorder %s35, 1
      %p224 = por %p222, %p223
      %p226 = scmp.ne.s32.totalorder %s211, %s225
      %p227 = scmp.eq.s32.totalorder %s35, 0
      %p228 = por %p226, %p227
      %s230 = sadd.s32 %s229, 1
      %p233 = scmp.eq.s32.totalorder %s29, 1
      %p234 = scmp.ne.s32.totalorder %s229, %s231
      %p235 = scmp.eq.s32.totalorder %s29, 0
      %p236 = por %p234, %p235
      %p237 = scmp.ne.s32.totalorder %s229, %s231
      %p238 = scmp.eq.s32.totalorder %s34, 1
      %p239 = por %p237, %p238
      %p240 = scmp.ne.s32.totalorder %s231, %s232
      %p241 = scmp.eq.s32.totalorder %s34, 0
      %p242 = por %p240, %p241
      %p243 = scmp.ne.s32.totalorder %s231, %s232
      %p244 = scmp.eq.s32.totalorder %s35, 1
      %p245 = por %p243, %p244
      %p247 = scmp.ne.s32.totalorder %s232, %s246
      %p248 = scmp.eq.s32.totalorder %s35, 0
      %p249 = por %p247, %p248
      %s251 = sadd.s32 %s250, 1
      %p254 = scmp.eq.s32.totalorder %s29, 1
      %p255 = scmp.ne.s32.totalorder %s250, %s252
      %p256 = scmp.eq.s32.totalorder %s29, 0
      %p257 = por %p255, %p256
      %p258 = scmp.ne.s32.totalorder %s250, %s252
      %p259 = scmp.eq.s32.totalorder %s34, 1
      %p260 = por %p258, %p259
      %p261 = scmp.ne.s32.totalorder %s252, %s253
      %p262 = scmp.eq.s32.totalorder %s34, 0
      %p263 = por %p261, %p262
      %p264 = scmp.ne.s32.totalorder %s252, %s253
      %p265 = scmp.eq.s32.totalorder %s35, 1
      %p266 = por %p264, %p265
      %p268 = scmp.ne.s32.totalorder %s253, %s267
      %p269 = scmp.eq.s32.totalorder %s35, 0
      %p270 = por %p268, %p269
      %s271 = ssub.s32 %s36, %s48
      %s272 = ssub.s32 %s37, %s44
      %s273 = sor.u32 %s271, %s272
      %p274 = scmp.eq.s32.totalorder %s273, 0
      %s276 = sadd.s32 %s275, 1
      %s277 = scalar_select %p274, %s275, %s276
      %p280 = pneg %p274
      %p281 = scmp.eq.s32.totalorder %s29, 1
      %p282 = por %p280, %p281
      %p283 = scmp.ne.s32.totalorder %s275, %s278
      %p284 = scmp.eq.s32.totalorder %s29, 0
      %p285 = por %p283, %p284
      %p286 = scmp.ne.s32.totalorder %s275, %s278
      %p287 = scmp.eq.s32.totalorder %s34, 1
      %p288 = por %p286, %p287
      %p289 = scmp.ne.s32.totalorder %s278, %s279
      %p290 = scmp.eq.s32.totalorder %s34, 0
      %p291 = por %p289, %p290
      %p292 = scmp.ne.s32.totalorder %s278, %s279
      %p293 = scmp.eq.s32.totalorder %s35, 1
      %p294 = por %p292, %p293
      %p296 = scmp.ne.s32.totalorder %s279, %s295
      %p297 = scmp.eq.s32.totalorder %s35, 0
      %p298 = por %p296, %p297
      %p299 = scmp.le.s32.totalorder 1, %s29
      %p300 = scmp.lt.s32.totalorder %s29, 3
      %p301 = pnand %p299, %p300
      %p302 = pneg %p301
      // Predicated region
      $region9: #{tpu_custom_call.1} parent=5 // pred_check
        _
      $region10: #{tpu_custom_call.1} parent=5 // pred_check_branch
        %304 = sbr.rel (%p301) target = $region12
      $region11: #{tpu_custom_call.1} parent=5 // pred_region
        %s305 = ssub.s32 %s29, 1
        // Predicated region
        $region13: #{tpu_custom_call.1} parent=11 // pred_check
          %p306 = pneg %p116
        $region14: #{tpu_custom_call.1} parent=11 // pred_check_branch
          %308 = sbr.rel (%p306) target = $region16
        $region15: #{tpu_custom_call.1} parent=11 // pred_region
          %s310 = ssub.s32 256, 256
          %311 = vsyncadd [#allocation8], %s310
          %s312 = sshll.u32 [#allocation9], 4
          %s313 = int_to_ptr.vmem [resolvable:$true] %s312
          %318 = dma.hbm_to_vmem [thread:$0]  %s2, 256, %s313, [#allocation8], 64, 64, 4
        $region16: #{tpu_custom_call.1} parent=11 // pred_fallthru
          _
        // Predicated region
        $region17: #{tpu_custom_call.1} parent=11 // pred_check
          %p319 = pneg %p137
        $region18: #{tpu_custom_call.1} parent=11 // pred_check_branch
          %321 = sbr.rel (%p319) target = $region20
        $region19: #{tpu_custom_call.1} parent=11 // pred_region
          %s323 = ssub.s32 256, 256
          %324 = vsyncadd [#allocation11], %s323
          %s325 = sshll.u32 [#allocation10], 4
          %s326 = int_to_ptr.vmem [resolvable:$true] %s325
          %331 = dma.hbm_to_vmem [thread:$0]  %s3, 256, %s326, [#allocation11], 64, 64, 4
        $region20: #{tpu_custom_call.1} parent=11 // pred_fallthru
          _
        // Predicated region
        $region21: #{tpu_custom_call.1} parent=11 // pred_check
          %p332 = pneg %p158
        $region22: #{tpu_custom_call.1} parent=11 // pred_check_branch
          %334 = sbr.rel (%p332) target = $region24
        $region23: #{tpu_custom_call.1} parent=11 // pred_region
          %s336 = ssub.s32 256, 256
          %337 = vsyncadd [#allocation11], %s336
          %s338 = sshll.u32 [#allocation12], 4
          %s339 = int_to_ptr.vmem [resolvable:$true] %s338
          %344 = dma.hbm_to_vmem [thread:$0]  %s4, 256, %s339, [#allocation11], 64, 64, 4
        $region24: #{tpu_custom_call.1} parent=11 // pred_fallthru
          _
        // Predicated region
        $region25: #{tpu_custom_call.1} parent=11 // pred_check
          %p345 = pneg %p179
        $region26: #{tpu_custom_call.1} parent=11 // pred_check_branch
          %347 = sbr.rel (%p345) target = $region28
        $region27: #{tpu_custom_call.1} parent=11 // pred_region
          %s349 = ssub.s32 256, 256
          %350 = vsyncadd [#allocation14], %s349
          %s351 = sshll.u32 [#allocation13], 4
          %s352 = int_to_ptr.vmem [resolvable:$true] %s351
          %357 = dma.hbm_to_vmem [thread:$0]  %s5, 256, %s352, [#allocation14], 64, 64, 4
        $region28: #{tpu_custom_call.1} parent=11 // pred_fallthru
          _
        // Predicated region
        $region29: #{tpu_custom_call.1} parent=11 // pred_check
          %p358 = pneg %p200
        $region30: #{tpu_custom_call.1} parent=11 // pred_check_branch
          %360 = sbr.rel (%p358) target = $region32
        $region31: #{tpu_custom_call.1} parent=11 // pred_region
          %s362 = ssub.s32 256, 256
          %363 = vsyncadd [#allocation14], %s362
          %s364 = sshll.u32 [#allocation15], 4
          %s365 = int_to_ptr.vmem [resolvable:$true] %s364
          %370 = dma.hbm_to_vmem [thread:$0]  %s6, 256, %s365, [#allocation14], 64, 64, 4
        $region32: #{tpu_custom_call.1} parent=11 // pred_fallthru
          _
        // Predicated region
        $region33: #{tpu_custom_call.1} parent=11 // pred_check
          %p371 = pneg %p221
        $region34: #{tpu_custom_call.1} parent=11 // pred_check_branch
          %373 = sbr.rel (%p371) target = $region36
        $region35: #{tpu_custom_call.1} parent=11 // pred_region
          %s375 = ssub.s32 512, 512
          %376 = vsyncadd [#allocation17], %s375
          %s377 = sshll.u32 [#allocation16], 4
          %s378 = int_to_ptr.vmem [resolvable:$true] %s377
          %383 = dma.hbm_to_vmem [thread:$0]  %s7, 512, %s378, [#allocation17], 64, 64, 4
        $region36: #{tpu_custom_call.1} parent=11 // pred_fallthru
          _
        // Predicated region
        $region37: #{tpu_custom_call.1} parent=11 // pred_check
          %p384 = pneg %p242
        $region38: #{tpu_custom_call.1} parent=11 // pred_check_branch
          %386 = sbr.rel (%p384) target = $region40
        $region39: #{tpu_custom_call.1} parent=11 // pred_region
          %s388 = ssub.s32 256, 256
          %389 = vsyncadd [#allocation17], %s388
          %s390 = sshll.u32 [#allocation18], 4
          %s391 = int_to_ptr.vmem [resolvable:$true] %s390
          %396 = dma.hbm_to_vmem [thread:$0]  %s8, 256, %s391, [#allocation17], 128, 128, 8
        $region40: #{tpu_custom_call.1} parent=11 // pred_fallthru
          _
        // Predicated region
        $region41: #{tpu_custom_call.1} parent=11 // pred_check
          %p397 = pneg %p263
        $region42: #{tpu_custom_call.1} parent=11 // pred_check_branch
          %399 = sbr.rel (%p397) target = $region44
        $region43: #{tpu_custom_call.1} parent=11 // pred_region
          %s401 = ssub.s32 16, 16
          %402 = vsyncadd [#allocation20], %s401
          %s404 = sshll.u32 [#allocation19], 4
          %s405 = int_to_ptr.vmem [resolvable:$true] %s404
          %407 = dma.hbm_to_vmem [thread:$0]  %s9, 16, %s405, [#allocation20]
        $region44: #{tpu_custom_call.1} parent=11 // pred_fallthru
          _
      $region12: #{tpu_custom_call.1} parent=5 // pred_fallthru
        _
      %p408 = scmp.lt.s32.totalorder %s29, 2
      // Predicated region
      $region45: #{tpu_custom_call.1} parent=5 // pred_check
        %p409 = pneg %p408
      $region46: #{tpu_custom_call.1} parent=5 // pred_check_branch
        %411 = sbr.rel (%p409) target = $region48
      $region47: #{tpu_custom_call.1} parent=5 // pred_region
        // Predicated region
        $region49: #{tpu_custom_call.1} parent=47 // pred_check
          %p412 = pneg %p63
        $region50: #{tpu_custom_call.1} parent=47 // pred_check_branch
          %414 = sbr.rel (%p412) target = $region52
        $region51: #{tpu_custom_call.1} parent=47 // pred_region
          %s415 = sand.u32 %s53, 1
          %s416 = scalar_lea.sflag [#allocation5], %s415
          %s417 = sand.u32 %s53, 1
          %s418 = smul.addr %s417, 8
          %s419 = scalar_lea.vmem [#allocation4], %s418
          %s421 = ssub.s32 128, 128
          %422 = vsyncadd %s416, %s421
          %s423 = sadd.s32 %s37, %s36
          %s424 = smul.addr %s423, 128
          %s425 = scalar_lea.hbm %s0, %s424
          %s427 = sshll.u32 %s419, 4
          %s428 = int_to_ptr.vmem [resolvable:$true] %s427
          %430 = dma.hbm_to_vmem [thread:$0]  %s425, 128, %s428, %s416
        $region52: #{tpu_custom_call.1} parent=47 // pred_fallthru
          _
        // Predicated region
        $region53: #{tpu_custom_call.1} parent=47 // pred_check
          %p431 = pneg %p89
        $region54: #{tpu_custom_call.1} parent=47 // pred_check_branch
          %433 = sbr.rel (%p431) target = $region56
        $region55: #{tpu_custom_call.1} parent=47 // pred_region
          %s434 = sand.u32 %s29, 1
          %s435 = scalar_lea.sflag [#allocation8], %s434
          %s436 = sand.u32 %s79, 1
          %s437 = smul.addr %s436, 4
          %s438 = scalar_lea.vmem [#allocation7], %s437
          %s440 = ssub.s32 64, 64
          %441 = vsyncadd %s435, %s440
          %s442 = smul.addr %s36, 64
          %s443 = scalar_lea.hbm %s1, %s442
          %s445 = sshll.u32 %s438, 4
          %s446 = int_to_ptr.vmem [resolvable:$true] %s445
          %448 = dma.hbm_to_vmem [thread:$0]  %s443, 64, %s446, %s435
        $region56: #{tpu_custom_call.1} parent=47 // pred_fallthru
          _
      $region48: #{tpu_custom_call.1} parent=5 // pred_fallthru
        _
      %p449 = scmp.le.s32.totalorder 1, %s29
      %p450 = scmp.lt.s32.totalorder %s29, 3
      %p451 = pnand %p449, %p450
      %p452 = pneg %p451
      // Predicated region
      $region57: #{tpu_custom_call.1} parent=5 // pred_check
        _
      $region58: #{tpu_custom_call.1} parent=5 // pred_check_branch
        %454 = sbr.rel (%p451) target = $region60
      $region59: #{tpu_custom_call.1} parent=5 // pred_region
        %s455 = ssub.s32 %s29, 1
        %s456 = sand.u32 %s56, 1
        %s457 = scalar_lea.sflag [#allocation5], %s456
        %s458 = sand.u32 %s56, 1
        %s459 = smul.addr %s458, 8
        %s460 = scalar_lea.vmem [#allocation4], %s459
        // Predicated region
        $region61: #{tpu_custom_call.1} parent=59 // pred_check
          %p461 = pneg %p69
        $region62: #{tpu_custom_call.1} parent=59 // pred_check_branch
          %463 = sbr.rel (%p461) target = $region64
        $region63: #{tpu_custom_call.1} parent=59 // pred_region
          %464 = dma.done %s457, 128
        $region64: #{tpu_custom_call.1} parent=59 // pred_fallthru
          _
        %s465 = sand.u32 %s34, 1
        %s466 = scalar_lea.sflag [#allocation8], %s465
        %s467 = sand.u32 %s82, 1
        %s468 = smul.addr %s467, 4
        %s469 = scalar_lea.vmem [#allocation7], %s468
        // Predicated region
        $region65: #{tpu_custom_call.1} parent=59 // pred_check
          %p470 = pneg %p95
        $region66: #{tpu_custom_call.1} parent=59 // pred_check_branch
          %472 = sbr.rel (%p470) target = $region68
        $region67: #{tpu_custom_call.1} parent=59 // pred_region
          %473 = dma.done %s466, 64
        $region68: #{tpu_custom_call.1} parent=59 // pred_fallthru
          _
        // Predicated region
        $region69: #{tpu_custom_call.1} parent=59 // pred_check
          %p474 = pneg %p116
        $region70: #{tpu_custom_call.1} parent=59 // pred_check_branch
          %476 = sbr.rel (%p474) target = $region72
        $region71: #{tpu_custom_call.1} parent=59 // pred_region
          %477 = dma.done [#allocation8], 256
        $region72: #{tpu_custom_call.1} parent=59 // pred_fallthru
          _
        // Predicated region
        $region73: #{tpu_custom_call.1} parent=59 // pred_check
          %p478 = pneg %p137
        $region74: #{tpu_custom_call.1} parent=59 // pred_check_branch
          %480 = sbr.rel (%p478) target = $region76
        $region75: #{tpu_custom_call.1} parent=59 // pred_region
          %481 = dma.done [#allocation11], 256
        $region76: #{tpu_custom_call.1} parent=59 // pred_fallthru
          _
        // Predicated region
        $region77: #{tpu_custom_call.1} parent=59 // pred_check
          %p482 = pneg %p158
        $region78: #{tpu_custom_call.1} parent=59 // pred_check_branch
          %484 = sbr.rel (%p482) target = $region80
        $region79: #{tpu_custom_call.1} parent=59 // pred_region
          %485 = dma.done [#allocation11], 256
        $region80: #{tpu_custom_call.1} parent=59 // pred_fallthru
          _
        // Predicated region
        $region81: #{tpu_custom_call.1} parent=59 // pred_check
          %p486 = pneg %p179
        $region82: #{tpu_custom_call.1} parent=59 // pred_check_branch
          %488 = sbr.rel (%p486) target = $region84
        $region83: #{tpu_custom_call.1} parent=59 // pred_region
          %489 = dma.done [#allocation14], 256
        $region84: #{tpu_custom_call.1} parent=59 // pred_fallthru
          _
        // Predicated region
        $region85: #{tpu_custom_call.1} parent=59 // pred_check
          %p490 = pneg %p200
        $region86: #{tpu_custom_call.1} parent=59 // pred_check_branch
          %492 = sbr.rel (%p490) target = $region88
        $region87: #{tpu_custom_call.1} parent=59 // pred_region
          %493 = dma.done [#allocation14], 256
        $region88: #{tpu_custom_call.1} parent=59 // pred_fallthru
          _
        // Predicated region
        $region89: #{tpu_custom_call.1} parent=59 // pred_check
          %p494 = pneg %p221
        $region90: #{tpu_custom_call.1} parent=59 // pred_check_branch
          %496 = sbr.rel (%p494) target = $region92
        $region91: #{tpu_custom_call.1} parent=59 // pred_region
          %497 = dma.done [#allocation17], 512
        $region92: #{tpu_custom_call.1} parent=59 // pred_fallthru
          _
        // Predicated region
        $region93: #{tpu_custom_call.1} parent=59 // pred_check
          %p498 = pneg %p242
        $region94: #{tpu_custom_call.1} parent=59 // pred_check_branch
          %500 = sbr.rel (%p498) target = $region96
        $region95: #{tpu_custom_call.1} parent=59 // pred_region
          %501 = dma.done [#allocation17], 256
        $region96: #{tpu_custom_call.1} parent=59 // pred_fallthru
          _
        // Predicated region
        $region97: #{tpu_custom_call.1} parent=59 // pred_check
          %p502 = pneg %p263
        $region98: #{tpu_custom_call.1} parent=59 // pred_check_branch
          %504 = sbr.rel (%p502) target = $region100
        $region99: #{tpu_custom_call.1} parent=59 // pred_region
          %505 = dma.done [#allocation20], 16
        $region100: #{tpu_custom_call.1} parent=59 // pred_fallthru
          _
        %s506 = sand.u32 %s56, 1
        %s507 = scalar_lea.sflag [#allocation5], %s506
        %s508 = sand.u32 %s56, 1
        %s509 = smul.addr %s508, 8
        %s510 = scalar_lea.vmem [#allocation4], %s509
        %p511 = pneg %p69
        %p512 = pneg %p66
        %s513 = sand.u32 %s34, 1
        %s514 = scalar_lea.sflag [#allocation8], %s513
        %s515 = sand.u32 %s82, 1
        %s516 = smul.addr %s515, 4
        %s517 = scalar_lea.vmem [#allocation7], %s516
        %p518 = pneg %p95
        %p519 = pneg %p92
        %p520 = pneg %p116
        %p521 = pneg %p113
        %p522 = pneg %p137
        %p523 = pneg %p134
        %p524 = pneg %p158
        %p525 = pneg %p155
        %p526 = pneg %p179
        %p527 = pneg %p176
        %p528 = pneg %p200
        %p529 = pneg %p197
        %p530 = pneg %p221
        %p531 = pneg %p218
        %p532 = pneg %p242
        %p533 = pneg %p239
        %p534 = pneg %p263
        %p535 = pneg %p260
        %p536 = pneg %p291
        %p537 = pneg %p288
        %s538 = sand.u32 %s278, 1
        %s539 = scalar_lea.sflag [#allocation6], %s538
        %s540 = sand.u32 %s278, 1
        %s541 = smul.addr %s540, 8
        %s542 = scalar_lea.vmem [#allocation21], %s541
        %v544 = vld [vmem:[#allocation18] sm:$0xff]
        %v545 = vld [vmem:[#allocation18 + $0x8] sm:$0x1]
        %p546 = scmp.eq.s32.totalorder %s39, 0
        // Predicated region
        $region101: #{tpu_custom_call.1} parent=59 // pred_check
          %p547 = pneg %p546
        $region102: #{tpu_custom_call.1} parent=59 // pred_check_branch
          %549 = sbr.rel (%p547) target = $region104
        $region103: #{tpu_custom_call.1} parent=59 // pred_region
          %v550 = vld [vmem:[%s469] sm:$0xf]
          %v551 = vld [vmem:[#allocation10] sm:$0xf]
          %v552 = vld [vmem:[#allocation10 + $0x4] sm:$0xf]
          %v553 = vld [vmem:[#allocation10 + $0x8] sm:$0xf]
          %v554 = vld [vmem:[#allocation10 + $0xc] sm:$0xf]
          %v555 = vlaneseq
          %v556 = vshrl.u32 %v555, 7
          %v557 = vsub.s32 1, %v556
          %v558 = vrot.slane %v544, %v557
          %v563 = vunpack.c.l.b16 %v551
          %v564 = vunpack.c.l.b16 %v552
          %v565 = vunpack.c.l.b16 %v553
          %v566 = vunpack.c.l.b16 %v554
          %v567 = vpack.c.b16 %v564, %v563
          %v568 = vpack.c.b16 %v566, %v565
          %vm571 = vcmask 261120
          %v573 = vsel %vm571, %v550, 0
          %575 = vmatprep.subr.bf16.mxu0 0
          %576 = vmatpush1.bf16.msra.mxu0 %v567
          %577 = vmatprep.subr.bf16.mxu0 0
          %578 = vmatpush1.bf16.msra.mxu0 %v568
          %579 = vmatprep.subr.bf16.mxu0 0
          %580 = vmatpush1.bf16.msra.mxu0 0
          %581 = vmatprep.subr.bf16.mxu0 0
          %582 = vmatpush1.bf16.msra.mxu0 0
          %583 = vmatprep.subr.bf16.mxu0 0
          %584 = vmatpush1.bf16.msra.mxu0 0
          %585 = vmatprep.subr.bf16.mxu0 0
          %586 = vmatpush1.bf16.msra.mxu0 0
          %587 = vmatprep.subr.bf16.mxu0 0
          %588 = vmatpush1.bf16.msra.mxu0 0
          %589 = vmatprep.subr.bf16.mxu0 0
          %590 = vmatpush1.bf16.msra.mxu0 0
          %591 = vmatprep.subr.bf16.mxu0 0
          %592 = vmatpush1.bf16.msra.mxu0 0
          %593 = vmatprep.subr.bf16.mxu0 0
          %594 = vmatpush1.bf16.msra.mxu0 0
          %595 = vmatprep.subr.bf16.mxu0 0
          %596 = vmatpush1.bf16.msra.mxu0 0
          %597 = vmatprep.subr.bf16.mxu0 0
          %598 = vmatpush1.bf16.msra.mxu0 0
          %599 = vmatprep.subr.bf16.mxu0 0
          %600 = vmatpush1.bf16.msra.mxu0 0
          %601 = vmatprep.subr.bf16.mxu0 0
          %602 = vmatpush1.bf16.msra.mxu0 0
          %603 = vmatprep.subr.bf16.mxu0 0
          %604 = vmatpush1.bf16.msra.mxu0 0
          %605 = vmatprep.subr.bf16.mxu0 0
          %606 = vmatpush1.bf16.msra.mxu0 0
          %607 = vmatprep.mubr.bf16.mxu0 0
          %608 = vmatmul.mubr.bf16.gmra.mrb[0].mxu0 %v573
          %v609 = vpop.f32.mrb[0].mxu0
          %v610 = vadd.f32 %v558, %v609
          %v611 = vpop.f32.mrb[0].mxu0
          %v612 = vpop.f32.mrb[0].mxu0
          %v613 = vpop.f32.mrb[0].mxu0
          %614 = vdwg.mxu0
          %v615 = vld [vmem:[#allocation12] sm:$0xf]
          %v616 = vld [vmem:[#allocation12 + $0x4] sm:$0xf]
          %v617 = vld [vmem:[#allocation12 + $0x8] sm:$0xf]
          %v618 = vld [vmem:[#allocation12 + $0xc] sm:$0xf]
          %v619 = vlaneseq
          %v620 = vshrl.u32 %v619, 7
          %v621 = vsub.s32 2, %v620
          %v622 = vrot.slane %v544, %v621
          %v627 = vunpack.c.l.b16 %v615
          %v628 = vunpack.c.l.b16 %v616
          %v629 = vunpack.c.l.b16 %v617
          %v630 = vunpack.c.l.b16 %v618
          %v631 = vpack.c.b16 %v628, %v627
          %v632 = vpack.c.b16 %v630, %v629
          %635 = vmatprep.subr.bf16.mxu0 0
          %636 = vmatpush1.bf16.msra.mxu0 %v631
          %637 = vmatprep.subr.bf16.mxu0 0
          %638 = vmatpush1.bf16.msra.mxu0 %v632
          %639 = vmatprep.subr.bf16.mxu0 0
          %640 = vmatpush1.bf16.msra.mxu0 0
          %641 = vmatprep.subr.bf16.mxu0 0
          %642 = vmatpush1.bf16.msra.mxu0 0
          %643 = vmatprep.subr.bf16.mxu0 0
          %644 = vmatpush1.bf16.msra.mxu0 0
          %645 = vmatprep.subr.bf16.mxu0 0
          %646 = vmatpush1.bf16.msra.mxu0 0
          %647 = vmatprep.subr.bf16.mxu0 0
          %648 = vmatpush1.bf16.msra.mxu0 0
          %649 = vmatprep.subr.bf16.mxu0 0
          %650 = vmatpush1.bf16.msra.mxu0 0
          %651 = vmatprep.subr.bf16.mxu0 0
          %652 = vmatpush1.bf16.msra.mxu0 0
          %653 = vmatprep.subr.bf16.mxu0 0
          %654 = vmatpush1.bf16.msra.mxu0 0
          %655 = vmatprep.subr.bf16.mxu0 0
          %656 = vmatpush1.bf16.msra.mxu0 0
          %657 = vmatprep.subr.bf16.mxu0 0
          %658 = vmatpush1.bf16.msra.mxu0 0
          %659 = vmatprep.subr.bf16.mxu0 0
          %660 = vmatpush1.bf16.msra.mxu0 0
          %661 = vmatprep.subr.bf16.mxu0 0
          %662 = vmatpush1.bf16.msra.mxu0 0
          %663 = vmatprep.subr.bf16.mxu0 0
          %664 = vmatpush1.bf16.msra.mxu0 0
          %665 = vmatprep.subr.bf16.mxu0 0
          %666 = vmatpush1.bf16.msra.mxu0 0
          %667 = vmatprep.mubr.bf16.mxu0 0
          %668 = vmatmul.mubr.bf16.gmra.mrb[0].mxu0 %v573
          %v669 = vpop.f32.mrb[0].mxu0
          %v670 = vadd.f32 %v622, %v669
          %v671 = vpop.f32.mrb[0].mxu0
          %v672 = vpop.f32.mrb[0].mxu0
          %v673 = vpop.f32.mrb[0].mxu0
          %674 = vdwg.mxu0
          %v675 = vpack.c.bf16 %v610, %v610
          %vm676 = vcmask 257024
          %677 = vst.msk [vmem:[#allocation2] sm:$0xf] %vm676, %v675
          %v678 = vpack.c.bf16 %v670, %v670
          %679 = vst.msk [vmem:[#allocation3] sm:$0xf] %vm676, %v678
        $region104: #{tpu_custom_call.1} parent=59 // pred_fallthru
          _
        %v680 = vld [vmem:[%s460] sm:$0xff]
        %v681 = vpack.c.bf16 %v680, %v680
        %v682 = vld [vmem:[#allocation9] sm:$0xf]
        %v683 = vld [vmem:[#allocation9 + $0x4] sm:$0xf]
        %v684 = vld [vmem:[#allocation9 + $0x8] sm:$0xf]
        %v685 = vld [vmem:[#allocation9 + $0xc] sm:$0xf]
        %v686 = vlaneseq
        %v687 = vshrl.u32 %v686, 7
        %v688 = vsub.s32 0, %v687
        %v689 = vrot.slane %v544, %v688
        %v694 = vunpack.c.l.b16 %v682
        %v695 = vunpack.c.l.b16 %v683
        %v696 = vunpack.c.l.b16 %v684
        %v697 = vunpack.c.l.b16 %v685
        %v698 = vpack.c.b16 %v695, %v694
        %v699 = vpack.c.b16 %v697, %v696
        %vm702 = vcmask 261120
        %v704 = vsel %vm702, %v681, 0
        %706 = vmatprep.subr.bf16.mxu0 0
        %707 = vmatpush1.bf16.msra.mxu0 %v698
        %708 = vmatprep.subr.bf16.mxu0 0
        %709 = vmatpush1.bf16.msra.mxu0 %v699
        %710 = vmatprep.subr.bf16.mxu0 0
        %711 = vmatpush1.bf16.msra.mxu0 0
        %712 = vmatprep.subr.bf16.mxu0 0
        %713 = vmatpush1.bf16.msra.mxu0 0
        %714 = vmatprep.subr.bf16.mxu0 0
        %715 = vmatpush1.bf16.msra.mxu0 0
        %716 = vmatprep.subr.bf16.mxu0 0
        %717 = vmatpush1.bf16.msra.mxu0 0
        %718 = vmatprep.subr.bf16.mxu0 0
        %719 = vmatpush1.bf16.msra.mxu0 0
        %720 = vmatprep.subr.bf16.mxu0 0
        %721 = vmatpush1.bf16.msra.mxu0 0
        %722 = vmatprep.subr.bf16.mxu0 0
        %723 = vmatpush1.bf16.msra.mxu0 0
        %724 = vmatprep.subr.bf16.mxu0 0
        %725 = vmatpush1.bf16.msra.mxu0 0
        %726 = vmatprep.subr.bf16.mxu0 0
        %727 = vmatpush1.bf16.msra.mxu0 0
        %728 = vmatprep.subr.bf16.mxu0 0
        %729 = vmatpush1.bf16.msra.mxu0 0
        %730 = vmatprep.subr.bf16.mxu0 0
        %731 = vmatpush1.bf16.msra.mxu0 0
        %732 = vmatprep.subr.bf16.mxu0 0
        %733 = vmatpush1.bf16.msra.mxu0 0
        %734 = vmatprep.subr.bf16.mxu0 0
        %735 = vmatpush1.bf16.msra.mxu0 0
        %736 = vmatprep.subr.bf16.mxu0 0
        %737 = vmatpush1.bf16.msra.mxu0 0
        %738 = vmatprep.mubr.bf16.mxu0 0
        %739 = vmatmul.mubr.bf16.gmra.mrb[0].mxu0 %v704
        %v740 = vpop.f32.mrb[0].mxu0
        %v741 = vadd.f32 %v689, %v740
        %v742 = vpop.f32.mrb[0].mxu0
        %v743 = vpop.f32.mrb[0].mxu0
        %v744 = vpop.f32.mrb[0].mxu0
        %745 = vdwg.mxu0
        %v746 = vmul.f32 %v741, 0.35355338
        %748 = vrot.lane.b32.xlu0 %v746, 120
        %v749 = vpop.permute.xlu0 %748
        %751 = vrot.lane.b32.xlu0 %v746, 112
        %v752 = vpop.permute.xlu0 %751
        %754 = vrot.lane.b32.xlu0 %v746, 104
        %v755 = vpop.permute.xlu0 %754
        %v757 = vcombine.low %v746, %v752
        %v758 = vcombine.high %v746, %v752
        %v760 = vunpack.c.l.s4 1983009808
        %v761 = vunpack.c.0.s8 %v760
        %v762 = vlaneseq
        %v763 = vshrl.u32 %v762, 7
        %v764 = vsub.s32 %v761, %v763
        %v765 = vrot.slane %v757, %v764
        %v767 = vunpack.c.l.s4 1983009808
        %v768 = vunpack.c.0.s8 %v767
        %v769 = vlaneseq
        %v770 = vshrl.u32 %v769, 7
        %v771 = vsub.s32 %v768, %v770
        %v772 = vrot.slane %v758, %v771
        %v773 = vcombine.low %v749, %v755
        %v774 = vcombine.high %v749, %v755
        %v776 = vunpack.c.l.s4 1983009808
        %v777 = vunpack.c.0.s8 %v776
        %v778 = vlaneseq
        %v779 = vshrl.u32 %v778, 7
        %v780 = vsub.s32 %v777, %v779
        %v781 = vrot.slane %v773, %v780
        %v783 = vunpack.c.l.s4 1983009808
        %v784 = vunpack.c.0.s8 %v783
        %v785 = vlaneseq
        %v786 = vshrl.u32 %v785, 7
        %v787 = vsub.s32 %v784, %v786
        %v788 = vrot.slane %v774, %v787
        %v789 = vcombine.low %v765, %v781
        %v790 = vcombine.high %v765, %v781
        %v792 = vunpack.c.l.s4 1934713408
        %v793 = vunpack.c.0.s8 %v792
        %v794 = vlaneseq
        %v795 = vshrl.u32 %v794, 7
        %v796 = vsub.s32 %v793, %v795
        %v797 = vrot.slane %v789, %v796
        %v799 = vunpack.c.l.s4 1934713408
        %v800 = vunpack.c.0.s8 %v799
        %v801 = vlaneseq
        %v802 = vshrl.u32 %v801, 7
        %v803 = vsub.s32 %v800, %v802
        %v804 = vrot.slane %v790, %v803
        %v805 = vcombine.low %v772, %v788
        %v806 = vcombine.high %v772, %v788
        %v808 = vunpack.c.l.s4 1934713408
        %v809 = vunpack.c.0.s8 %v808
        %v810 = vlaneseq
        %v811 = vshrl.u32 %v810, 7
        %v812 = vsub.s32 %v809, %v811
        %v813 = vrot.slane %v805, %v812
        %v815 = vunpack.c.l.s4 1934713408
        %v816 = vunpack.c.0.s8 %v815
        %v817 = vlaneseq
        %v818 = vshrl.u32 %v817, 7
        %v819 = vsub.s32 %v816, %v818
        %v820 = vrot.slane %v806, %v819
        %v821 = vcombine.high %v797, 0.0
        %v822 = vcombine.high %v804, 0.0
        %v823 = vcombine.high %v813, 0.0
        %v824 = vcombine.high %v820, 0.0
        %v825 = vcombine.low %v797, %v804
        %v827 = vunpack.c.l.s4 1983009808
        %v828 = vunpack.c.0.s8 %v827
        %v829 = vlaneseq
        %v830 = vshrl.u32 %v829, 7
        %v831 = vsub.s32 %v828, %v830
        %v832 = vrot.slane %v825, %v831
        %v833 = vcombine.low %v821, %v822
        %v835 = vunpack.c.l.s4 1983009808
        %v836 = vunpack.c.0.s8 %v835
        %v837 = vlaneseq
        %v838 = vshrl.u32 %v837, 7
        %v839 = vsub.s32 %v836, %v838
        %v840 = vrot.slane %v833, %v839
        %v841 = vcombine.low %v813, %v820
        %v843 = vunpack.c.l.s4 1983009808
        %v844 = vunpack.c.0.s8 %v843
        %v845 = vlaneseq
        %v846 = vshrl.u32 %v845, 7
        %v847 = vsub.s32 %v844, %v846
        %v848 = vrot.slane %v841, %v847
        %v849 = vcombine.low %v823, %v824
        %v851 = vunpack.c.l.s4 1983009808
        %v852 = vunpack.c.0.s8 %v851
        %v853 = vlaneseq
        %v854 = vshrl.u32 %v853, 7
        %v855 = vsub.s32 %v852, %v854
        %v856 = vrot.slane %v849, %v855
        %v857 = vcombine.low %v832, %v840
        %v858 = vcombine.high %v832, %v840
        %v860 = vunpack.c.l.s4 1934713408
        %v861 = vunpack.c.0.s8 %v860
        %v862 = vlaneseq
        %v863 = vshrl.u32 %v862, 7
        %v864 = vsub.s32 %v861, %v863
        %v865 = vrot.slane %v857, %v864
        %v867 = vunpack.c.l.s4 1934713408
        %v868 = vunpack.c.0.s8 %v867
        %v869 = vlaneseq
        %v870 = vshrl.u32 %v869, 7
        %v871 = vsub.s32 %v868, %v870
        %v872 = vrot.slane %v858, %v871
        %v873 = vcombine.low %v848, %v856
        %v874 = vcombine.high %v848, %v856
        %v876 = vunpack.c.l.s4 1934713408
        %v877 = vunpack.c.0.s8 %v876
        %v878 = vlaneseq
        %v879 = vshrl.u32 %v878, 7
        %v880 = vsub.s32 %v877, %v879
        %v881 = vrot.slane %v873, %v880
        %v883 = vunpack.c.l.s4 1934713408
        %v884 = vunpack.c.0.s8 %v883
        %v885 = vlaneseq
        %v886 = vshrl.u32 %v885, 7
        %v887 = vsub.s32 %v884, %v886
        %v888 = vrot.slane %v874, %v887
        %v889 = vcombine.low %v865, %v881
        %v890 = vcombine.high %v865, %v881
        %v891 = vcombine.low %v872, %v888
        %v892 = vcombine.high %v872, %v888
        %v893 = vpack.c.bf16 %v889, %v889
        %v894 = vpack.c.bf16 %v890, %v890
        %v895 = vpack.c.bf16 %v891, %v891
        %v896 = vpack.c.bf16 %v892, %v892
        %v897 = vld [vmem:[#allocation2] sm:$0xf]
        %899 = vrot.lane.b32.xlu0 %v897, 120
        %v900 = vpop.permute.xlu0 %899
        %901 = vrot.lane.b32.xlu0 %v897, 112
        %v902 = vpop.permute.xlu0 %901
        %903 = vrot.lane.b32.xlu0 %v897, 104
        %v904 = vpop.permute.xlu0 %903
        %v907 = vpack.i.b16 %v900, %v897
        %v908 = vshrl.u32 %v897, 16
        %v909 = vshrl.u32 %v900, 16
        %v910 = vpack.i.b16 %v909, %v908
        %v913 = vpack.i.b16 %v904, %v902
        %v914 = vshrl.u32 %v902, 16
        %v915 = vshrl.u32 %v904, 16
        %v916 = vpack.i.b16 %v915, %v914
        %v919 = vunpack.c.l.s4 1983009808
        %v920 = vunpack.c.0.s8 %v919
        %v921 = vlaneseq
        %v922 = vshrl.u32 %v921, 7
        %v923 = vsub.s32 %v920, %v922
        %v924 = vrot.slane %v907, %v923
        %v927 = vunpack.c.l.s4 1983009808
        %v928 = vunpack.c.0.s8 %v927
        %v929 = vlaneseq
        %v930 = vshrl.u32 %v929, 7
        %v931 = vsub.s32 %v928, %v930
        %v932 = vrot.slane %v913, %v931
        %v933 = vcombine.low %v924, %v932
        %v934 = vcombine.high %v924, %v932
        %v936 = vunpack.c.l.s4 1934713408
        %v937 = vunpack.c.0.s8 %v936
        %v938 = vlaneseq
        %v939 = vshrl.u32 %v938, 7
        %v940 = vsub.s32 %v937, %v939
        %v941 = vrot.slane %v933, %v940
        %v943 = vunpack.c.l.s4 1934713408
        %v944 = vunpack.c.0.s8 %v943
        %v945 = vlaneseq
        %v946 = vshrl.u32 %v945, 7
        %v947 = vsub.s32 %v944, %v946
        %v948 = vrot.slane %v934, %v947
        %v949 = vcombine.high %v941, 0
        %v950 = vcombine.high %v948, 0
        %v953 = vunpack.c.l.s4 1983009808
        %v954 = vunpack.c.0.s8 %v953
        %v955 = vlaneseq
        %v956 = vshrl.u32 %v955, 7
        %v957 = vsub.s32 %v954, %v956
        %v958 = vrot.slane %v910, %v957
        %v961 = vunpack.c.l.s4 1983009808
        %v962 = vunpack.c.0.s8 %v961
        %v963 = vlaneseq
        %v964 = vshrl.u32 %v963, 7
        %v965 = vsub.s32 %v962, %v964
        %v966 = vrot.slane %v916, %v965
        %v967 = vcombine.low %v958, %v966
        %v968 = vcombine.high %v958, %v966
        %v970 = vunpack.c.l.s4 1934713408
        %v971 = vunpack.c.0.s8 %v970
        %v972 = vlaneseq
        %v973 = vshrl.u32 %v972, 7
        %v974 = vsub.s32 %v971, %v973
        %v975 = vrot.slane %v967, %v974
        %v977 = vunpack.c.l.s4 1934713408
        %v978 = vunpack.c.0.s8 %v977
        %v979 = vlaneseq
        %v980 = vshrl.u32 %v979, 7
        %v981 = vsub.s32 %v978, %v980
        %v982 = vrot.slane %v968, %v981
        %v983 = vcombine.high %v975, 0
        %v984 = vcombine.high %v982, 0
        %v985 = vcombine.low %v941, %v948
        %v987 = vunpack.c.l.s4 1983009808
        %v988 = vunpack.c.0.s8 %v987
        %v989 = vlaneseq
        %v990 = vshrl.u32 %v989, 7
        %v991 = vsub.s32 %v988, %v990
        %v992 = vrot.slane %v985, %v991
        %v993 = vcombine.low %v949, %v950
        %v995 = vunpack.c.l.s4 1983009808
        %v996 = vunpack.c.0.s8 %v995
        %v997 = vlaneseq
        %v998 = vshrl.u32 %v997, 7
        %v999 = vsub.s32 %v996, %v998
        %v1000 = vrot.slane %v993, %v999
        %v1001 = vcombine.low %v992, %v1000
        %v1003 = vunpack.c.l.s4 1934713408
        %v1004 = vunpack.c.0.s8 %v1003
        %v1005 = vlaneseq
        %v1006 = vshrl.u32 %v1005, 7
        %v1007 = vsub.s32 %v1004, %v1006
        %v1008 = vrot.slane %v1001, %v1007
        %v1009 = vcombine.high %v1008, 0
        %v1010 = vcombine.low %v975, %v982
        %v1012 = vunpack.c.l.s4 1983009808
        %v1013 = vunpack.c.0.s8 %v1012
        %v1014 = vlaneseq
        %v1015 = vshrl.u32 %v1014, 7
        %v1016 = vsub.s32 %v1013, %v1015
        %v1017 = vrot.slane %v1010, %v1016
        %v1018 = vcombine.low %v983, %v984
        %v1020 = vunpack.c.l.s4 1983009808
        %v1021 = vunpack.c.0.s8 %v1020
        %v1022 = vlaneseq
        %v1023 = vshrl.u32 %v1022, 7
        %v1024 = vsub.s32 %v1021, %v1023
        %v1025 = vrot.slane %v1018, %v1024
        %v1026 = vcombine.low %v1017, %v1025
        %v1028 = vunpack.c.l.s4 1934713408
        %v1029 = vunpack.c.0.s8 %v1028
        %v1030 = vlaneseq
        %v1031 = vshrl.u32 %v1030, 7
        %v1032 = vsub.s32 %v1029, %v1031
        %v1033 = vrot.slane %v1026, %v1032
        %v1034 = vcombine.high %v1033, 0
        %v1037 = vpack.i.b16 %v1033, %v1008
        %v1038 = vshrl.u32 %v1008, 16
        %v1039 = vshrl.u32 %v1033, 16
        %v1040 = vpack.i.b16 %v1039, %v1038
        %v1043 = vpack.i.b16 %v1034, %v1009
        %v1044 = vshrl.u32 %v1009, 16
        %v1045 = vshrl.u32 %v1034, 16
        %v1046 = vpack.i.b16 %v1045, %v1044
        %v1047 = vld [vmem:[#allocation3] sm:$0xf]
        %1049 = vrot.lane.b32.xlu0 %v1047, 120
        %v1050 = vpop.permute.xlu0 %1049
        %1051 = vrot.lane.b32.xlu0 %v1047, 112
        %v1052 = vpop.permute.xlu0 %1051
        %1053 = vrot.lane.b32.xlu0 %v1047, 104
        %v1054 = vpop.permute.xlu0 %1053
        %v1057 = vpack.i.b16 %v1050, %v1047
        %v1058 = vshrl.u32 %v1047, 16
        %v1059 = vshrl.u32 %v1050, 16
        %v1060 = vpack.i.b16 %v1059, %v1058
        %v1063 = vpack.i.b16 %v1054, %v1052
        %v1064 = vshrl.u32 %v1052, 16
        %v1065 = vshrl.u32 %v1054, 16
        %v1066 = vpack.i.b16 %v1065, %v1064
        %v1069 = vunpack.c.l.s4 1983009808
        %v1070 = vunpack.c.0.s8 %v1069
        %v1071 = vlaneseq
        %v1072 = vshrl.u32 %v1071, 7
        %v1073 = vsub.s32 %v1070, %v1072
        %v1074 = vrot.slane %v1057, %v1073
        %v1077 = vunpack.c.l.s4 1983009808
        %v1078 = vunpack.c.0.s8 %v1077
        %v1079 = vlaneseq
        %v1080 = vshrl.u32 %v1079, 7
        %v1081 = vsub.s32 %v1078, %v1080
        %v1082 = vrot.slane %v1063, %v1081
        %v1083 = vcombine.low %v1074, %v1082
        %v1084 = vcombine.high %v1074, %v1082
        %v1086 = vunpack.c.l.s4 1934713408
        %v1087 = vunpack.c.0.s8 %v1086
        %v1088 = vlaneseq
        %v1089 = vshrl.u32 %v1088, 7
        %v1090 = vsub.s32 %v1087, %v1089
        %v1091 = vrot.slane %v1083, %v1090
        %v1093 = vunpack.c.l.s4 1934713408
        %v1094 = vunpack.c.0.s8 %v1093
        %v1095 = vlaneseq
        %v1096 = vshrl.u32 %v1095, 7
        %v1097 = vsub.s32 %v1094, %v1096
        %v1098 = vrot.slane %v1084, %v1097
        %v1099 = vcombine.high %v1091, 0
        %v1100 = vcombine.high %v1098, 0
        %v1103 = vunpack.c.l.s4 1983009808
        %v1104 = vunpack.c.0.s8 %v1103
        %v1105 = vlaneseq
        %v1106 = vshrl.u32 %v1105, 7
        %v1107 = vsub.s32 %v1104, %v1106
        %v1108 = vrot.slane %v1060, %v1107
        %v1111 = vunpack.c.l.s4 1983009808
        %v1112 = vunpack.c.0.s8 %v1111
        %v1113 = vlaneseq
        %v1114 = vshrl.u32 %v1113, 7
        %v1115 = vsub.s32 %v1112, %v1114
        %v1116 = vrot.slane %v1066, %v1115
        %v1117 = vcombine.low %v1108, %v1116
        %v1118 = vcombine.high %v1108, %v1116
        %v1120 = vunpack.c.l.s4 1934713408
        %v1121 = vunpack.c.0.s8 %v1120
        %v1122 = vlaneseq
        %v1123 = vshrl.u32 %v1122, 7
        %v1124 = vsub.s32 %v1121, %v1123
        %v1125 = vrot.slane %v1117, %v1124
        %v1127 = vunpack.c.l.s4 1934713408
        %v1128 = vunpack.c.0.s8 %v1127
        %v1129 = vlaneseq
        %v1130 = vshrl.u32 %v1129, 7
        %v1131 = vsub.s32 %v1128, %v1130
        %v1132 = vrot.slane %v1118, %v1131
        %v1133 = vcombine.high %v1125, 0
        %v1134 = vcombine.high %v1132, 0
        %v1135 = vcombine.low %v1091, %v1098
        %v1137 = vunpack.c.l.s4 1983009808
        %v1138 = vunpack.c.0.s8 %v1137
        %v1139 = vlaneseq
        %v1140 = vshrl.u32 %v1139, 7
        %v1141 = vsub.s32 %v1138, %v1140
        %v1142 = vrot.slane %v1135, %v1141
        %v1143 = vcombine.low %v1099, %v1100
        %v1145 = vunpack.c.l.s4 1983009808
        %v1146 = vunpack.c.0.s8 %v1145
        %v1147 = vlaneseq
        %v1148 = vshrl.u32 %v1147, 7
        %v1149 = vsub.s32 %v1146, %v1148
        %v1150 = vrot.slane %v1143, %v1149
        %v1151 = vcombine.low %v1142, %v1150
        %v1153 = vunpack.c.l.s4 1934713408
        %v1154 = vunpack.c.0.s8 %v1153
        %v1155 = vlaneseq
        %v1156 = vshrl.u32 %v1155, 7
        %v1157 = vsub.s32 %v1154, %v1156
        %v1158 = vrot.slane %v1151, %v1157
        %v1159 = vcombine.high %v1158, 0
        %v1160 = vcombine.low %v1125, %v1132
        %v1162 = vunpack.c.l.s4 1983009808
        %v1163 = vunpack.c.0.s8 %v1162
        %v1164 = vlaneseq
        %v1165 = vshrl.u32 %v1164, 7
        %v1166 = vsub.s32 %v1163, %v1165
        %v1167 = vrot.slane %v1160, %v1166
        %v1168 = vcombine.low %v1133, %v1134
        %v1170 = vunpack.c.l.s4 1983009808
        %v1171 = vunpack.c.0.s8 %v1170
        %v1172 = vlaneseq
        %v1173 = vshrl.u32 %v1172, 7
        %v1174 = vsub.s32 %v1171, %v1173
        %v1175 = vrot.slane %v1168, %v1174
        %v1176 = vcombine.low %v1167, %v1175
        %v1178 = vunpack.c.l.s4 1934713408
        %v1179 = vunpack.c.0.s8 %v1178
        %v1180 = vlaneseq
        %v1181 = vshrl.u32 %v1180, 7
        %v1182 = vsub.s32 %v1179, %v1181
        %v1183 = vrot.slane %v1176, %v1182
        %v1184 = vcombine.high %v1183, 0
        %v1187 = vpack.i.b16 %v1183, %v1158
        %v1188 = vshrl.u32 %v1158, 16
        %v1189 = vshrl.u32 %v1183, 16
        %v1190 = vpack.i.b16 %v1189, %v1188
        %v1193 = vpack.i.b16 %v1184, %v1159
        %v1194 = vshrl.u32 %v1159, 16
        %v1195 = vshrl.u32 %v1184, 16
        %v1196 = vpack.i.b16 %v1195, %v1194
        %vm1197 = vcmask 64512
        %v1199 = vsel %vm1197, %v893, 0
        %v1202 = vsel %vm1197, %v1037, 0
        %1204 = vmatprep.subr.bf16.mxu0 0
        %1205 = vmatpush1.bf16.xpose.msra.mxu0 %v1202
        %1206 = vmatprep.subr.bf16.mxu0 0
        %1207 = vmatpush1.bf16.xpose.msra.mxu0 0
        %1208 = vmatprep.subr.bf16.mxu0 0
        %1209 = vmatpush1.bf16.xpose.msra.mxu0 0
        %1210 = vmatprep.subr.bf16.mxu0 0
        %1211 = vmatpush1.bf16.xpose.msra.mxu0 0
        %1212 = vmatprep.subr.bf16.mxu0 0
        %1213 = vmatpush1.bf16.xpose.msra.mxu0 0
        %1214 = vmatprep.subr.bf16.mxu0 0
        %1215 = vmatpush1.bf16.xpose.msra.mxu0 0
        %1216 = vmatprep.subr.bf16.mxu0 0
        %1217 = vmatpush1.bf16.xpose.msra.mxu0 0
        %1218 = vmatprep.subr.bf16.mxu0 0
        %1219 = vmatpush1.bf16.xpose.msra.mxu0 0
        %1220 = vmatprep.subr.bf16.mxu0 0
        %1221 = vmatpush1.bf16.xpose.msra.mxu0 0
        %1222 = vmatprep.subr.bf16.mxu0 0
        %1223 = vmatpush1.bf16.xpose.msra.mxu0 0
        %1224 = vmatprep.subr.bf16.mxu0 0
        %1225 = vmatpush1.bf16.xpose.msra.mxu0 0
        %1226 = vmatprep.subr.bf16.mxu0 0
        %1227 = vmatpush1.bf16.xpose.msra.mxu0 0
        %1228 = vmatprep.subr.bf16.mxu0 0
        %1229 = vmatpush1.bf16.xpose.msra.mxu0 0
        %1230 = vmatprep.subr.bf16.mxu0 0
        %1231 = vmatpush1.bf16.xpose.msra.mxu0 0
        %1232 = vmatprep.subr.bf16.mxu0 0
        %1233 = vmatpush1.bf16.xpose.msra.mxu0 0
        %1234 = vmatprep.subr.bf16.mxu0 0
        %1235 = vmatpush1.bf16.xpose.msra.mxu0 0
        %1236 = vmatprep.mubr.bf16.mxu0 0
        %1237 = vmatmul.mubr.bf16.gmra.mrb[0].mxu0 %v1199
        %v1238 = vpop.f32.mrb[0].mxu0
        %v1239 = vadd.f32 0.0, %v1238
        %v1240 = vpop.f32.mrb[0].mxu0
        %v1241 = vpop.f32.mrb[0].mxu0
        %v1242 = vpop.f32.mrb[0].mxu0
        %1243 = vdwg.mxu0
        %v1245 = vsel %vm1197, %v894, 0
        %v1248 = vsel %vm1197, %v1040, 0
        %1250 = vmatprep.subr.bf16.mxu0 0
        %1251 = vmatpush1.bf16.xpose.msra.mxu0 %v1248
        %1252 = vmatprep.subr.bf16.mxu0 0
        %1253 = vmatpush1.bf16.xpose.msra.mxu0 0
        %1254 = vmatprep.subr.bf16.mxu0 0
        %1255 = vmatpush1.bf16.xpose.msra.mxu0 0
        %1256 = vmatprep.subr.bf16.mxu0 0
        %1257 = vmatpush1.bf16.xpose.msra.mxu0 0
        %1258 = vmatprep.subr.bf16.mxu0 0
        %1259 = vmatpush1.bf16.xpose.msra.mxu0 0
        %1260 = vmatprep.subr.bf16.mxu0 0
        %1261 = vmatpush1.bf16.xpose.msra.mxu0 0
        %1262 = vmatprep.subr.bf16.mxu0 0
        %1263 = vmatpush1.bf16.xpose.msra.mxu0 0
        %1264 = vmatprep.subr.bf16.mxu0 0
        %1265 = vmatpush1.bf16.xpose.msra.mxu0 0
        %1266 = vmatprep.subr.bf16.mxu0 0
        %1267 = vmatpush1.bf16.xpose.msra.mxu0 0
        %1268 = vmatprep.subr.bf16.mxu0 0
        %1269 = vmatpush1.bf16.xpose.msra.mxu0 0
        %1270 = vmatprep.subr.bf16.mxu0 0
        %1271 = vmatpush1.bf16.xpose.msra.mxu0 0
        %1272 = vmatprep.subr.bf16.mxu0 0
        %1273 = vmatpush1.bf16.xpose.msra.mxu0 0
        %1274 = vmatprep.subr.bf16.mxu0 0
        %1275 = vmatpush1.bf16.xpose.msra.mxu0 0
        %1276 = vmatprep.subr.bf16.mxu0 0
        %1277 = vmatpush1.bf16.xpose.msra.mxu0 0
        %1278 = vmatprep.subr.bf16.mxu0 0
        %1279 = vmatpush1.bf16.xpose.msra.mxu0 0
        %1280 = vmatprep.subr.bf16.mxu0 0
        %1281 = vmatpush1.bf16.xpose.msra.mxu0 0
        %1282 = vmatprep.mubr.bf16.mxu0 0
        %1283 = vmatmul.mubr.bf16.gmra.mrb[0].mxu0 %v1245
        %v1284 = vpop.f32.mrb[0].mxu0
        %v1285 = vadd.f32 0.0, %v1284
        %v1286 = vpop.f32.mrb[0].mxu0
        %v1287 = vpop.f32.mrb[0].mxu0
        %v1288 = vpop.f32.mrb[0].mxu0
        %1289 = vdwg.mxu0
        %v1291 = vsel %vm1197, %v895, 0
        %v1294 = vsel %vm1197, %v1043, 0
        %1296 = vmatprep.subr.bf16.mxu0 0
        %1297 = vmatpush1.bf16.xpose.msra.mxu0 %v1294
        %1298 = vmatprep.subr.bf16.mxu0 0
        %1299 = vmatpush1.bf16.xpose.msra.mxu0 0
        %1300 = vmatprep.subr.bf16.mxu0 0
        %1301 = vmatpush1.bf16.xpose.msra.mxu0 0
        %1302 = vmatprep.subr.bf16.mxu0 0
        %1303 = vmatpush1.bf16.xpose.msra.mxu0 0
        %1304 = vmatprep.subr.bf16.mxu0 0
        %1305 = vmatpush1.bf16.xpose.msra.mxu0 0
        %1306 = vmatprep.subr.bf16.mxu0 0
        %1307 = vmatpush1.bf16.xpose.msra.mxu0 0
        %1308 = vmatprep.subr.bf16.mxu0 0
        %1309 = vmatpush1.bf16.xpose.msra.mxu0 0
        %1310 = vmatprep.subr.bf16.mxu0 0
        %1311 = vmatpush1.bf16.xpose.msra.mxu0 0
        %1312 = vmatprep.subr.bf16.mxu0 0
        %1313 = vmatpush1.bf16.xpose.msra.mxu0 0
        %1314 = vmatprep.subr.bf16.mxu0 0
        %1315 = vmatpush1.bf16.xpose.msra.mxu0 0
        %1316 = vmatprep.subr.bf16.mxu0 0
        %1317 = vmatpush1.bf16.xpose.msra.mxu0 0
        %1318 = vmatprep.subr.bf16.mxu0 0
        %1319 = vmatpush1.bf16.xpose.msra.mxu0 0
        %1320 = vmatprep.subr.bf16.mxu0 0
        %1321 = vmatpush1.bf16.xpose.msra.mxu0 0
        %1322 = vmatprep.subr.bf16.mxu0 0
        %1323 = vmatpush1.bf16.xpose.msra.mxu0 0
        %1324 = vmatprep.subr.bf16.mxu0 0
        %1325 = vmatpush1.bf16.xpose.msra.mxu0 0
        %1326 = vmatprep.subr.bf16.mxu0 0
        %1327 = vmatpush1.bf16.xpose.msra.mxu0 0
        %1328 = vmatprep.mubr.bf16.mxu0 0
        %1329 = vmatmul.mubr.bf16.gmra.mrb[0].mxu0 %v1291
        %v1330 = vpop.f32.mrb[0].mxu0
        %v1331 = vadd.f32 0.0, %v1330
        %v1332 = vpop.f32.mrb[0].mxu0
        %v1333 = vpop.f32.mrb[0].mxu0
        %v1334 = vpop.f32.mrb[0].mxu0
        %1335 = vdwg.mxu0
        %v1337 = vsel %vm1197, %v896, 0
        %v1340 = vsel %vm1197, %v1046, 0
        %1342 = vmatprep.subr.bf16.mxu0 0
        %1343 = vmatpush1.bf16.xpose.msra.mxu0 %v1340
        %1344 = vmatprep.subr.bf16.mxu0 0
        %1345 = vmatpush1.bf16.xpose.msra.mxu0 0
        %1346 = vmatprep.subr.bf16.mxu0 0
        %1347 = vmatpush1.bf16.xpose.msra.mxu0 0
        %1348 = vmatprep.subr.bf16.mxu0 0
        %1349 = vmatpush1.bf16.xpose.msra.mxu0 0
        %1350 = vmatprep.subr.bf16.mxu0 0
        %1351 = vmatpush1.bf16.xpose.msra.mxu0 0
        %1352 = vmatprep.subr.bf16.mxu0 0
        %1353 = vmatpush1.bf16.xpose.msra.mxu0 0
        %1354 = vmatprep.subr.bf16.mxu0 0
        %1355 = vmatpush1.bf16.xpose.msra.mxu0 0
        %1356 = vmatprep.subr.bf16.mxu0 0
        %1357 = vmatpush1.bf16.xpose.msra.mxu0 0
        %1358 = vmatprep.subr.bf16.mxu0 0
        %1359 = vmatpush1.bf16.xpose.msra.mxu0 0
        %1360 = vmatprep.subr.bf16.mxu0 0
        %1361 = vmatpush1.bf16.xpose.msra.mxu0 0
        %1362 = vmatprep.subr.bf16.mxu0 0
        %1363 = vmatpush1.bf16.xpose.msra.mxu0 0
        %1364 = vmatprep.subr.bf16.mxu0 0
        %1365 = vmatpush1.bf16.xpose.msra.mxu0 0
        %1366 = vmatprep.subr.bf16.mxu0 0
        %1367 = vmatpush1.bf16.xpose.msra.mxu0 0
        %1368 = vmatprep.subr.bf16.mxu0 0
        %1369 = vmatpush1.bf16.xpose.msra.mxu0 0
        %1370 = vmatprep.subr.bf16.mxu0 0
        %1371 = vmatpush1.bf16.xpose.msra.mxu0 0
        %1372 = vmatprep.subr.bf16.mxu0 0
        %1373 = vmatpush1.bf16.xpose.msra.mxu0 0
        %1374 = vmatprep.mubr.bf16.mxu0 0
        %1375 = vmatmul.mubr.bf16.gmra.mrb[0].mxu0 %v1337
        %v1376 = vpop.f32.mrb[0].mxu0
        %v1377 = vadd.f32 0.0, %v1376
        %v1378 = vpop.f32.mrb[0].mxu0
        %v1379 = vpop.f32.mrb[0].mxu0
        %v1380 = vpop.f32.mrb[0].mxu0
        %1381 = vdwg.mxu0
        %v1382 = vsel %vm1197, %v1239, -inf
        %1383 = vmax.xlane.f32.xlu0 %v1382
        %v1384 = vpop.xlane.xlu0 %1383
        %v1385 = vsel %vm1197, %v1285, -inf
        %1386 = vmax.xlane.f32.xlu0 %v1385
        %v1387 = vpop.xlane.xlu0 %1386
        %v1388 = vsel %vm1197, %v1331, -inf
        %1389 = vmax.xlane.f32.xlu0 %v1388
        %v1390 = vpop.xlane.xlu0 %1389
        %v1391 = vsel %vm1197, %v1377, -inf
        %1392 = vmax.xlane.f32.xlu0 %v1391
        %v1393 = vpop.xlane.xlu0 %1392
        %v1394 = vsub.f32 %v1239, %v1384
        %v1395 = vsub.f32 %v1285, %v1387
        %v1396 = vsub.f32 %v1331, %v1390
        %v1397 = vsub.f32 %v1377, %v1393
        %v1398 = vmul.f32 %v1394, 1.442695
        %v1399 = vpow.pop %v1398
        %v1400 = vmul.f32 %v1395, 1.442695
        %v1401 = vpow.pop %v1400
        %v1402 = vmul.f32 %v1396, 1.442695
        %v1403 = vpow.pop %v1402
        %v1404 = vmul.f32 %v1397, 1.442695
        %v1405 = vpow.pop %v1404
        %v1406 = vsel %vm1197, %v1399, 0.0
        %1407 = vadd.xlane.f32.xlu0 %v1406
        %v1408 = vpop.xlane.xlu0 %1407
        %v1409 = vsel %vm1197, %v1401, 0.0
        %1410 = vadd.xlane.f32.xlu0 %v1409
        %v1411 = vpop.xlane.xlu0 %1410
        %v1412 = vsel %vm1197, %v1403, 0.0
        %1413 = vadd.xlane.f32.xlu0 %v1412
        %v1414 = vpop.xlane.xlu0 %1413
        %v1415 = vsel %vm1197, %v1405, 0.0
        %1416 = vadd.xlane.f32.xlu0 %v1415
        %v1417 = vpop.xlane.xlu0 %1416
        %v1418 = vpack.c.bf16 %v1399, %v1399
        %v1419 = vpack.c.bf16 %v1401, %v1401
        %v1420 = vpack.c.bf16 %v1403, %v1403
        %v1421 = vpack.c.bf16 %v1405, %v1405
        %v1423 = vsel %vm1197, %v1418, 0
        %vm1425 = vcmask 1043456
        %v1427 = vsel %vm1425, %v1187, 0
        %1429 = vmatprep.subr.bf16.mxu0 0
        %1430 = vmatpush1.bf16.msra.mxu0 %v1427
        %1431 = vmatprep.subr.bf16.mxu0 0
        %1432 = vmatpush1.bf16.msra.mxu0 0
        %1433 = vmatprep.subr.bf16.mxu0 0
        %1434 = vmatpush1.bf16.msra.mxu0 0
        %1435 = vmatprep.subr.bf16.mxu0 0
        %1436 = vmatpush1.bf16.msra.mxu0 0
        %1437 = vmatprep.subr.bf16.mxu0 0
        %1438 = vmatpush1.bf16.msra.mxu0 0
        %1439 = vmatprep.subr.bf16.mxu0 0
        %1440 = vmatpush1.bf16.msra.mxu0 0
        %1441 = vmatprep.subr.bf16.mxu0 0
        %1442 = vmatpush1.bf16.msra.mxu0 0
        %1443 = vmatprep.subr.bf16.mxu0 0
        %1444 = vmatpush1.bf16.msra.mxu0 0
        %1445 = vmatprep.subr.bf16.mxu0 0
        %1446 = vmatpush1.bf16.msra.mxu0 0
        %1447 = vmatprep.subr.bf16.mxu0 0
        %1448 = vmatpush1.bf16.msra.mxu0 0
        %1449 = vmatprep.subr.bf16.mxu0 0
        %1450 = vmatpush1.bf16.msra.mxu0 0
        %1451 = vmatprep.subr.bf16.mxu0 0
        %1452 = vmatpush1.bf16.msra.mxu0 0
        %1453 = vmatprep.subr.bf16.mxu0 0
        %1454 = vmatpush1.bf16.msra.mxu0 0
        %1455 = vmatprep.subr.bf16.mxu0 0
        %1456 = vmatpush1.bf16.msra.mxu0 0
        %1457 = vmatprep.subr.bf16.mxu0 0
        %1458 = vmatpush1.bf16.msra.mxu0 0
        %1459 = vmatprep.subr.bf16.mxu0 0
        %1460 = vmatpush1.bf16.msra.mxu0 0
        %1461 = vmatprep.mubr.bf16.mxu0 0
        %1462 = vmatmul.mubr.bf16.gmra.mrb[0].mxu0 %v1423
        %v1463 = vpop.f32.mrb[0].mxu0
        %v1464 = vadd.f32 0.0, %v1463
        %v1465 = vpop.f32.mrb[0].mxu0
        %v1466 = vpop.f32.mrb[0].mxu0
        %v1467 = vpop.f32.mrb[0].mxu0
        %1468 = vdwg.mxu0
        %v1470 = vsel %vm1197, %v1419, 0
        %v1473 = vsel %vm1425, %v1190, 0
        %1475 = vmatprep.subr.bf16.mxu0 0
        %1476 = vmatpush1.bf16.msra.mxu0 %v1473
        %1477 = vmatprep.subr.bf16.mxu0 0
        %1478 = vmatpush1.bf16.msra.mxu0 0
        %1479 = vmatprep.subr.bf16.mxu0 0
        %1480 = vmatpush1.bf16.msra.mxu0 0
        %1481 = vmatprep.subr.bf16.mxu0 0
        %1482 = vmatpush1.bf16.msra.mxu0 0
        %1483 = vmatprep.subr.bf16.mxu0 0
        %1484 = vmatpush1.bf16.msra.mxu0 0
        %1485 = vmatprep.subr.bf16.mxu0 0
        %1486 = vmatpush1.bf16.msra.mxu0 0
        %1487 = vmatprep.subr.bf16.mxu0 0
        %1488 = vmatpush1.bf16.msra.mxu0 0
        %1489 = vmatprep.subr.bf16.mxu0 0
        %1490 = vmatpush1.bf16.msra.mxu0 0
        %1491 = vmatprep.subr.bf16.mxu0 0
        %1492 = vmatpush1.bf16.msra.mxu0 0
        %1493 = vmatprep.subr.bf16.mxu0 0
        %1494 = vmatpush1.bf16.msra.mxu0 0
        %1495 = vmatprep.subr.bf16.mxu0 0
        %1496 = vmatpush1.bf16.msra.mxu0 0
        %1497 = vmatprep.subr.bf16.mxu0 0
        %1498 = vmatpush1.bf16.msra.mxu0 0
        %1499 = vmatprep.subr.bf16.mxu0 0
        %1500 = vmatpush1.bf16.msra.mxu0 0
        %1501 = vmatprep.subr.bf16.mxu0 0
        %1502 = vmatpush1.bf16.msra.mxu0 0
        %1503 = vmatprep.subr.bf16.mxu0 0
        %1504 = vmatpush1.bf16.msra.mxu0 0
        %1505 = vmatprep.subr.bf16.mxu0 0
        %1506 = vmatpush1.bf16.msra.mxu0 0
        %1507 = vmatprep.mubr.bf16.mxu0 0
        %1508 = vmatmul.mubr.bf16.gmra.mrb[0].mxu0 %v1470
        %v1509 = vpop.f32.mrb[0].mxu0
        %v1510 = vadd.f32 0.0, %v1509
        %v1511 = vpop.f32.mrb[0].mxu0
        %v1512 = vpop.f32.mrb[0].mxu0
        %v1513 = vpop.f32.mrb[0].mxu0
        %1514 = vdwg.mxu0
        %v1516 = vsel %vm1197, %v1420, 0
        %v1519 = vsel %vm1425, %v1193, 0
        %1521 = vmatprep.subr.bf16.mxu0 0
        %1522 = vmatpush1.bf16.msra.mxu0 %v1519
        %1523 = vmatprep.subr.bf16.mxu0 0
        %1524 = vmatpush1.bf16.msra.mxu0 0
        %1525 = vmatprep.subr.bf16.mxu0 0
        %1526 = vmatpush1.bf16.msra.mxu0 0
        %1527 = vmatprep.subr.bf16.mxu0 0
        %1528 = vmatpush1.bf16.msra.mxu0 0
        %1529 = vmatprep.subr.bf16.mxu0 0
        %1530 = vmatpush1.bf16.msra.mxu0 0
        %1531 = vmatprep.subr.bf16.mxu0 0
        %1532 = vmatpush1.bf16.msra.mxu0 0
        %1533 = vmatprep.subr.bf16.mxu0 0
        %1534 = vmatpush1.bf16.msra.mxu0 0
        %1535 = vmatprep.subr.bf16.mxu0 0
        %1536 = vmatpush1.bf16.msra.mxu0 0
        %1537 = vmatprep.subr.bf16.mxu0 0
        %1538 = vmatpush1.bf16.msra.mxu0 0
        %1539 = vmatprep.subr.bf16.mxu0 0
        %1540 = vmatpush1.bf16.msra.mxu0 0
        %1541 = vmatprep.subr.bf16.mxu0 0
        %1542 = vmatpush1.bf16.msra.mxu0 0
        %1543 = vmatprep.subr.bf16.mxu0 0
        %1544 = vmatpush1.bf16.msra.mxu0 0
        %1545 = vmatprep.subr.bf16.mxu0 0
        %1546 = vmatpush1.bf16.msra.mxu0 0
        %1547 = vmatprep.subr.bf16.mxu0 0
        %1548 = vmatpush1.bf16.msra.mxu0 0
        %1549 = vmatprep.subr.bf16.mxu0 0
        %1550 = vmatpush1.bf16.msra.mxu0 0
        %1551 = vmatprep.subr.bf16.mxu0 0
        %1552 = vmatpush1.bf16.msra.mxu0 0
        %1553 = vmatprep.mubr.bf16.mxu0 0
        %1554 = vmatmul.mubr.bf16.gmra.mrb[0].mxu0 %v1516
        %v1555 = vpop.f32.mrb[0].mxu0
        %v1556 = vadd.f32 0.0, %v1555
        %v1557 = vpop.f32.mrb[0].mxu0
        %v1558 = vpop.f32.mrb[0].mxu0
        %v1559 = vpop.f32.mrb[0].mxu0
        %1560 = vdwg.mxu0
        %v1562 = vsel %vm1197, %v1421, 0
        %v1565 = vsel %vm1425, %v1196, 0
        %1567 = vmatprep.subr.bf16.mxu0 0
        %1568 = vmatpush1.bf16.msra.mxu0 %v1565
        %1569 = vmatprep.subr.bf16.mxu0 0
        %1570 = vmatpush1.bf16.msra.mxu0 0
        %1571 = vmatprep.subr.bf16.mxu0 0
        %1572 = vmatpush1.bf16.msra.mxu0 0
        %1573 = vmatprep.subr.bf16.mxu0 0
        %1574 = vmatpush1.bf16.msra.mxu0 0
        %1575 = vmatprep.subr.bf16.mxu0 0
        %1576 = vmatpush1.bf16.msra.mxu0 0
        %1577 = vmatprep.subr.bf16.mxu0 0
        %1578 = vmatpush1.bf16.msra.mxu0 0
        %1579 = vmatprep.subr.bf16.mxu0 0
        %1580 = vmatpush1.bf16.msra.mxu0 0
        %1581 = vmatprep.subr.bf16.mxu0 0
        %1582 = vmatpush1.bf16.msra.mxu0 0
        %1583 = vmatprep.subr.bf16.mxu0 0
        %1584 = vmatpush1.bf16.msra.mxu0 0
        %1585 = vmatprep.subr.bf16.mxu0 0
        %1586 = vmatpush1.bf16.msra.mxu0 0
        %1587 = vmatprep.subr.bf16.mxu0 0
        %1588 = vmatpush1.bf16.msra.mxu0 0
        %1589 = vmatprep.subr.bf16.mxu0 0
        %1590 = vmatpush1.bf16.msra.mxu0 0
        %1591 = vmatprep.subr.bf16.mxu0 0
        %1592 = vmatpush1.bf16.msra.mxu0 0
        %1593 = vmatprep.subr.bf16.mxu0 0
        %1594 = vmatpush1.bf16.msra.mxu0 0
        %1595 = vmatprep.subr.bf16.mxu0 0
        %1596 = vmatpush1.bf16.msra.mxu0 0
        %1597 = vmatprep.subr.bf16.mxu0 0
        %1598 = vmatpush1.bf16.msra.mxu0 0
        %1599 = vmatprep.mubr.bf16.mxu0 0
        %1600 = vmatmul.mubr.bf16.gmra.mrb[0].mxu0 %v1562
        %v1601 = vpop.f32.mrb[0].mxu0
        %v1602 = vadd.f32 0.0, %v1601
        %v1603 = vpop.f32.mrb[0].mxu0
        %v1604 = vpop.f32.mrb[0].mxu0
        %v1605 = vpop.f32.mrb[0].mxu0
        %1606 = vdwg.mxu0
        %v1607 = vrcp.pop %v1408
        %v1608 = vrcp.pop %v1411
        %v1609 = vrcp.pop %v1414
        %v1610 = vrcp.pop %v1417
        %v1611 = vmul.f32 %v1464, %v1607
        %v1612 = vmul.f32 %v1510, %v1608
        %v1613 = vmul.f32 %v1556, %v1609
        %v1614 = vmul.f32 %v1602, %v1610
        %v1615 = vcombine.low %v1611, %v1613
        %v1616 = vcombine.high %v1611, %v1613
        %v1618 = vunpack.c.l.s4 1983009808
        %v1619 = vunpack.c.0.s8 %v1618
        %v1620 = vlaneseq
        %v1621 = vshrl.u32 %v1620, 7
        %v1622 = vsub.s32 %v1619, %v1621
        %v1623 = vrot.slane %v1615, %v1622
        %v1625 = vunpack.c.l.s4 1983009808
        %v1626 = vunpack.c.0.s8 %v1625
        %v1627 = vlaneseq
        %v1628 = vshrl.u32 %v1627, 7
        %v1629 = vsub.s32 %v1626, %v1628
        %v1630 = vrot.slane %v1616, %v1629
        %v1631 = vcombine.low %v1612, %v1614
        %v1632 = vcombine.high %v1612, %v1614
        %v1634 = vunpack.c.l.s4 1983009808
        %v1635 = vunpack.c.0.s8 %v1634
        %v1636 = vlaneseq
        %v1637 = vshrl.u32 %v1636, 7
        %v1638 = vsub.s32 %v1635, %v1637
        %v1639 = vrot.slane %v1631, %v1638
        %v1641 = vunpack.c.l.s4 1983009808
        %v1642 = vunpack.c.0.s8 %v1641
        %v1643 = vlaneseq
        %v1644 = vshrl.u32 %v1643, 7
        %v1645 = vsub.s32 %v1642, %v1644
        %v1646 = vrot.slane %v1632, %v1645
        %v1647 = vcombine.low %v1623, %v1639
        %v1648 = vcombine.high %v1623, %v1639
        %v1650 = vunpack.c.l.s4 1934713408
        %v1651 = vunpack.c.0.s8 %v1650
        %v1652 = vlaneseq
        %v1653 = vshrl.u32 %v1652, 7
        %v1654 = vsub.s32 %v1651, %v1653
        %v1655 = vrot.slane %v1647, %v1654
        %v1657 = vunpack.c.l.s4 1934713408
        %v1658 = vunpack.c.0.s8 %v1657
        %v1659 = vlaneseq
        %v1660 = vshrl.u32 %v1659, 7
        %v1661 = vsub.s32 %v1658, %v1660
        %v1662 = vrot.slane %v1648, %v1661
        %v1663 = vcombine.low %v1630, %v1646
        %v1664 = vcombine.high %v1630, %v1646
        %v1666 = vunpack.c.l.s4 1934713408
        %v1667 = vunpack.c.0.s8 %v1666
        %v1668 = vlaneseq
        %v1669 = vshrl.u32 %v1668, 7
        %v1670 = vsub.s32 %v1667, %v1669
        %v1671 = vrot.slane %v1663, %v1670
        %v1673 = vunpack.c.l.s4 1934713408
        %v1674 = vunpack.c.0.s8 %v1673
        %v1675 = vlaneseq
        %v1676 = vshrl.u32 %v1675, 7
        %v1677 = vsub.s32 %v1674, %v1676
        %v1678 = vrot.slane %v1664, %v1677
        %v1679 = vcombine.high %v1655, 0.0
        %v1680 = vcombine.high %v1662, 0.0
        %v1681 = vcombine.high %v1671, 0.0
        %v1682 = vcombine.high %v1678, 0.0
        %v1683 = vcombine.low %v1655, %v1662
        %v1685 = vunpack.c.l.s4 1983009808
        %v1686 = vunpack.c.0.s8 %v1685
        %v1687 = vlaneseq
        %v1688 = vshrl.u32 %v1687, 7
        %v1689 = vsub.s32 %v1686, %v1688
        %v1690 = vrot.slane %v1683, %v1689
        %v1691 = vcombine.low %v1679, %v1680
        %v1693 = vunpack.c.l.s4 1983009808
        %v1694 = vunpack.c.0.s8 %v1693
        %v1695 = vlaneseq
        %v1696 = vshrl.u32 %v1695, 7
        %v1697 = vsub.s32 %v1694, %v1696
        %v1698 = vrot.slane %v1691, %v1697
        %v1699 = vcombine.low %v1671, %v1678
        %v1701 = vunpack.c.l.s4 1983009808
        %v1702 = vunpack.c.0.s8 %v1701
        %v1703 = vlaneseq
        %v1704 = vshrl.u32 %v1703, 7
        %v1705 = vsub.s32 %v1702, %v1704
        %v1706 = vrot.slane %v1699, %v1705
        %v1707 = vcombine.low %v1681, %v1682
        %v1709 = vunpack.c.l.s4 1983009808
        %v1710 = vunpack.c.0.s8 %v1709
        %v1711 = vlaneseq
        %v1712 = vshrl.u32 %v1711, 7
        %v1713 = vsub.s32 %v1710, %v1712
        %v1714 = vrot.slane %v1707, %v1713
        %v1715 = vcombine.low %v1690, %v1698
        %v1716 = vcombine.high %v1690, %v1698
        %v1718 = vunpack.c.l.s4 1934713408
        %v1719 = vunpack.c.0.s8 %v1718
        %v1720 = vlaneseq
        %v1721 = vshrl.u32 %v1720, 7
        %v1722 = vsub.s32 %v1719, %v1721
        %v1723 = vrot.slane %v1715, %v1722
        %v1725 = vunpack.c.l.s4 1934713408
        %v1726 = vunpack.c.0.s8 %v1725
        %v1727 = vlaneseq
        %v1728 = vshrl.u32 %v1727, 7
        %v1729 = vsub.s32 %v1726, %v1728
        %v1730 = vrot.slane %v1716, %v1729
        %v1731 = vcombine.low %v1706, %v1714
        %v1732 = vcombine.high %v1706, %v1714
        %v1734 = vunpack.c.l.s4 1934713408
        %v1735 = vunpack.c.0.s8 %v1734
        %v1736 = vlaneseq
        %v1737 = vshrl.u32 %v1736, 7
        %v1738 = vsub.s32 %v1735, %v1737
        %v1739 = vrot.slane %v1731, %v1738
        %v1741 = vunpack.c.l.s4 1934713408
        %v1742 = vunpack.c.0.s8 %v1741
        %v1743 = vlaneseq
        %v1744 = vshrl.u32 %v1743, 7
        %v1745 = vsub.s32 %v1742, %v1744
        %v1746 = vrot.slane %v1732, %v1745
        %v1747 = vcombine.low %v1723, %v1739
        %v1748 = vcombine.high %v1723, %v1739
        %v1749 = vcombine.low %v1730, %v1746
        %v1750 = vcombine.high %v1730, %v1746
        %1752 = vrot.lane.b32.xlu0 %v1748, 8
        %v1753 = vpop.permute.xlu0 %1752
        %1756 = vrot.lane.b32.xlu0 %v1749, 16
        %v1757 = vpop.permute.xlu0 %1756
        %1760 = vrot.lane.b32.xlu0 %v1750, 24
        %v1761 = vpop.permute.xlu0 %1760
        %v1763 = vsel %vm1197, %v1747, %v1753
        %vm1764 = vcmask 130048
        %v1765 = vsel %vm1764, %v1763, %v1757
        %vm1766 = vcmask 195584
        %v1767 = vsel %vm1766, %v1765, %v1761
        %v1768 = vpack.c.bf16 %v1767, %v1767
        %v1769 = vld [vmem:[#allocation13] sm:$0xf]
        %v1770 = vld [vmem:[#allocation13 + $0x4] sm:$0xf]
        %v1771 = vld [vmem:[#allocation13 + $0x8] sm:$0xf]
        %v1772 = vld [vmem:[#allocation13 + $0xc] sm:$0xf]
        %v1773 = vlaneseq
        %v1774 = vshrl.u32 %v1773, 7
        %v1775 = vsub.s32 3, %v1774
        %v1776 = vrot.slane %v544, %v1775
        %v1781 = vunpack.c.l.b16 %v1769
        %v1782 = vunpack.c.l.b16 %v1770
        %v1783 = vunpack.c.l.b16 %v1771
        %v1784 = vunpack.c.l.b16 %v1772
        %v1785 = vpack.c.b16 %v1782, %v1781
        %v1786 = vpack.c.b16 %v1784, %v1783
        %v1790 = vsel %vm702, %v1768, 0
        %1792 = vmatprep.subr.bf16.mxu0 0
        %1793 = vmatpush1.bf16.msra.mxu0 %v1785
        %1794 = vmatprep.subr.bf16.mxu0 0
        %1795 = vmatpush1.bf16.msra.mxu0 %v1786
        %1796 = vmatprep.subr.bf16.mxu0 0
        %1797 = vmatpush1.bf16.msra.mxu0 0
        %1798 = vmatprep.subr.bf16.mxu0 0
        %1799 = vmatpush1.bf16.msra.mxu0 0
        %1800 = vmatprep.subr.bf16.mxu0 0
        %1801 = vmatpush1.bf16.msra.mxu0 0
        %1802 = vmatprep.subr.bf16.mxu0 0
        %1803 = vmatpush1.bf16.msra.mxu0 0
        %1804 = vmatprep.subr.bf16.mxu0 0
        %1805 = vmatpush1.bf16.msra.mxu0 0
        %1806 = vmatprep.subr.bf16.mxu0 0
        %1807 = vmatpush1.bf16.msra.mxu0 0
        %1808 = vmatprep.subr.bf16.mxu0 0
        %1809 = vmatpush1.bf16.msra.mxu0 0
        %1810 = vmatprep.subr.bf16.mxu0 0
        %1811 = vmatpush1.bf16.msra.mxu0 0
        %1812 = vmatprep.subr.bf16.mxu0 0
        %1813 = vmatpush1.bf16.msra.mxu0 0
        %1814 = vmatprep.subr.bf16.mxu0 0
        %1815 = vmatpush1.bf16.msra.mxu0 0
        %1816 = vmatprep.subr.bf16.mxu0 0
        %1817 = vmatpush1.bf16.msra.mxu0 0
        %1818 = vmatprep.subr.bf16.mxu0 0
        %1819 = vmatpush1.bf16.msra.mxu0 0
        %1820 = vmatprep.subr.bf16.mxu0 0
        %1821 = vmatpush1.bf16.msra.mxu0 0
        %1822 = vmatprep.subr.bf16.mxu0 0
        %1823 = vmatpush1.bf16.msra.mxu0 0
        %1824 = vmatprep.mubr.bf16.mxu0 0
        %1825 = vmatmul.mubr.bf16.gmra.mrb[0].mxu0 %v1790
        %v1826 = vpop.f32.mrb[0].mxu0
        %v1827 = vadd.f32 %v1776, %v1826
        %v1828 = vpop.f32.mrb[0].mxu0
        %v1829 = vpop.f32.mrb[0].mxu0
        %v1830 = vpop.f32.mrb[0].mxu0
        %1831 = vdwg.mxu0
        %v1832 = vadd.f32 %v680, %v1827
        %v1833 = vsel %vm702, %v1832, 0.0
        %1834 = vadd.xlane.f32.xlu0 %v1833
        %v1835 = vpop.xlane.xlu0 %1834
        %v1836 = vrcp.pop 32.0
        %v1837 = vmul.f32 %v1835, %v1836
        %v1838 = vsub.f32 %v1832, %v1837
        %v1839 = vmul.f32 %v1838, %v1838
        %v1840 = vsel %vm702, %v1839, 0.0
        %1841 = vadd.xlane.f32.xlu0 %v1840
        %v1842 = vpop.xlane.xlu0 %1841
        %v1843 = vmul.f32 %v1842, %v1836
        %v1844 = vadd.f32 %v1843, 1e-05
        %v1845 = vrsqrt.pop %v1844
        %v1846 = vmul.f32 %v1838, %v1845
        %v1847 = vlaneseq
        %v1848 = vshrl.u32 %v1847, 7
        %v1849 = vsub.s32 4, %v1848
        %v1850 = vrot.slane %v544, %v1849
        %v1851 = vmul.f32 %v1846, %v1850
        %v1852 = vlaneseq
        %v1853 = vshrl.u32 %v1852, 7
        %v1854 = vsub.s32 5, %v1853
        %v1855 = vrot.slane %v544, %v1854
        %v1856 = vadd.f32 %v1851, %v1855
        %v1857 = vpack.c.bf16 %v1856, %v1856
        %v1858 = vld [vmem:[#allocation15] sm:$0xf]
        %v1859 = vld [vmem:[#allocation15 + $0x4] sm:$0xf]
        %v1860 = vld [vmem:[#allocation15 + $0x8] sm:$0xf]
        %v1861 = vld [vmem:[#allocation15 + $0xc] sm:$0xf]
        %v1862 = vld [vmem:[#allocation19] sm:$0x1]
        %v1864 = vlaneseq
        %v1865 = vshrl.u32 %v1864, 7
        %v1866 = vsub.s32 0, %v1865
        %v1867 = vrot.slane %v1862, %v1866
        %v1873 = vunpack.c.l.b16 %v1858
        %v1874 = vunpack.c.l.b16 %v1859
        %v1875 = vunpack.c.l.b16 %v1860
        %v1876 = vunpack.c.l.b16 %v1861
        %v1877 = vpack.c.b16 %v1874, %v1873
        %v1878 = vpack.c.b16 %v1876, %v1875
        %v1882 = vsel %vm702, %v1857, 0
        %1884 = vmatprep.subr.bf16.mxu0 0
        %1885 = vmatpush1.bf16.msra.mxu0 %v1877
        %1886 = vmatprep.subr.bf16.mxu0 0
        %1887 = vmatpush1.bf16.msra.mxu0 %v1878
        %1888 = vmatprep.subr.bf16.mxu0 0
        %1889 = vmatpush1.bf16.msra.mxu0 0
        %1890 = vmatprep.subr.bf16.mxu0 0
        %1891 = vmatpush1.bf16.msra.mxu0 0
        %1892 = vmatprep.subr.bf16.mxu0 0
        %1893 = vmatpush1.bf16.msra.mxu0 0
        %1894 = vmatprep.subr.bf16.mxu0 0
        %1895 = vmatpush1.bf16.msra.mxu0 0
        %1896 = vmatprep.subr.bf16.mxu0 0
        %1897 = vmatpush1.bf16.msra.mxu0 0
        %1898 = vmatprep.subr.bf16.mxu0 0
        %1899 = vmatpush1.bf16.msra.mxu0 0
        %1900 = vmatprep.subr.bf16.mxu0 0
        %1901 = vmatpush1.bf16.msra.mxu0 0
        %1902 = vmatprep.subr.bf16.mxu0 0
        %1903 = vmatpush1.bf16.msra.mxu0 0
        %1904 = vmatprep.subr.bf16.mxu0 0
        %1905 = vmatpush1.bf16.msra.mxu0 0
        %1906 = vmatprep.subr.bf16.mxu0 0
        %1907 = vmatpush1.bf16.msra.mxu0 0
        %1908 = vmatprep.subr.bf16.mxu0 0
        %1909 = vmatpush1.bf16.msra.mxu0 0
        %1910 = vmatprep.subr.bf16.mxu0 0
        %1911 = vmatpush1.bf16.msra.mxu0 0
        %1912 = vmatprep.subr.bf16.mxu0 0
        %1913 = vmatpush1.bf16.msra.mxu0 0
        %1914 = vmatprep.subr.bf16.mxu0 0
        %1915 = vmatpush1.bf16.msra.mxu0 0
        %1916 = vmatprep.mubr.bf16.mxu0 0
        %1917 = vmatmul.mubr.bf16.gmra.mrb[0].mxu0 %v1882
        %v1918 = vpop.f32.mrb[0].mxu0
        %v1919 = vadd.f32 %v1867, %v1918
        %v1920 = vpop.f32.mrb[0].mxu0
        %v1921 = vpop.f32.mrb[0].mxu0
        %v1922 = vpop.f32.mrb[0].mxu0
        %1923 = vdwg.mxu0
        %v1924 = vmul.f32 %v1919, 0.5
        %v1925 = vmul.f32 %v1919, 0.70710677
        %v1926 = verf.f32.pop %v1925
        %v1927 = vadd.f32 %v1926, 1.0
        %v1928 = vmul.f32 %v1924, %v1927
        %v1929 = vpack.c.bf16 %v1928, %v1928
        %v1930 = vld [vmem:[#allocation16] sm:$0xf]
        %v1931 = vld [vmem:[#allocation16 + $0x4] sm:$0xf]
        %v1932 = vld [vmem:[#allocation16 + $0x8] sm:$0xf]
        %v1933 = vld [vmem:[#allocation16 + $0xc] sm:$0xf]
        %v1934 = vld [vmem:[#allocation16 + $0x10] sm:$0xf]
        %v1935 = vld [vmem:[#allocation16 + $0x14] sm:$0xf]
        %v1936 = vld [vmem:[#allocation16 + $0x18] sm:$0xf]
        %v1937 = vld [vmem:[#allocation16 + $0x1c] sm:$0xf]
        %v1938 = vlaneseq
        %v1939 = vshrl.u32 %v1938, 7
        %v1940 = vsub.s32 6, %v1939
        %v1941 = vrot.slane %v544, %v1940
        %v1950 = vunpack.c.l.b16 %v1930
        %v1951 = vunpack.c.l.b16 %v1931
        %v1952 = vunpack.c.l.b16 %v1932
        %v1953 = vunpack.c.l.b16 %v1933
        %v1954 = vunpack.c.l.b16 %v1934
        %v1955 = vunpack.c.l.b16 %v1935
        %v1956 = vunpack.c.l.b16 %v1936
        %v1957 = vunpack.c.l.b16 %v1937
        %v1958 = vpack.c.b16 %v1951, %v1950
        %v1959 = vpack.c.b16 %v1953, %v1952
        %v1960 = vpack.c.b16 %v1955, %v1954
        %v1961 = vpack.c.b16 %v1957, %v1956
        %vm1966 = vcmask 523264
        %v1968 = vsel %vm1966, %v1929, 0
        %1970 = vmatprep.subr.bf16.mxu0 0
        %1971 = vmatpush1.bf16.msra.mxu0 %v1958
        %1972 = vmatprep.subr.bf16.mxu0 0
        %1973 = vmatpush1.bf16.msra.mxu0 %v1959
        %1974 = vmatprep.subr.bf16.mxu0 0
        %1975 = vmatpush1.bf16.msra.mxu0 %v1960
        %1976 = vmatprep.subr.bf16.mxu0 0
        %1977 = vmatpush1.bf16.msra.mxu0 %v1961
        %1978 = vmatprep.subr.bf16.mxu0 0
        %1979 = vmatpush1.bf16.msra.mxu0 0
        %1980 = vmatprep.subr.bf16.mxu0 0
        %1981 = vmatpush1.bf16.msra.mxu0 0
        %1982 = vmatprep.subr.bf16.mxu0 0
        %1983 = vmatpush1.bf16.msra.mxu0 0
        %1984 = vmatprep.subr.bf16.mxu0 0
        %1985 = vmatpush1.bf16.msra.mxu0 0
        %1986 = vmatprep.subr.bf16.mxu0 0
        %1987 = vmatpush1.bf16.msra.mxu0 0
        %1988 = vmatprep.subr.bf16.mxu0 0
        %1989 = vmatpush1.bf16.msra.mxu0 0
        %1990 = vmatprep.subr.bf16.mxu0 0
        %1991 = vmatpush1.bf16.msra.mxu0 0
        %1992 = vmatprep.subr.bf16.mxu0 0
        %1993 = vmatpush1.bf16.msra.mxu0 0
        %1994 = vmatprep.subr.bf16.mxu0 0
        %1995 = vmatpush1.bf16.msra.mxu0 0
        %1996 = vmatprep.subr.bf16.mxu0 0
        %1997 = vmatpush1.bf16.msra.mxu0 0
        %1998 = vmatprep.subr.bf16.mxu0 0
        %1999 = vmatpush1.bf16.msra.mxu0 0
        %2000 = vmatprep.subr.bf16.mxu0 0
        %2001 = vmatpush1.bf16.msra.mxu0 0
        %2002 = vmatprep.mubr.bf16.mxu0 0
        %2003 = vmatmul.mubr.bf16.gmra.mrb[0].mxu0 %v1968
        %v2004 = vpop.f32.mrb[0].mxu0
        %v2005 = vadd.f32 %v1941, %v2004
        %v2006 = vpop.f32.mrb[0].mxu0
        %v2007 = vpop.f32.mrb[0].mxu0
        %v2008 = vpop.f32.mrb[0].mxu0
        %2009 = vdwg.mxu0
        %v2010 = vadd.f32 %v1856, %v2005
        %v2011 = vsel %vm702, %v2010, 0.0
        %2012 = vadd.xlane.f32.xlu0 %v2011
        %v2013 = vpop.xlane.xlu0 %2012
        %v2014 = vmul.f32 %v2013, %v1836
        %v2015 = vsub.f32 %v2010, %v2014
        %v2016 = vmul.f32 %v2015, %v2015
        %v2017 = vsel %vm702, %v2016, 0.0
        %2018 = vadd.xlane.f32.xlu0 %v2017
        %v2019 = vpop.xlane.xlu0 %2018
        %v2020 = vmul.f32 %v2019, %v1836
        %v2021 = vadd.f32 %v2020, 1e-05
        %v2022 = vrsqrt.pop %v2021
        %v2023 = vmul.f32 %v2015, %v2022
        %v2024 = vlaneseq
        %v2025 = vshrl.u32 %v2024, 7
        %v2026 = vsub.s32 7, %v2025
        %v2027 = vrot.slane %v544, %v2026
        %v2028 = vmul.f32 %v2023, %v2027
        %v2029 = vlaneseq
        %v2030 = vshrl.u32 %v2029, 7
        %v2031 = vsub.s32 0, %v2030
        %v2032 = vrot.slane %v545, %v2031
        %v2033 = vadd.f32 %v2028, %v2032
        %2034 = vst.msk [vmem:[%s542] sm:$0xff] %vm702, %v2033
        %s2035 = sand.u32 %s278, 1
        %s2036 = scalar_lea.sflag [#allocation6], %s2035
        %s2037 = sand.u32 %s278, 1
        %s2038 = smul.addr %s2037, 8
        %s2039 = scalar_lea.vmem [#allocation21], %s2038
        // Predicated region
        $region105: #{tpu_custom_call.1} parent=59 // pred_check
          %p2040 = pneg %p288
        $region106: #{tpu_custom_call.1} parent=59 // pred_check_branch
          %2042 = sbr.rel (%p2040) target = $region108
        $region107: #{tpu_custom_call.1} parent=59 // pred_region
          %s2044 = ssub.s32 128, 128
          %2045 = vsyncadd %s2036, %s2044
          %s2046 = sadd.s32 %s39, %s38
          %s2047 = smul.addr %s2046, 128
          %s2048 = scalar_lea.hbm %s10, %s2047
          %s2050 = sshll.u32 %s2039, 4
          %s2051 = int_to_ptr.vmem [resolvable:$true] %s2050
          %2053 = dma.vmem_to_hbm [thread:$0]  %s2051, 128, %s2048, %s2036
        $region108: #{tpu_custom_call.1} parent=59 // pred_fallthru
          _
      $region60: #{tpu_custom_call.1} parent=5 // pred_fallthru
        _
      %p2054 = scmp.le.s32.totalorder 2, %s29
      // Predicated region
      $region109: #{tpu_custom_call.1} parent=5 // pred_check
        %p2055 = pneg %p2054
      $region110: #{tpu_custom_call.1} parent=5 // pred_check_branch
        %2057 = sbr.rel (%p2055) target = $region112
      $region111: #{tpu_custom_call.1} parent=5 // pred_region
        %s2058 = ssub.s32 %s29, 2
        // Predicated region
        $region113: #{tpu_custom_call.1} parent=111 // pred_check
          %p2059 = pneg %p294
        $region114: #{tpu_custom_call.1} parent=111 // pred_check_branch
          %2061 = sbr.rel (%p2059) target = $region116
        $region115: #{tpu_custom_call.1} parent=111 // pred_region
          %s2062 = sand.u32 %s279, 1
          %s2063 = scalar_lea.sflag [#allocation6], %s2062
          %s2064 = sand.u32 %s279, 1
          %s2065 = smul.addr %s2064, 8
          %s2066 = scalar_lea.vmem [#allocation21], %s2065
          %2067 = dma.done %s2063, 128
        $region116: #{tpu_custom_call.1} parent=111 // pred_fallthru
          _
      $region112: #{tpu_custom_call.1} parent=5 // pred_fallthru
        _
    $region6: #{tpu_custom_call.1} parent=1 // loop_footer
      %s33 = sadd.s32 1, %s29
    $region7: #{tpu_custom_call.1} parent=1 // loop_footer_branch
      %28 = sbr.rel target = $region3
    $region8: #{tpu_custom_call.1} parent=1 // loop_exit
      _
    %2068 = vsyncpa [#allocation5], 1
    %s2069 = scalar_lea.sflag [#allocation5], 1
    %2070 = vsyncpa %s2069, 1
    %2071 = vsyncpa [#allocation8], 1
    %s2072 = scalar_lea.sflag [#allocation8], 1
    %2073 = vsyncpa %s2072, 1
    %2074 = vsyncpa [#allocation11], 1
    %2075 = vsyncpa [#allocation14], 1
    %2076 = vsyncpa [#allocation17], 1
    %2077 = vsyncpa [#allocation20], 1
    %2078 = vsyncpa [#allocation6], 1
    %s2079 = scalar_lea.sflag [#allocation6], 1
    %2080 = vsyncpa %s2079, 1

// kernel: tpu_custom_call.1
$region0: #{tpu_custom_call.1}
  #allocation0 [shape = 'u32[]', space=smem, size = 0x4, offset = 0x4, fixed_abs, tag = 'smem constant byte address 0x4 - core index']
  #allocation1 [shape = 'u32[144,128]{1,0:T(1,128)}', space=vmem, size = 0x12000, scoped, tag = 'internal scratch']
  #allocation2 [shape = 'bf16[8,32]{1,0:T(8,128)(2,1)}', space=vmem, size = 0x800, scoped, tag = 'scratch operand']
  #allocation3 [shape = 'bf16[8,32]{1,0:T(8,128)(2,1)}', space=vmem, size = 0x800, scoped, tag = 'scratch operand']
  %s0 = inlined_call_operand.hbm [shape: f32[2,8,32], index: 0, kind: input, shape index: {}]
  %s1 = inlined_call_operand.hbm [shape: bf16[2,8,32], index: 1, kind: input, shape index: {}]
  %s2 = inlined_call_operand.hbm [shape: bf16[32,32], index: 2, kind: input, shape index: {}]
  %s3 = inlined_call_operand.hbm [shape: bf16[32,32], index: 3, kind: input, shape index: {}]
  %s4 = inlined_call_operand.hbm [shape: bf16[32,32], index: 4, kind: input, shape index: {}]
  %s5 = inlined_call_operand.hbm [shape: bf16[32,32], index: 5, kind: input, shape index: {}]
  %s6 = inlined_call_operand.hbm [shape: bf16[32,64], index: 6, kind: input, shape index: {}]
  %s7 = inlined_call_operand.hbm [shape: bf16[64,32], index: 7, kind: input, shape index: {}]
  %s8 = inlined_call_operand.hbm [shape: f32[9,32], index: 8, kind: input, shape index: {}]
  %s9 = inlined_call_operand.hbm [shape: f32[1,64], index: 9, kind: input, shape index: {}]
  %s10 = inlined_call_operand.hbm [shape: f32[2,8,32], index: 10, kind: output, shape index: {}]
  %s11 = sld [smem:[#allocation0]]
  $region117: #{tpu_custom_call.1} parent=0
    _
  %s13 = ssub.s32 1, %s11
  %s14 = scalar_select 0, %s13, %s11
  $region1: #{tpu_custom_call.1} parent=0
    #allocation4 [shape = 'u8[8192]{0}', space=vmem, size = 0x2000, scoped, tag = 'input window, operand 0']
    #allocation5 [shape = 's32[2]{0}', space=sflag, size = 0x8, scoped, tag = 'scoped memory for tpu_custom_call.1']
    #allocation6 [shape = 's32[2]{0}', space=sflag, size = 0x8, scoped, tag = 'scoped memory for tpu_custom_call.1']
    #allocation7 [shape = 'u8[4096]{0}', space=vmem, size = 0x1000, scoped, tag = 'input window, operand 1']
    #allocation8 [shape = 's32[2]{0}', space=sflag, size = 0x8, scoped, tag = 'scoped memory for tpu_custom_call.1']
    #allocation9 [shape = 'u8[8192]{0}', space=vmem, size = 0x2000, scoped, tag = 'input window, operand 2, single buffered']
    #allocation10 [shape = 'u8[8192]{0}', space=vmem, size = 0x2000, scoped, tag = 'input window, operand 3, single buffered']
    #allocation11 [shape = 's32[1]{0}', space=sflag, size = 0x4, scoped, tag = 'scoped memory for tpu_custom_call.1']
    #allocation12 [shape = 'u8[8192]{0}', space=vmem, size = 0x2000, scoped, tag = 'input window, operand 4, single buffered']
    #allocation13 [shape = 'u8[8192]{0}', space=vmem, size = 0x2000, scoped, tag = 'input window, operand 5, single buffered']
    #allocation14 [shape = 's32[1]{0}', space=sflag, size = 0x4, scoped, tag = 'scoped memory for tpu_custom_call.1']
    #allocation15 [shape = 'u8[8192]{0}', space=vmem, size = 0x2000, scoped, tag = 'input window, operand 6, single buffered']
    #allocation16 [shape = 'u8[16384]{0}', space=vmem, size = 0x4000, scoped, tag = 'input window, operand 7, single buffered']
    #allocation17 [shape = 's32[1]{0}', space=sflag, size = 0x4, scoped, tag = 'scoped memory for tpu_custom_call.1']
    #allocation18 [shape = 'u8[8192]{0}', space=vmem, size = 0x2000, scoped, tag = 'input window, operand 8, single buffered']
    #allocation19 [shape = 'u8[512]{0}', space=vmem, size = 0x400, scoped, tag = 'input window, operand 9, single buffered']
    #allocation20 [shape = 's32[1]{0}', space=sflag, size = 0x4, scoped, tag = 'scoped memory for tpu_custom_call.1']
    #allocation21 [shape = 'u8[8192]{0}', space=vmem, size = 0x2000, scoped, tag = 'output window, operand 0']
    %15 = vsyncpa [#allocation5], 0
    %s16 = scalar_lea.sflag [#allocation5], 1
    %17 = vsyncpa %s16, 0
    %18 = vsyncpa [#allocation8], 0
    %s19 = scalar_lea.sflag [#allocation8], 1
    %20 = vsyncpa %s19, 0
    %21 = vsyncpa [#allocation11], 0
    %22 = vsyncpa [#allocation14], 0
    %23 = vsyncpa [#allocation17], 0
    %24 = vsyncpa [#allocation20], 0
    %25 = vsyncpa [#allocation6], 0
    %s26 = scalar_lea.sflag [#allocation6], 1
    %27 = vsyncpa %s26, 0
    loop: start=0, step=1, limit=4
    $region2: #{tpu_custom_call.1} parent=1 // loop_pre_header
      _
    $region3: #{tpu_custom_call.1} parent=1 // loop_header
      %s29 = sphi 0, %s33
      %p30 = scmp.ge.s32.totalorder %s29, 4
      %s36 = sphi 0, %s48
      %s37 = sphi 0, %s44
      %s38 = sphi 0, %s36
      %s39 = sphi 0, %s37
      %s40 = sphi 0, %s38
      %s41 = sphi 0, %s39
      %s53 = sphi 0, %s55
      %s56 = sphi 0, %s53
      %s57 = sphi 0, %s56
      %s73 = sphi 0, %s57
      %s79 = sphi 0, %s81
      %s82 = sphi 0, %s79
      %s83 = sphi 0, %s82
      %s99 = sphi 0, %s83
      %s103 = sphi 0, %s103
      %s105 = sphi 0, %s103
      %s106 = sphi 0, %s105
      %s120 = sphi 0, %s106
      %s124 = sphi 0, %s124
      %s126 = sphi 0, %s124
      %s127 = sphi 0, %s126
      %s141 = sphi 0, %s127
      %s145 = sphi 0, %s145
      %s147 = sphi 0, %s145
      %s148 = sphi 0, %s147
      %s162 = sphi 0, %s148
      %s166 = sphi 0, %s166
      %s168 = sphi 0, %s166
      %s169 = sphi 0, %s168
      %s183 = sphi 0, %s169
      %s187 = sphi 0, %s187
      %s189 = sphi 0, %s187
      %s190 = sphi 0, %s189
      %s204 = sphi 0, %s190
      %s208 = sphi 0, %s208
      %s210 = sphi 0, %s208
      %s211 = sphi 0, %s210
      %s225 = sphi 0, %s211
      %s229 = sphi 0, %s229
      %s231 = sphi 0, %s229
      %s232 = sphi 0, %s231
      %s246 = sphi 0, %s232
      %s250 = sphi 0, %s250
      %s252 = sphi 0, %s250
      %s253 = sphi 0, %s252
      %s267 = sphi 0, %s253
      %s275 = sphi 0, %s277
      %s278 = sphi 0, %s275
      %s279 = sphi 0, %s278
      %s295 = sphi 0, %s279
    $region4: #{tpu_custom_call.1} parent=1 // loop_header_branch
      %32 = sbr.rel (%p30) target = $region8
    $region5: #{tpu_custom_call.1} parent=1 // loop_body
      %s34 = ssub.s32 %s29, 1
      %s35 = ssub.s32 %s29, 2
      %s42 = sadd.s32 1, %s37
      %p43 = scmp.ge.s32.totalorder %s42, 1
      %s44 = scalar_select %p43, 0, %s42
      %s45 = sadd.s32 1, %s36
      %s46 = scalar_select %p43, %s45, %s36
      %p47 = scmp.ge.s32.totalorder %s46, 2
      %s48 = scalar_select %p47, 0, %s46
      %s49 = ssub.s32 %s36, %s48
      %s50 = ssub.s32 %s37, %s44
      %s51 = sor.u32 %s49, %s50
      %p52 = scmp.eq.s32.totalorder %s51, 0
      %s54 = sadd.s32 %s53, 1
      %s55 = scalar_select %p52, %s53, %s54
      %p58 = pneg %p52
      %p59 = scmp.eq.s32.totalorder %s29, 1
      %p60 = por %p58, %p59
      %p61 = scmp.ne.s32.totalorder %s53, %s56
      %p62 = scmp.eq.s32.totalorder %s29, 0
      %p63 = por %p61, %p62
      %p64 = scmp.ne.s32.totalorder %s53, %s56
      %p65 = scmp.eq.s32.totalorder %s34, 1
      %p66 = por %p64, %p65
      %p67 = scmp.ne.s32.totalorder %s56, %s57
      %p68 = scmp.eq.s32.totalorder %s34, 0
      %p69 = por %p67, %p68
      %p70 = scmp.ne.s32.totalorder %s56, %s57
      %p71 = scmp.eq.s32.totalorder %s35, 1
      %p72 = por %p70, %p71
      %p74 = scmp.ne.s32.totalorder %s57, %s73
      %p75 = scmp.eq.s32.totalorder %s35, 0
      %p76 = por %p74, %p75
      %s77 = ssub.s32 %s36, %s48
      %p78 = scmp.eq.s32.totalorder %s77, 0
      %s80 = sadd.s32 %s79, 1
      %s81 = scalar_select %p78, %s79, %s80
      %p84 = pneg %p78
      %p85 = scmp.eq.s32.totalorder %s29, 1
      %p86 = por %p84, %p85
      %p87 = scmp.ne.s32.totalorder %s79, %s82
      %p88 = scmp.eq.s32.totalorder %s29, 0
      %p89 = por %p87, %p88
      %p90 = scmp.ne.s32.totalorder %s79, %s82
      %p91 = scmp.eq.s32.totalorder %s34, 1
      %p92 = por %p90, %p91
      %p93 = scmp.ne.s32.totalorder %s82, %s83
      %p94 = scmp.eq.s32.totalorder %s34, 0
      %p95 = por %p93, %p94
      %p96 = scmp.ne.s32.totalorder %s82, %s83
      %p97 = scmp.eq.s32.totalorder %s35, 1
      %p98 = por %p96, %p97
      %p100 = scmp.ne.s32.totalorder %s83, %s99
      %p101 = scmp.eq.s32.totalorder %s35, 0
      %p102 = por %p100, %p101
      %s104 = sadd.s32 %s103, 1
      %p107 = scmp.eq.s32.totalorder %s29, 1
      %p108 = scmp.ne.s32.totalorder %s103, %s105
      %p109 = scmp.eq.s32.totalorder %s29, 0
      %p110 = por %p108, %p109
      %p111 = scmp.ne.s32.totalorder %s103, %s105
      %p112 = scmp.eq.s32.totalorder %s34, 1
      %p113 = por %p111, %p112
      %p114 = scmp.ne.s32.totalorder %s105, %s106
      %p115 = scmp.eq.s32.totalorder %s34, 0
      %p116 = por %p114, %p115
      %p117 = scmp.ne.s32.totalorder %s105, %s106
      %p118 = scmp.eq.s32.totalorder %s35, 1
      %p119 = por %p117, %p118
      %p121 = scmp.ne.s32.totalorder %s106, %s120
      %p122 = scmp.eq.s32.totalorder %s35, 0
      %p123 = por %p121, %p122
      %s125 = sadd.s32 %s124, 1
      %p128 = scmp.eq.s32.totalorder %s29, 1
      %p129 = scmp.ne.s32.totalorder %s124, %s126
      %p130 = scmp.eq.s32.totalorder %s29, 0
      %p131 = por %p129, %p130
      %p132 = scmp.ne.s32.totalorder %s124, %s126
      %p133 = scmp.eq.s32.totalorder %s34, 1
      %p134 = por %p132, %p133
      %p135 = scmp.ne.s32.totalorder %s126, %s127
      %p136 = scmp.eq.s32.totalorder %s34, 0
      %p137 = por %p135, %p136
      %p138 = scmp.ne.s32.totalorder %s126, %s127
      %p139 = scmp.eq.s32.totalorder %s35, 1
      %p140 = por %p138, %p139
      %p142 = scmp.ne.s32.totalorder %s127, %s141
      %p143 = scmp.eq.s32.totalorder %s35, 0
      %p144 = por %p142, %p143
      %s146 = sadd.s32 %s145, 1
      %p149 = scmp.eq.s32.totalorder %s29, 1
      %p150 = scmp.ne.s32.totalorder %s145, %s147
      %p151 = scmp.eq.s32.totalorder %s29, 0
      %p152 = por %p150, %p151
      %p153 = scmp.ne.s32.totalorder %s145, %s147
      %p154 = scmp.eq.s32.totalorder %s34, 1
      %p155 = por %p153, %p154
      %p156 = scmp.ne.s32.totalorder %s147, %s148
      %p157 = scmp.eq.s32.totalorder %s34, 0
      %p158 = por %p156, %p157
      %p159 = scmp.ne.s32.totalorder %s147, %s148
      %p160 = scmp.eq.s32.totalorder %s35, 1
      %p161 = por %p159, %p160
      %p163 = scmp.ne.s32.totalorder %s148, %s162
      %p164 = scmp.eq.s32.totalorder %s35, 0
      %p165 = por %p163, %p164
      %s167 = sadd.s32 %s166, 1
      %p170 = scmp.eq.s32.totalorder %s29, 1
      %p171 = scmp.ne.s32.totalorder %s166, %s168
      %p172 = scmp.eq.s32.totalorder %s29, 0
      %p173 = por %p171, %p172
      %p174 = scmp.ne.s32.totalorder %s166, %s168
      %p175 = scmp.eq.s32.totalorder %s34, 1
      %p176 = por %p174, %p175
      %p177 = scmp.ne.s32.totalorder %s168, %s169
      %p178 = scmp.eq.s32.totalorder %s34, 0
      %p179 = por %p177, %p178
      %p180 = scmp.ne.s32.totalorder %s168, %s169
      %p181 = scmp.eq.s32.totalorder %s35, 1
      %p182 = por %p180, %p181
      %p184 = scmp.ne.s32.totalorder %s169, %s183
      %p185 = scmp.eq.s32.totalorder %s35, 0
      %p186 = por %p184, %p185
      %s188 = sadd.s32 %s187, 1
      %p191 = scmp.eq.s32.totalorder %s29, 1
      %p192 = scmp.ne.s32.totalorder %s187, %s189
      %p193 = scmp.eq.s32.totalorder %s29, 0
      %p194 = por %p192, %p193
      %p195 = scmp.ne.s32.totalorder %s187, %s189
      %p196 = scmp.eq.s32.totalorder %s34, 1
      %p197 = por %p195, %p196
      %p198 = scmp.ne.s32.totalorder %s189, %s190
      %p199 = scmp.eq.s32.totalorder %s34, 0
      %p200 = por %p198, %p199
      %p201 = scmp.ne.s32.totalorder %s189, %s190
      %p202 = scmp.eq.s32.totalorder %s35, 1
      %p203 = por %p201, %p202
      %p205 = scmp.ne.s32.totalorder %s190, %s204
      %p206 = scmp.eq.s32.totalorder %s35, 0
      %p207 = por %p205, %p206
      %s209 = sadd.s32 %s208, 1
      %p212 = scmp.eq.s32.totalorder %s29, 1
      %p213 = scmp.ne.s32.totalorder %s208, %s210
      %p214 = scmp.eq.s32.totalorder %s29, 0
      %p215 = por %p213, %p214
      %p216 = scmp.ne.s32.totalorder %s208, %s210
      %p217 = scmp.eq.s32.totalorder %s34, 1
      %p218 = por %p216, %p217
      %p219 = scmp.ne.s32.totalorder %s210, %s211
      %p220 = scmp.eq.s32.totalorder %s34, 0
      %p221 = por %p219, %p220
      %p222 = scmp.ne.s32.totalorder %s210, %s211
      %p223 = scmp.eq.s32.totalorder %s35, 1
      %p224 = por %p222, %p223
      %p226 = scmp.ne.s32.totalorder %s211, %s225
      %p227 = scmp.eq.s32.totalorder %s35, 0
      %p228 = por %p226, %p227
      %s230 = sadd.s32 %s229, 1
      %p233 = scmp.eq.s32.totalorder %s29, 1
      %p234 = scmp.ne.s32.totalorder %s229, %s231
      %p235 = scmp.eq.s32.totalorder %s29, 0
      %p236 = por %p234, %p235
      %p237 = scmp.ne.s32.totalorder %s229, %s231
      %p238 = scmp.eq.s32.totalorder %s34, 1
      %p239 = por %p237, %p238
      %p240 = scmp.ne.s32.totalorder %s231, %s232
      %p241 = scmp.eq.s32.totalorder %s34, 0
      %p242 = por %p240, %p241
      %p243 = scmp.ne.s32.totalorder %s231, %s232
      %p244 = scmp.eq.s32.totalorder %s35, 1
      %p245 = por %p243, %p244
      %p247 = scmp.ne.s32.totalorder %s232, %s246
      %p248 = scmp.eq.s32.totalorder %s35, 0
      %p249 = por %p247, %p248
      %s251 = sadd.s32 %s250, 1
      %p254 = scmp.eq.s32.totalorder %s29, 1
      %p255 = scmp.ne.s32.totalorder %s250, %s252
      %p256 = scmp.eq.s32.totalorder %s29, 0
      %p257 = por %p255, %p256
      %p258 = scmp.ne.s32.totalorder %s250, %s252
      %p259 = scmp.eq.s32.totalorder %s34, 1
      %p260 = por %p258, %p259
      %p261 = scmp.ne.s32.totalorder %s252, %s253
      %p262 = scmp.eq.s32.totalorder %s34, 0
      %p263 = por %p261, %p262
      %p264 = scmp.ne.s32.totalorder %s252, %s253
      %p265 = scmp.eq.s32.totalorder %s35, 1
      %p266 = por %p264, %p265
      %p268 = scmp.ne.s32.totalorder %s253, %s267
      %p269 = scmp.eq.s32.totalorder %s35, 0
      %p270 = por %p268, %p269
      %s271 = ssub.s32 %s36, %s48
      %s272 = ssub.s32 %s37, %s44
      %s273 = sor.u32 %s271, %s272
      %p274 = scmp.eq.s32.totalorder %s273, 0
      %s276 = sadd.s32 %s275, 1
      %s277 = scalar_select %p274, %s275, %s276
      %p280 = pneg %p274
      %p281 = scmp.eq.s32.totalorder %s29, 1
      %p282 = por %p280, %p281
      %p283 = scmp.ne.s32.totalorder %s275, %s278
      %p284 = scmp.eq.s32.totalorder %s29, 0
      %p285 = por %p283, %p284
      %p286 = scmp.ne.s32.totalorder %s275, %s278
      %p287 = scmp.eq.s32.totalorder %s34, 1
      %p288 = por %p286, %p287
      %p289 = scmp.ne.s32.totalorder %s278, %s279
      %p290 = scmp.eq.s32.totalorder %s34, 0
      %p291 = por %p289, %p290
      %p292 = scmp.ne.s32.totalorder %s278, %s279
      %p293 = scmp.eq.s32.totalorder %s35, 1
      %p294 = por %p292, %p293
      %p296 = scmp.ne.s32.totalorder %s279, %s295
      %p297 = scmp.eq.s32.totalorder %s35, 0
      %p298 = por %p296, %p297
      %p299 = scmp.le.s32.totalorder 1, %s29
      %p300 = scmp.lt.s32.totalorder %s29, 3
      %p301 = pnand %p299, %p300
      %p302 = pneg %p301
      // Predicated region
      $region9: #{tpu_custom_call.1} parent=5 // pred_check
        _
      $region10: #{tpu_custom_call.1} parent=5 // pred_check_branch
        %304 = sbr.rel (%p301) target = $region12
      $region11: #{tpu_custom_call.1} parent=5 // pred_region
        %s305 = ssub.s32 %s29, 1
        // Predicated region
        $region13: #{tpu_custom_call.1} parent=11 // pred_check
          %p306 = pneg %p116
        $region14: #{tpu_custom_call.1} parent=11 // pred_check_branch
          %308 = sbr.rel (%p306) target = $region16
        $region15: #{tpu_custom_call.1} parent=11 // pred_region
          %s310 = ssub.s32 256, 256
          %311 = vsyncadd [#allocation8], %s310
          %s312 = sshll.u32 [#allocation9], 4
          %s313 = int_to_ptr.vmem [resolvable:$true] %s312
          %318 = dma.hbm_to_vmem [thread:$0]  %s2, 256, %s313, [#allocation8], 64, 64, 4
        $region16: #{tpu_custom_call.1} parent=11 // pred_fallthru
          _
        // Predicated region
        $region17: #{tpu_custom_call.1} parent=11 // pred_check
          %p319 = pneg %p137
        $region18: #{tpu_custom_call.1} parent=11 // pred_check_branch
          %321 = sbr.rel (%p319) target = $region20
        $region19: #{tpu_custom_call.1} parent=11 // pred_region
          %s323 = ssub.s32 256, 256
          %324 = vsyncadd [#allocation11], %s323
          %s325 = sshll.u32 [#allocation10], 4
          %s326 = int_to_ptr.vmem [resolvable:$true] %s325
          %331 = dma.hbm_to_vmem [thread:$0]  %s3, 256, %s326, [#allocation11], 64, 64, 4
        $region20: #{tpu_custom_call.1} parent=11 // pred_fallthru
          _
        // Predicated region
        $region21: #{tpu_custom_call.1} parent=11 // pred_check
          %p332 = pneg %p158
        $region22: #{tpu_custom_call.1} parent=11 // pred_check_branch
          %334 = sbr.rel (%p332) target = $region24
        $region23: #{tpu_custom_call.1} parent=11 // pred_region
          %s336 = ssub.s32 256, 256
          %337 = vsyncadd [#allocation11], %s336
          %s338 = sshll.u32 [#allocation12], 4
          %s339 = int_to_ptr.vmem [resolvable:$true] %s338
          %344 = dma.hbm_to_vmem [thread:$0]  %s4, 256, %s339, [#allocation11], 64, 64, 4
        $region24: #{tpu_custom_call.1} parent=11 // pred_fallthru
          _
        // Predicated region
        $region25: #{tpu_custom_call.1} parent=11 // pred_check
          %p345 = pneg %p179
        $region26: #{tpu_custom_call.1} parent=11 // pred_check_branch
          %347 = sbr.rel (%p345) target = $region28
        $region27: #{tpu_custom_call.1} parent=11 // pred_region
          %s349 = ssub.s32 256, 256
          %350 = vsyncadd [#allocation14], %s349
          %s351 = sshll.u32 [#allocation13], 4
          %s352 = int_to_ptr.vmem [resolvable:$true] %s351
          %357 = dma.hbm_to_vmem [thread:$0]  %s5, 256, %s352, [#allocation14], 64, 64, 4
        $region28: #{tpu_custom_call.1} parent=11 // pred_fallthru
          _
        // Predicated region
        $region29: #{tpu_custom_call.1} parent=11 // pred_check
          %p358 = pneg %p200
        $region30: #{tpu_custom_call.1} parent=11 // pred_check_branch
          %360 = sbr.rel (%p358) target = $region32
        $region31: #{tpu_custom_call.1} parent=11 // pred_region
          %s362 = ssub.s32 256, 256
          %363 = vsyncadd [#allocation14], %s362
          %s364 = sshll.u32 [#allocation15], 4
          %s365 = int_to_ptr.vmem [resolvable:$true] %s364
          %370 = dma.hbm_to_vmem [thread:$0]  %s6, 256, %s365, [#allocation14], 64, 64, 4
        $region32: #{tpu_custom_call.1} parent=11 // pred_fallthru
          _
        // Predicated region
        $region33: #{tpu_custom_call.1} parent=11 // pred_check
          %p371 = pneg %p221
        $region34: #{tpu_custom_call.1} parent=11 // pred_check_branch
          %373 = sbr.rel (%p371) target = $region36
        $region35: #{tpu_custom_call.1} parent=11 // pred_region
          %s375 = ssub.s32 512, 512
          %376 = vsyncadd [#allocation17], %s375
          %s377 = sshll.u32 [#allocation16], 4
          %s378 = int_to_ptr.vmem [resolvable:$true] %s377
          %383 = dma.hbm_to_vmem [thread:$0]  %s7, 512, %s378, [#allocation17], 64, 64, 4
        $region36: #{tpu_custom_call.1} parent=11 // pred_fallthru
          _
        // Predicated region
        $region37: #{tpu_custom_call.1} parent=11 // pred_check
          %p384 = pneg %p242
        $region38: #{tpu_custom_call.1} parent=11 // pred_check_branch
          %386 = sbr.rel (%p384) target = $region40
        $region39: #{tpu_custom_call.1} parent=11 // pred_region
          %s388 = ssub.s32 256, 256
          %389 = vsyncadd [#allocation17], %s388
          %s390 = sshll.u32 [#allocation18], 4
          %s391 = int_to_ptr.vmem [resolvable:$true] %s390
          %396 = dma.hbm_to_vmem [thread:$0]  %s8, 256, %s391, [#allocation17], 128, 128, 8
        $region40: #{tpu_custom_call.1} parent=11 // pred_fallthru
          _
        // Predicated region
        $region41: #{tpu_custom_call.1} parent=11 // pred_check
          %p397 = pneg %p263
        $region42: #{tpu_custom_call.1} parent=11 // pred_check_branch
          %399 = sbr.rel (%p397) target = $region44
        $region43: #{tpu_custom_call.1} parent=11 // pred_region
          %s401 = ssub.s32 16, 16
          %402 = vsyncadd [#allocation20], %s401
          %s404 = sshll.u32 [#allocation19], 4
          %s405 = int_to_ptr.vmem [resolvable:$true] %s404
          %407 = dma.hbm_to_vmem [thread:$0]  %s9, 16, %s405, [#allocation20]
        $region44: #{tpu_custom_call.1} parent=11 // pred_fallthru
          _
      $region12: #{tpu_custom_call.1} parent=5 // pred_fallthru
        _
      %p408 = scmp.lt.s32.totalorder %s29, 2
      // Predicated region
      $region45: #{tpu_custom_call.1} parent=5 // pred_check
        %p409 = pneg %p408
      $region46: #{tpu_custom_call.1} parent=5 // pred_check_branch
        %411 = sbr.rel (%p409) target = $region48
      $region47: #{tpu_custom_call.1} parent=5 // pred_region
        // Predicated region
        $region49: #{tpu_custom_call.1} parent=47 // pred_check
          %p412 = pneg %p63
        $region50: #{tpu_custom_call.1} parent=47 // pred_check_branch
          %414 = sbr.rel (%p412) target = $region52
        $region51: #{tpu_custom_call.1} parent=47 // pred_region
          %s415 = sand.u32 %s53, 1
          %s416 = scalar_lea.sflag [#allocation5], %s415
          %s417 = sand.u32 %s53, 1
          %s418 = smul.addr %s417, 8
          %s419 = scalar_lea.vmem [#allocation4], %s418
          %s421 = ssub.s32 128, 128
          %422 = vsyncadd %s416, %s421
          %s423 = sadd.s32 %s37, %s36
          %s424 = smul.addr %s423, 128
          %s425 = scalar_lea.hbm %s0, %s424
          %s427 = sshll.u32 %s419, 4
          %s428 = int_to_ptr.vmem [resolvable:$true] %s427
          %430 = dma.hbm_to_vmem [thread:$0]  %s425, 128, %s428, %s416
        $region52: #{tpu_custom_call.1} parent=47 // pred_fallthru
          _
        // Predicated region
        $region53: #{tpu_custom_call.1} parent=47 // pred_check
          %p431 = pneg %p89
        $region54: #{tpu_custom_call.1} parent=47 // pred_check_branch
          %433 = sbr.rel (%p431) target = $region56
        $region55: #{tpu_custom_call.1} parent=47 // pred_region
          %s434 = sand.u32 %s29, 1
          %s435 = scalar_lea.sflag [#allocation8], %s434
          %s436 = sand.u32 %s79, 1
          %s437 = smul.addr %s436, 4
          %s438 = scalar_lea.vmem [#allocation7], %s437
          %s440 = ssub.s32 64, 64
          %441 = vsyncadd %s435, %s440
          %s442 = smul.addr %s36, 64
          %s443 = scalar_lea.hbm %s1, %s442
          %s445 = sshll.u32 %s438, 4
          %s446 = int_to_ptr.vmem [resolvable:$true] %s445
          %448 = dma.hbm_to_vmem [thread:$0]  %s443, 64, %s446, %s435
        $region56: #{tpu_custom_call.1} parent=47 // pred_fallthru
          _
      $region48: #{tpu_custom_call.1} parent=5 // pred_fallthru
        _
      %p449 = scmp.le.s32.totalorder 1, %s29
      %p450 = scmp.lt.s32.totalorder %s29, 3
      %p451 = pnand %p449, %p450
      %p452 = pneg %p451
      // Predicated region
      $region57: #{tpu_custom_call.1} parent=5 // pred_check
        _
      $region58: #{tpu_custom_call.1} parent=5 // pred_check_branch
        %454 = sbr.rel (%p451) target = $region60
      $region59: #{tpu_custom_call.1} parent=5 // pred_region
        %s455 = ssub.s32 %s29, 1
        %s456 = sand.u32 %s56, 1
        %s457 = scalar_lea.sflag [#allocation5], %s456
        %s458 = sand.u32 %s56, 1
        %s459 = smul.addr %s458, 8
        %s460 = scalar_lea.vmem [#allocation4], %s459
        // Predicated region
        $region61: #{tpu_custom_call.1} parent=59 // pred_check
          %p461 = pneg %p69
        $region62: #{tpu_custom_call.1} parent=59 // pred_check_branch
          %463 = sbr.rel (%p461) target = $region64
        $region63: #{tpu_custom_call.1} parent=59 // pred_region
          %464 = dma.done %s457, 128
        $region64: #{tpu_custom_call.1} parent=59 // pred_fallthru
          _
        %s465 = sand.u32 %s34, 1
        %s466 = scalar_lea.sflag [#allocation8], %s465
        %s467 = sand.u32 %s82, 1
        %s468 = smul.addr %s467, 4
        %s469 = scalar_lea.vmem [#allocation7], %s468
        // Predicated region
        $region65: #{tpu_custom_call.1} parent=59 // pred_check
          %p470 = pneg %p95
        $region66: #{tpu_custom_call.1} parent=59 // pred_check_branch
          %472 = sbr.rel (%p470) target = $region68
        $region67: #{tpu_custom_call.1} parent=59 // pred_region
          %473 = dma.done %s466, 64
        $region68: #{tpu_custom_call.1} parent=59 // pred_fallthru
          _
        // Predicated region
        $region69: #{tpu_custom_call.1} parent=59 // pred_check
          %p474 = pneg %p116
        $region70: #{tpu_custom_call.1} parent=59 // pred_check_branch
          %476 = sbr.rel (%p474) target = $region72
        $region71: #{tpu_custom_call.1} parent=59 // pred_region
          %477 = dma.done [#allocation8], 256
        $region72: #{tpu_custom_call.1} parent=59 // pred_fallthru
          _
        // Predicated region
        $region73: #{tpu_custom_call.1} parent=59 // pred_check
          %p478 = pneg %p137
        $region74: #{tpu_custom_call.1} parent=59 // pred_check_branch
          %480 = sbr.rel (%p478) target = $region76
        $region75: #{tpu_custom_call.1} parent=59 // pred_region
          %481 = dma.done [#allocation11], 256
        $region76: #{tpu_custom_call.1} parent=59 // pred_fallthru
          _
        // Predicated region
        $region77: #{tpu_custom_call.1} parent=59 // pred_check
          %p482 = pneg %p158
        $region78: #{tpu_custom_call.1} parent=59 // pred_check_branch
          %484 = sbr.rel (%p482) target = $region80
        $region79: #{tpu_custom_call.1} parent=59 // pred_region
          %485 = dma.done [#allocation11], 256
        $region80: #{tpu_custom_call.1} parent=59 // pred_fallthru
          _
        // Predicated region
        $region81: #{tpu_custom_call.1} parent=59 // pred_check
          %p486 = pneg %p179
        $region82: #{tpu_custom_call.1} parent=59 // pred_check_branch
          %488 = sbr.rel (%p486) target = $region84
        $region83: #{tpu_custom_call.1} parent=59 // pred_region
          %489 = dma.done [#allocation14], 256
        $region84: #{tpu_custom_call.1} parent=59 // pred_fallthru
          _
        // Predicated region
        $region85: #{tpu_custom_call.1} parent=59 // pred_check
          %p490 = pneg %p200
        $region86: #{tpu_custom_call.1} parent=59 // pred_check_branch
          %492 = sbr.rel (%p490) target = $region88
        $region87: #{tpu_custom_call.1} parent=59 // pred_region
          %493 = dma.done [#allocation14], 256
        $region88: #{tpu_custom_call.1} parent=59 // pred_fallthru
          _
        // Predicated region
        $region89: #{tpu_custom_call.1} parent=59 // pred_check
          %p494 = pneg %p221
        $region90: #{tpu_custom_call.1} parent=59 // pred_check_branch
          %496 = sbr.rel (%p494) target = $region92
        $region91: #{tpu_custom_call.1} parent=59 // pred_region
          %497 = dma.done [#allocation17], 512
        $region92: #{tpu_custom_call.1} parent=59 // pred_fallthru
          _
        // Predicated region
        $region93: #{tpu_custom_call.1} parent=59 // pred_check
          %p498 = pneg %p242
        $region94: #{tpu_custom_call.1} parent=59 // pred_check_branch
          %500 = sbr.rel (%p498) target = $region96
        $region95: #{tpu_custom_call.1} parent=59 // pred_region
          %501 = dma.done [#allocation17], 256
        $region96: #{tpu_custom_call.1} parent=59 // pred_fallthru
          _
        // Predicated region
        $region97: #{tpu_custom_call.1} parent=59 // pred_check
          %p502 = pneg %p263
        $region98: #{tpu_custom_call.1} parent=59 // pred_check_branch
          %504 = sbr.rel (%p502) target = $region100
        $region99: #{tpu_custom_call.1} parent=59 // pred_region
          %505 = dma.done [#allocation20], 16
        $region100: #{tpu_custom_call.1} parent=59 // pred_fallthru
          _
        %s506 = sand.u32 %s56, 1
        %s507 = scalar_lea.sflag [#allocation5], %s506
        %s508 = sand.u32 %s56, 1
        %s509 = smul.addr %s508, 8
        %s510 = scalar_lea.vmem [#allocation4], %s509
        %p511 = pneg %p69
        %p512 = pneg %p66
        %s513 = sand.u32 %s34, 1
        %s514 = scalar_lea.sflag [#allocation8], %s513
        %s515 = sand.u32 %s82, 1
        %s516 = smul.addr %s515, 4
        %s517 = scalar_lea.vmem [#allocation7], %s516
        %p518 = pneg %p95
        %p519 = pneg %p92
        %p520 = pneg %p116
        %p521 = pneg %p113
        %p522 = pneg %p137
        %p523 = pneg %p134
        %p524 = pneg %p158
        %p525 = pneg %p155
        %p526 = pneg %p179
        %p527 = pneg %p176
        %p528 = pneg %p200
        %p529 = pneg %p197
        %p530 = pneg %p221
        %p531 = pneg %p218
        %p532 = pneg %p242
        %p533 = pneg %p239
        %p534 = pneg %p263
        %p535 = pneg %p260
        %p536 = pneg %p291
        %p537 = pneg %p288
        %s538 = sand.u32 %s278, 1
        %s539 = scalar_lea.sflag [#allocation6], %s538
        %s540 = sand.u32 %s278, 1
        %s541 = smul.addr %s540, 8
        %s542 = scalar_lea.vmem [#allocation21], %s541
        %v544 = vld [vmem:[#allocation18] sm:$0xff]
        %v545 = vld [vmem:[#allocation18 + $0x8] sm:$0x1]
        %p546 = scmp.eq.s32.totalorder %s39, 0
        // Predicated region
        $region101: #{tpu_custom_call.1} parent=59 // pred_check
          %p547 = pneg %p546
        $region102: #{tpu_custom_call.1} parent=59 // pred_check_branch
          %549 = sbr.rel (%p547) target = $region104
        $region103: #{tpu_custom_call.1} parent=59 // pred_region
          %v550 = vld [vmem:[%s469] sm:$0xf]
          %v551 = vld [vmem:[#allocation10] sm:$0xf]
          %v552 = vld [vmem:[#allocation10 + $0x4] sm:$0xf]
          %v553 = vld [vmem:[#allocation10 + $0x8] sm:$0xf]
          %v554 = vld [vmem:[#allocation10 + $0xc] sm:$0xf]
          %v555 = vlaneseq
          %v556 = vshrl.u32 %v555, 7
          %v557 = vsub.s32 1, %v556
          %v558 = vrot.slane %v544, %v557
          %v563 = vunpack.c.l.b16 %v551
          %v564 = vunpack.c.l.b16 %v552
          %v565 = vunpack.c.l.b16 %v553
          %v566 = vunpack.c.l.b16 %v554
          %v567 = vpack.c.b16 %v564, %v563
          %v568 = vpack.c.b16 %v566, %v565
          %vm571 = vcmask 261120
          %v573 = vsel %vm571, %v550, 0
          %575 = vmatprep.subr.bf16.mxu0 0
          %576 = vmatpush1.bf16.msra.mxu0 %v567
          %577 = vmatprep.subr.bf16.mxu0 0
          %578 = vmatpush1.bf16.msra.mxu0 %v568
          %579 = vmatprep.subr.bf16.mxu0 0
          %580 = vmatpush1.bf16.msra.mxu0 0
          %581 = vmatprep.subr.bf16.mxu0 0
          %582 = vmatpush1.bf16.msra.mxu0 0
          %583 = vmatprep.subr.bf16.mxu0 0
          %584 = vmatpush1.bf16.msra.mxu0 0
          %585 = vmatprep.subr.bf16.mxu0 0
          %586 = vmatpush1.bf16.msra.mxu0 0
          %587 = vmatprep.subr.bf16.mxu0 0
          %588 = vmatpush1.bf16.msra.mxu0 0
          %589 = vmatprep.subr.bf16.mxu0 0
          %590 = vmatpush1.bf16.msra.mxu0 0
          %591 = vmatprep.subr.bf16.mxu0 0
          %592 = vmatpush1.bf16.msra.mxu0 0
          %593 = vmatprep.subr.bf16.mxu0 0
          %594 = vmatpush1.bf16.msra.mxu0 0
          %595 = vmatprep.subr.bf16.mxu0 0
          %596 = vmatpush1.bf16.msra.mxu0 0
          %597 = vmatprep.subr.bf16.mxu0 0
          %598 = vmatpush1.bf16.msra.mxu0 0
          %599 = vmatprep.subr.bf16.mxu0 0
          %600 = vmatpush1.bf16.msra.mxu0 0
          %601 = vmatprep.subr.bf16.mxu0 0
          %602 = vmatpush1.bf16.msra.mxu0 0
          %603 = vmatprep.subr.bf16.mxu0 0
          %604 = vmatpush1.bf16.msra.mxu0 0
          %605 = vmatprep.subr.bf16.mxu0 0
          %606 = vmatpush1.bf16.msra.mxu0 0
          %607 = vmatprep.mubr.bf16.mxu0 0
          %608 = vmatmul.mubr.bf16.gmra.mrb[0].mxu0 %v573
          %v609 = vpop.f32.mrb[0].mxu0
          %v610 = vadd.f32 %v558, %v609
          %v611 = vpop.f32.mrb[0].mxu0
          %v612 = vpop.f32.mrb[0].mxu0
          %v613 = vpop.f32.mrb[0].mxu0
          %614 = vdwg.mxu0
          %v615 = vld [vmem:[#allocation12] sm:$0xf]
          %v616 = vld [vmem:[#allocation12 + $0x4] sm:$0xf]
          %v617 = vld [vmem:[#allocation12 + $0x8] sm:$0xf]
          %v618 = vld [vmem:[#allocation12 + $0xc] sm:$0xf]
          %v619 = vlaneseq
          %v620 = vshrl.u32 %v619, 7
          %v621 = vsub.s32 2, %v620
          %v622 = vrot.slane %v544, %v621
          %v627 = vunpack.c.l.b16 %v615
          %v628 = vunpack.c.l.b16 %v616
          %v629 = vunpack.c.l.b16 %v617
          %v630 = vunpack.c.l.b16 %v618
          %v631 = vpack.c.b16 %v628, %v627
          %v632 = vpack.c.b16 %v630, %v629
          %635 = vmatprep.subr.bf16.mxu0 0
          %636 = vmatpush1.bf16.msra.mxu0 %v631
          %637 = vmatprep.subr.bf16.mxu0 0
          %638 = vmatpush1.bf16.msra.mxu0 %v632
          %639 = vmatprep.subr.bf16.mxu0 0
          %640 = vmatpush1.bf16.msra.mxu0 0
          %641 = vmatprep.subr.bf16.mxu0 0
          %642 = vmatpush1.bf16.msra.mxu0 0
          %643 = vmatprep.subr.bf16.mxu0 0
          %644 = vmatpush1.bf16.msra.mxu0 0
          %645 = vmatprep.subr.bf16.mxu0 0
          %646 = vmatpush1.bf16.msra.mxu0 0
          %647 = vmatprep.subr.bf16.mxu0 0
          %648 = vmatpush1.bf16.msra.mxu0 0
          %649 = vmatprep.subr.bf16.mxu0 0
          %650 = vmatpush1.bf16.msra.mxu0 0
          %651 = vmatprep.subr.bf16.mxu0 0
          %652 = vmatpush1.bf16.msra.mxu0 0
          %653 = vmatprep.subr.bf16.mxu0 0
          %654 = vmatpush1.bf16.msra.mxu0 0
          %655 = vmatprep.subr.bf16.mxu0 0
          %656 = vmatpush1.bf16.msra.mxu0 0
          %657 = vmatprep.subr.bf16.mxu0 0
          %658 = vmatpush1.bf16.msra.mxu0 0
          %659 = vmatprep.subr.bf16.mxu0 0
          %660 = vmatpush1.bf16.msra.mxu0 0
          %661 = vmatprep.subr.bf16.mxu0 0
          %662 = vmatpush1.bf16.msra.mxu0 0
          %663 = vmatprep.subr.bf16.mxu0 0
          %664 = vmatpush1.bf16.msra.mxu0 0
          %665 = vmatprep.subr.bf16.mxu0 0
          %666 = vmatpush1.bf16.msra.mxu0 0
          %667 = vmatprep.mubr.bf16.mxu0 0
          %668 = vmatmul.mubr.bf16.gmra.mrb[0].mxu0 %v573
          %v669 = vpop.f32.mrb[0].mxu0
          %v670 = vadd.f32 %v622, %v669
          %v671 = vpop.f32.mrb[0].mxu0
          %v672 = vpop.f32.mrb[0].mxu0
          %v673 = vpop.f32.mrb[0].mxu0
          %674 = vdwg.mxu0
          %v675 = vpack.c.bf16 %v610, %v610
          %vm676 = vcmask 257024
          %677 = vst.msk [vmem:[#allocation2] sm:$0xf] %vm676, %v675
          %v678 = vpack.c.bf16 %v670, %v670
          %679 = vst.msk [vmem:[#allocation3] sm:$0xf] %vm676, %v678
        $region104: #{tpu_custom_call.1} parent=59 // pred_fallthru
          _
        %v680 = vld [vmem:[%s460] sm:$0xff]
        %v681 = vpack.c.bf16 %v680, %v680
        %v682 = vld [vmem:[#allocation9] sm:$0xf]
        %v683 = vld [vmem:[#allocation9 + $0x4] sm:$0xf]
        %v684 = vld [vmem:[#allocation9 + $0x8] sm:$0xf]
        %v685 = vld [vmem:[#allocation9 + $0xc] sm:$0xf]
        %v686 = vlaneseq
        %v687 = vshrl.u32 %v686, 7
        %v688 = vsub.s32 0, %v687
        %v689 = vrot.slane %v544, %v688
        %v694 = vunpack.c.l.b16 %v682
        %v695 = vunpack.c.l.b16 %v683
        %v696 = vunpack.c.l.b16 %v684
        %v697 = vunpack.c.l.b16 %v685
        %v698 = vpack.c.b16 %v695, %v694
        %v699 = vpack.c.b16 %v697, %v696
        %vm702 = vcmask 261120
        %v704 = vsel %vm702, %v681, 0
        %706 = vmatprep.subr.bf16.mxu0 0
        %707 = vmatpush1.bf16.msra.mxu0 %v698
        %708 = vmatprep.subr.bf16.mxu0 0
        %709 = vmatpush1.bf16.msra.mxu0 %v699
        %710 = vmatprep.subr.bf16.mxu0 0
        %711 = vmatpush1.bf16.msra.mxu0 0
        %712 = vmatprep.subr.bf16.mxu0 0
        %713 = vmatpush1.bf16.msra.mxu0 0
        %714 = vmatprep.subr.bf16.mxu0 0
        %715 = vmatpush1.bf16.msra.mxu0 0
        %716 = vmatprep.subr.bf16.mxu0 0
        %717 = vmatpush1.bf16.msra.mxu0 0
        %718 = vmatprep.subr.bf16.mxu0 0
        %719 = vmatpush1.bf16.msra.mxu0 0
        %720 = vmatprep.subr.bf16.mxu0 0
        %721 = vmatpush1.bf16.msra.mxu0 0
        %722 = vmatprep.subr.bf16.mxu0 0
        %723 = vmatpush1.bf16.msra.mxu0 0
        %724 = vmatprep.subr.bf16.mxu0 0
        %725 = vmatpush1.bf16.msra.mxu0 0
        %726 = vmatprep.subr.bf16.mxu0 0
        %727 = vmatpush1.bf16.msra.mxu0 0
        %728 = vmatprep.subr.bf16.mxu0 0
        %729 = vmatpush1.bf16.msra.mxu0 0
        %730 = vmatprep.subr.bf16.mxu0 0
        %731 = vmatpush1.bf16.msra.mxu0 0
        %732 = vmatprep.subr.bf16.mxu0 0
        %733 = vmatpush1.bf16.msra.mxu0 0
        %734 = vmatprep.subr.bf16.mxu0 0
        %735 = vmatpush1.bf16.msra.mxu0 0
        %736 = vmatprep.subr.bf16.mxu0 0
        %737 = vmatpush1.bf16.msra.mxu0 0
        %738 = vmatprep.mubr.bf16.mxu0 0
        %739 = vmatmul.mubr.bf16.gmra.mrb[0].mxu0 %v704
        %v740 = vpop.f32.mrb[0].mxu0
        %v741 = vadd.f32 %v689, %v740
        %v742 = vpop.f32.mrb[0].mxu0
        %v743 = vpop.f32.mrb[0].mxu0
        %v744 = vpop.f32.mrb[0].mxu0
        %745 = vdwg.mxu0
        %v746 = vmul.f32 %v741, 0.35355338
        %748 = vrot.lane.b32.xlu0 %v746, 120
        %v749 = vpop.permute.xlu0 %748
        %751 = vrot.lane.b32.xlu0 %v746, 112
        %v752 = vpop.permute.xlu0 %751
        %754 = vrot.lane.b32.xlu0 %v746, 104
        %v755 = vpop.permute.xlu0 %754
        %v757 = vcombine.low %v746, %v752
        %v758 = vcombine.high %v746, %v752
        %v760 = vunpack.c.l.s4 1983009808
        %v761 = vunpack.c.0.s8 %v760
        %v762 = vlaneseq
        %v763 = vshrl.u32 %v762, 7
        %v764 = vsub.s32 %v761, %v763
        %v765 = vrot.slane %v757, %v764
        %v767 = vunpack.c.l.s4 1983009808
        %v768 = vunpack.c.0.s8 %v767
        %v769 = vlaneseq
        %v770 = vshrl.u32 %v769, 7
        %v771 = vsub.s32 %v768, %v770
        %v772 = vrot.slane %v758, %v771
        %v773 = vcombine.low %v749, %v755
        %v774 = vcombine.high %v749, %v755
        %v776 = vunpack.c.l.s4 1983009808
        %v777 = vunpack.c.0.s8 %v776
        %v778 = vlaneseq
        %v779 = vshrl.u32 %v778, 7
        %v780 = vsub.s32 %v777, %v779
        %v781 = vrot.slane %v773, %v780
        %v783 = vunpack.c.l.s4 1983009808
        %v784 = vunpack.c.0.s8 %v783
        %v785 = vlaneseq
        %v786 = vshrl.u32 %v785, 7
        %v787 = vsub.s32 %v784, %v786
        %v788 = vrot.slane %v774, %v787
        %v789 = vcombine.low %v765, %v781
        %v790 = vcombine.high %v765, %v781
        %v792 = vunpack.c.l.s4 1934713408
        %v793 = vunpack.c.0.s8 %v792
        %v794 = vlaneseq
        %v795 = vshrl.u32 %v794, 7
        %v796 = vsub.s32 %v793, %v795
        %v797 = vrot.slane %v789, %v796
        %v799 = vunpack.c.l.s4 1934713408
        %v800 = vunpack.c.0.s8 %v799
        %v801 = vlaneseq
        %v802 = vshrl.u32 %v801, 7
        %v803 = vsub.s32 %v800, %v802
        %v804 = vrot.slane %v790, %v803
        %v805 = vcombine.low %v772, %v788
        %v806 = vcombine.high %v772, %v788
        %v808 = vunpack.c.l.s4 1934713408
        %v809 = vunpack.c.0.s8 %v808
        %v810 = vlaneseq
        %v811 = vshrl.u32 %v810, 7
        %v812 = vsub.s32 %v809, %v811
        %v813 = vrot.slane %v805, %v812
        %v815 = vunpack.c.l.s4 1934713408
        %v816 = vunpack.c.0.s8 %v815
        %v817 = vlaneseq
        %v818 = vshrl.u32 %v817, 7
        %v819 = vsub.s32 %v816, %v818
        %v820 = vrot.slane %v806, %v819
        %v821 = vcombine.high %v797, 0.0
        %v822 = vcombine.high %v804, 0.0
        %v823 = vcombine.high %v813, 0.0
        %v824 = vcombine.high %v820, 0.0
        %v825 = vcombine.low %v797, %v804
        %v827 = vunpack.c.l.s4 1983009808
        %v828 = vunpack.c.0.s8 %v827
        %v829 = vlaneseq
        %v830 = vshrl.u32 %v829, 7
        %v831 = vsub.s32 %v828, %v830
        %v832 = vrot.slane %v825, %v831
        %v833 = vcombine.low %v821, %v822
        %v835 = vunpack.c.l.s4 1983009808
        %v836 = vunpack.c.0.s8 %v835
        %v837 = vlaneseq
        %v838 = vshrl.u32 %v837, 7
        %v839 = vsub.s32 %v836, %v838
        %v840 = vrot.slane %v833, %v839
        %v841 = vcombine.low %v813, %v820
        %v843 = vunpack.c.l.s4 1983009808
        %v844 = vunpack.c.0.s8 %v843
        %v845 = vlaneseq
        %v846 = vshrl.u32 %v845, 7
        %v847 = vsub.s32 %v844, %v846
        %v848 = vrot.slane %v841, %v847
        %v849 = vcombine.low %v823, %v824
        %v851 = vunpack.c.l.s4 1983009808
        %v852 = vunpack.c.0.s8 %v851
        %v853 = vlaneseq
        %v854 = vshrl.u32 %v853, 7
        %v855 = vsub.s32 %v852, %v854
        %v856 = vrot.slane %v849, %v855
        %v857 = vcombine.low %v832, %v840
        %v858 = vcombine.high %v832, %v840
        %v860 = vunpack.c.l.s4 1934713408
        %v861 = vunpack.c.0.s8 %v860
        %v862 = vlaneseq
        %v863 = vshrl.u32 %v862, 7
        %v864 = vsub.s32 %v861, %v863
        %v865 = vrot.slane %v857, %v864
        %v867 = vunpack.c.l.s4 1934713408
        %v868 = vunpack.c.0.s8 %v867
        %v869 = vlaneseq
        %v870 = vshrl.u32 %v869, 7
        %v871 = vsub.s32 %v868, %v870
        %v872 = vrot.slane %v858, %v871
        %v873 = vcombine.low %v848, %v856
        %v874 = vcombine.high %v848, %v856
        %v876 = vunpack.c.l.s4 1934713408
        %v877 = vunpack.c.0.s8 %v876
        %v878 = vlaneseq
        %v879 = vshrl.u32 %v878, 7
        %v880 = vsub.s32 %v877, %v879
        %v881 = vrot.slane %v873, %v880
        %v883 = vunpack.c.l.s4 1934713408
        %v884 = vunpack.c.0.s8 %v883
        %v885 = vlaneseq
        %v886 = vshrl.u32 %v885, 7
        %v887 = vsub.s32 %v884, %v886
        %v888 = vrot.slane %v874, %v887
        %v889 = vcombine.low %v865, %v881
        %v890 = vcombine.high %v865, %v881
        %v891 = vcombine.low %v872, %v888
        %v892 = vcombine.high %v872, %v888
        %v893 = vpack.c.bf16 %v889, %v889
        %v894 = vpack.c.bf16 %v890, %v890
        %v895 = vpack.c.bf16 %v891, %v891
        %v896 = vpack.c.bf16 %v892, %v892
        %v897 = vld [vmem:[#allocation2] sm:$0xf]
        %899 = vrot.lane.b32.xlu0 %v897, 120
        %v900 = vpop.permute.xlu0 %899
        %901 = vrot.lane.b32.xlu0 %v897, 112
        %v902 = vpop.permute.xlu0 %901
        %903 = vrot.lane.b32.xlu0 %v897, 104
        %v904 = vpop.permute.xlu0 %903
        %v907 = vpack.i.b16 %v900, %v897
        %v908 = vshrl.u32 %v897, 16
        %v909 = vshrl.u32 %v900, 16
        %v910 = vpack.i.b16 %v909, %v908
        %v913 = vpack.i.b16 %v904, %v902
        %v914 = vshrl.u32 %v902, 16
        %v915 = vshrl.u32 %v904, 16
        %v916 = vpack.i.b16 %v915, %v914
        %v919 = vunpack.c.l.s4 1983009808
        %v920 = vunpack.c.0.s8 %v919
        %v921 = vlaneseq
        %v922 = vshrl.u32 %v921, 7
        %v923 = vsub.s32 %v920, %v922
        %v924 = vrot.slane %v907, %v923
        %v927 = vunpack.c.l.s4 1983009808
        %v928 = vunpack.c.0.s8 %v927
        %v929 = vlaneseq
        %v930 = vshrl.u32 %v929, 7
        %v931 = vsub.s32 %v928, %v930
        %v932 = vrot.slane %v913, %v931
        %v933 = vcombine.low %v924, %v932
        %v934 = vcombine.high %v924, %v932
        %v936 = vunpack.c.l.s4 1934713408
        %v937 = vunpack.c.0.s8 %v936
        %v938 = vlaneseq
        %v939 = vshrl.u32 %v938, 7
        %v940 = vsub.s32 %v937, %v939
        %v941 = vrot.slane %v933, %v940
        %v943 = vunpack.c.l.s4 1934713408
        %v944 = vunpack.c.0.s8 %v943
        %v945 = vlaneseq
        %v946 = vshrl.u32 %v945, 7
        %v947 = vsub.s32 %v944, %v946
        %v948 = vrot.slane %v934, %v947
        %v949 = vcombine.high %v941, 0
        %v950 = vcombine.high %v948, 0
        %v953 = vunpack.c.l.s4 1983009808
        %v954 = vunpack.c.0.s8 %v953
        %v955 = vlaneseq
        %v956 = vshrl.u32 %v955, 7
        %v957 = vsub.s32 %v954, %v956
        %v958 = vrot.slane %v910, %v957
        %v961 = vunpack.c.l.s4 1983009808
        %v962 = vunpack.c.0.s8 %v961
        %v963 = vlaneseq
        %v964 = vshrl.u32 %v963, 7
        %v965 = vsub.s32 %v962, %v964
        %v966 = vrot.slane %v916, %v965
        %v967 = vcombine.low %v958, %v966
        %v968 = vcombine.high %v958, %v966
        %v970 = vunpack.c.l.s4 1934713408
        %v971 = vunpack.c.0.s8 %v970
        %v972 = vlaneseq
        %v973 = vshrl.u32 %v972, 7
        %v974 = vsub.s32 %v971, %v973
        %v975 = vrot.slane %v967, %v974
        %v977 = vunpack.c.l.s4 1934713408
        %v978 = vunpack.c.0.s8 %v977
        %v979 = vlaneseq
        %v980 = vshrl.u32 %v979, 7
        %v981 = vsub.s32 %v978, %v980
        %v982 = vrot.slane %v968, %v981
        %v983 = vcombine.high %v975, 0
        %v984 = vcombine.high %v982, 0
        %v985 = vcombine.low %v941, %v948
        %v987 = vunpack.c.l.s4 1983009808
        %v988 = vunpack.c.0.s8 %v987
        %v989 = vlaneseq
        %v990 = vshrl.u32 %v989, 7
        %v991 = vsub.s32 %v988, %v990
        %v992 = vrot.slane %v985, %v991
        %v993 = vcombine.low %v949, %v950
        %v995 = vunpack.c.l.s4 1983009808
        %v996 = vunpack.c.0.s8 %v995
        %v997 = vlaneseq
        %v998 = vshrl.u32 %v997, 7
        %v999 = vsub.s32 %v996, %v998
        %v1000 = vrot.slane %v993, %v999
        %v1001 = vcombine.low %v992, %v1000
        %v1003 = vunpack.c.l.s4 1934713408
        %v1004 = vunpack.c.0.s8 %v1003
        %v1005 = vlaneseq
        %v1006 = vshrl.u32 %v1005, 7
        %v1007 = vsub.s32 %v1004, %v1006
        %v1008 = vrot.slane %v1001, %v1007
        %v1009 = vcombine.high %v1008, 0
        %v1010 = vcombine.low %v975, %v982
        %v1012 = vunpack.c.l.s4 1983009808
        %v1013 = vunpack.c.0.s8 %v1012
        %v1014 = vlaneseq
        %v1015 = vshrl.u32 %v1014, 7
        %v1016 = vsub.s32 %v1013, %v1015
        %v1017 = vrot.slane %v1010, %v1016
        %v1018 = vcombine.low %v983, %v984
        %v1020 = vunpack.c.l.s4 1983009808
        %v1021 = vunpack.c.0.s8 %v1020
        %v1022 = vlaneseq
        %v1023 = vshrl.u32 %v1022, 7
        %v1024 = vsub.s32 %v1021, %v1023
        %v1025 = vrot.slane %v1018, %v1024
        %v1026 = vcombine.low %v1017, %v1025
        %v1028 = vunpack.c.l.s4 1934713408
        %v1029 = vunpack.c.0.s8 %v1028
        %v1030 = vlaneseq
        %v1031 = vshrl.u32 %v1030, 7
        %v1032 = vsub.s32 %v1029, %v1031
        %v1033 = vrot.slane %v1026, %v1032
        %v1034 = vcombine.high %v1033, 0
        %v1037 = vpack.i.b16 %v1033, %v1008
        %v1038 = vshrl.u32 %v1008, 16
        %v1039 = vshrl.u32 %v1033, 16
        %v1040 = vpack.i.b16 %v1039, %v1038
        %v1043 = vpack.i.b16 %v1034, %v1009
        %v1044 = vshrl.u32 %v1009, 16
        %v1045 = vshrl.u32 %v1034, 16
        %v1046 = vpack.i.b16 %v1045, %v1044
        %v1047 = vld [vmem:[#allocation3] sm:$0xf]
        %1049 = vrot.lane.b32.xlu0 %v1047, 120
        %v1050 = vpop.permute.xlu0 %1049
        %1051 = vrot.lane.b32.xlu0 %v1047, 112
        %v1052 = vpop.permute.xlu0 %1051
        %1053 = vrot.lane.b32.xlu0 %v1047, 104
        %v1054 = vpop.permute.xlu0 %1053
        %v1057 = vpack.i.b16 %v1050, %v1047
        %v1058 = vshrl.u32 %v1047, 16
        %v1059 = vshrl.u32 %v1050, 16
        %v1060 = vpack.i.b16 %v1059, %v1058
        %v1063 = vpack.i.b16 %v1054, %v1052
        %v1064 = vshrl.u32 %v1052, 16
        %v1065 = vshrl.u32 %v1054, 16
        %v1066 = vpack.i.b16 %v1065, %v1064
        %v1069 = vunpack.c.l.s4 1983009808
        %v1070 = vunpack.c.0.s8 %v1069
        %v1071 = vlaneseq
        %v1072 = vshrl.u32 %v1071, 7
        %v1073 = vsub.s32 %v1070, %v1072
        %v1074 = vrot.slane %v1057, %v1073
        %v1077 = vunpack.c.l.s4 1983009808
        %v1078 = vunpack.c.0.s8 %v1077
        %v1079 = vlaneseq
        %v1080 = vshrl.u32 %v1079, 7
        %v1081 = vsub.s32 %v1078, %v1080
        %v1082 = vrot.slane %v1063, %v1081
        %v1083 = vcombine.low %v1074, %v1082
        %v1084 = vcombine.high %v1074, %v1082
        %v1086 = vunpack.c.l.s4 1934713408
        %v1087 = vunpack.c.0.s8 %v1086
        %v1088 = vlaneseq
        %v1089 = vshrl.u32 %v1088, 7
        %v1090 = vsub.s32 %v1087, %v1089
        %v1091 = vrot.slane %v1083, %v1090
        %v1093 = vunpack.c.l.s4 1934713408
        %v1094 = vunpack.c.0.s8 %v1093
        %v1095 = vlaneseq
        %v1096 = vshrl.u32 %v1095, 7
        %v1097 = vsub.s32 %v1094, %v1096
        %v1098 = vrot.slane %v1084, %v1097
        %v1099 = vcombine.high %v1091, 0
        %v1100 = vcombine.high %v1098, 0
        %v1103 = vunpack.c.l.s4 1983009808
        %v1104 = vunpack.c.0.s8 %v1103
        %v1105 = vlaneseq
        %v1106 = vshrl.u32 %v1105, 7
        %v1107 = vsub.s32 %v1104, %v1106
        %v1108 = vrot.slane %v1060, %v1107
        %v1111 = vunpack.c.l.s4 1983009808
        %v1112 = vunpack.c.0.s8 %v1111
        %v1113 = vlaneseq
        %v1114 = vshrl.u32 %v1113, 7
        %v1115 = vsub.s32 %v1112, %v1114
        %v1116 = vrot.slane %v1066, %v1115
        %v1117 = vcombine.low %v1108, %v1116
        %v1118 = vcombine.high %v1108, %v1116
        %v1120 = vunpack.c.l.s4 1934713408
        %v1121 = vunpack.c.0.s8 %v1120
        %v1122 = vlaneseq
        %v1123 = vshrl.u32 %v1122, 7
        %v1124 = vsub.s32 %v1121, %v1123
        %v1125 = vrot.slane %v1117, %v1124
        %v1127 = vunpack.c.l.s4 1934713408
        %v1128 = vunpack.c.0.s8 %v1127
        %v1129 = vlaneseq
        %v1130 = vshrl.u32 %v1129, 7
        %v1131 = vsub.s32 %v1128, %v1130
        %v1132 = vrot.slane %v1118, %v1131
        %v1133 = vcombine.high %v1125, 0
        %v1134 = vcombine.high %v1132, 0
        %v1135 = vcombine.low %v1091, %v1098
        %v1137 = vunpack.c.l.s4 1983009808
        %v1138 = vunpack.c.0.s8 %v1137
        %v1139 = vlaneseq
        %v1140 = vshrl.u32 %v1139, 7
        %v1141 = vsub.s32 %v1138, %v1140
        %v1142 = vrot.slane %v1135, %v1141
        %v1143 = vcombine.low %v1099, %v1100
        %v1145 = vunpack.c.l.s4 1983009808
        %v1146 = vunpack.c.0.s8 %v1145
        %v1147 = vlaneseq
        %v1148 = vshrl.u32 %v1147, 7
        %v1149 = vsub.s32 %v1146, %v1148
        %v1150 = vrot.slane %v1143, %v1149
        %v1151 = vcombine.low %v1142, %v1150
        %v1153 = vunpack.c.l.s4 1934713408
        %v1154 = vunpack.c.0.s8 %v1153
        %v1155 = vlaneseq
        %v1156 = vshrl.u32 %v1155, 7
        %v1157 = vsub.s32 %v1154, %v1156
        %v1158 = vrot.slane %v1151, %v1157
        %v1159 = vcombine.high %v1158, 0
        %v1160 = vcombine.low %v1125, %v1132
        %v1162 = vunpack.c.l.s4 1983009808
        %v1163 = vunpack.c.0.s8 %v1162
        %v1164 = vlaneseq
        %v1165 = vshrl.u32 %v1164, 7
        %v1166 = vsub.s32 %v1163, %v1165
        %v1167 = vrot.slane %v1160, %v1166
        %v1168 = vcombine.low %v1133, %v1134
        %v1170 = vunpack.c.l.s4 1983009808
        %v1171 = vunpack.c.0.s8 %v1170
        %v1172 = vlaneseq
        %v1173 = vshrl.u32 %v1172, 7
        %v1174 = vsub.s32 %v1171, %v1173
        %v1175 = vrot.slane %v1168, %v1174
        %v1176 = vcombine.low %v1167, %v1175
        %v1178 = vunpack.c.l.s4 1934713408
        %v1179 = vunpack.c.0.s8 %v1178
        %v1180 = vlaneseq
        %v1181 = vshrl.u32 %v1180, 7
        %v1182 = vsub.s32 %v1179, %v1181
        %v1183 = vrot.slane %v1176, %v1182
        %v1184 = vcombine.high %v1183, 0
        %v1187 = vpack.i.b16 %v1183, %v1158
        %v1188 = vshrl.u32 %v1158, 16
        %v1189 = vshrl.u32 %v1183, 16
        %v1190 = vpack.i.b16 %v1189, %v1188
        %v1193 = vpack.i.b16 %v1184, %v1159
        %v1194 = vshrl.u32 %v1159, 16
        %v1195 = vshrl.u32 %v1184, 16
        %v1196 = vpack.i.b16 %v1195, %v1194
        %vm1197 = vcmask 64512
        %v1199 = vsel %vm1197, %v893, 0
        %v1202 = vsel %vm1197, %v1037, 0
        %1204 = vmatprep.subr.bf16.mxu0 0
        %1205 = vmatpush1.bf16.xpose.msra.mxu0 %v1202
        %1206 = vmatprep.subr.bf16.mxu0 0
        %1207 = vmatpush1.bf16.xpose.msra.mxu0 0
        %1208 = vmatprep.subr.bf16.mxu0 0
        %1209 = vmatpush1.bf16.xpose.msra.mxu0 0
        %1210 = vmatprep.subr.bf16.mxu0 0
        %1211 = vmatpush1.bf16.xpose.msra.mxu0 0
        %1212 = vmatprep.subr.bf16.mxu0 0
        %1213 = vmatpush1.bf16.xpose.msra.mxu0 0
        %1214 = vmatprep.subr.bf16.mxu0 0
        %1215 = vmatpush1.bf16.xpose.msra.mxu0 0
        %1216 = vmatprep.subr.bf16.mxu0 0
        %1217 = vmatpush1.bf16.xpose.msra.mxu0 0
        %1218 = vmatprep.subr.bf16.mxu0 0
        %1219 = vmatpush1.bf16.xpose.msra.mxu0 0
        %1220 = vmatprep.subr.bf16.mxu0 0
        %1221 = vmatpush1.bf16.xpose.msra.mxu0 0
        %1222 = vmatprep.subr.bf16.mxu0 0
        %1223 = vmatpush1.bf16.xpose.msra.mxu0 0
        %1224 = vmatprep.subr.bf16.mxu0 0
        %1225 = vmatpush1.bf16.xpose.msra.mxu0 0
        %1226 = vmatprep.subr.bf16.mxu0 0
        %1227 = vmatpush1.bf16.xpose.msra.mxu0 0
        %1228 = vmatprep.subr.bf16.mxu0 0
        %1229 = vmatpush1.bf16.xpose.msra.mxu0 0
        %1230 = vmatprep.subr.bf16.mxu0 0
        %1231 = vmatpush1.bf16.xpose.msra.mxu0 0
        %1232 = vmatprep.subr.bf16.mxu0 0
        %1233 = vmatpush1.bf16.xpose.msra.mxu0 0
        %1234 = vmatprep.subr.bf16.mxu0 0
        %1235 = vmatpush1.bf16.xpose.msra.mxu0 0
        %1236 = vmatprep.mubr.bf16.mxu0 0
        %1237 = vmatmul.mubr.bf16.gmra.mrb[0].mxu0 %v1199
        %v1238 = vpop.f32.mrb[0].mxu0
        %v1239 = vadd.f32 0.0, %v1238
        %v1240 = vpop.f32.mrb[0].mxu0
        %v1241 = vpop.f32.mrb[0].mxu0
        %v1242 = vpop.f32.mrb[0].mxu0
        %1243 = vdwg.mxu0
        %v1245 = vsel %vm1197, %v894, 0
        %v1248 = vsel %vm1197, %v1040, 0
        %1250 = vmatprep.subr.bf16.mxu0 0
        %1251 = vmatpush1.bf16.xpose.msra.mxu0 %v1248
        %1252 = vmatprep.subr.bf16.mxu0 0
        %1253 = vmatpush1.bf16.xpose.msra.mxu0 0
        %1254 = vmatprep.subr.bf16.mxu0 0
        %1255 = vmatpush1.bf16.xpose.msra.mxu0 0
        %1256 = vmatprep.subr.bf16.mxu0 0
        %1257 = vmatpush1.bf16.xpose.msra.mxu0 0
        %1258 = vmatprep.subr.bf16.mxu0 0
        %1259 = vmatpush1.bf16.xpose.msra.mxu0 0
        %1260 = vmatprep.subr.bf16.mxu0 0
        %1261 = vmatpush1.bf16.xpose.msra.mxu0 0
        %1262 = vmatprep.subr.bf16.mxu0 0
        %1263 = vmatpush1.bf16.xpose.msra.mxu0 0
        %1264 = vmatprep.subr.bf16.mxu0 0
        %1265 = vmatpush1.bf16.xpose.msra.mxu0 0
        %1266 = vmatprep.subr.bf16.mxu0 0
        %1267 = vmatpush1.bf16.xpose.msra.mxu0 0
        %1268 = vmatprep.subr.bf16.mxu0 0
        %1269 = vmatpush1.bf16.xpose.msra.mxu0 0
        %1270 = vmatprep.subr.bf16.mxu0 0
        %1271 = vmatpush1.bf16.xpose.msra.mxu0 0
        %1272 = vmatprep.subr.bf16.mxu0 0
        %1273 = vmatpush1.bf16.xpose.msra.mxu0 0
        %1274 = vmatprep.subr.bf16.mxu0 0
        %1275 = vmatpush1.bf16.xpose.msra.mxu0 0
        %1276 = vmatprep.subr.bf16.mxu0 0
        %1277 = vmatpush1.bf16.xpose.msra.mxu0 0
        %1278 = vmatprep.subr.bf16.mxu0 0
        %1279 = vmatpush1.bf16.xpose.msra.mxu0 0
        %1280 = vmatprep.subr.bf16.mxu0 0
        %1281 = vmatpush1.bf16.xpose.msra.mxu0 0
        %1282 = vmatprep.mubr.bf16.mxu0 0
        %1283 = vmatmul.mubr.bf16.gmra.mrb[0].mxu0 %v1245
        %v1284 = vpop.f32.mrb[0].mxu0
        %v1285 = vadd.f32 0.0, %v1284
        %v1286 = vpop.f32.mrb[0].mxu0
        %v1287 = vpop.f32.mrb[0].mxu0
        %v1288 = vpop.f32.mrb[0].mxu0
        %1289 = vdwg.mxu0
        %v1291 = vsel %vm1197, %v895, 0
        %v1294 = vsel %vm1197, %v1043, 0
        %1296 = vmatprep.subr.bf16.mxu0 0
        %1297 = vmatpush1.bf16.xpose.msra.mxu0 %v1294
        %1298 = vmatprep.subr.bf16.mxu0 0
        %1299 = vmatpush1.bf16.xpose.msra.mxu0 0
        %1300 = vmatprep.subr.bf16.mxu0 0
        %1301 = vmatpush1.bf16.xpose.msra.mxu0 0
        %1302 = vmatprep.subr.bf16.mxu0 0
        %1303 = vmatpush1.bf16.xpose.msra.mxu0 0
        %1304 = vmatprep.subr.bf16.mxu0 0
        %1305 = vmatpush1.bf16.xpose.msra.mxu0 0
        %1306 = vmatprep.subr.bf16.mxu0 0
        %1307 = vmatpush1.bf16.xpose.msra.mxu0 0
        %1308 = vmatprep.subr.bf16.mxu0 0
        %1309 = vmatpush1.bf16.xpose.msra.mxu0 0
        %1310 = vmatprep.subr.bf16.mxu0 0
        %1311 = vmatpush1.bf16.xpose.msra.mxu0 0
        %1312 = vmatprep.subr.bf16.mxu0 0
        %1313 = vmatpush1.bf16.xpose.msra.mxu0 0
        %1314 = vmatprep.subr.bf16.mxu0 0
        %1315 = vmatpush1.bf16.xpose.msra.mxu0 0
        %1316 = vmatprep.subr.bf16.mxu0 0
        %1317 = vmatpush1.bf16.xpose.msra.mxu0 0
        %1318 = vmatprep.subr.bf16.mxu0 0
        %1319 = vmatpush1.bf16.xpose.msra.mxu0 0
        %1320 = vmatprep.subr.bf16.mxu0 0
        %1321 = vmatpush1.bf16.xpose.msra.mxu0 0
        %1322 = vmatprep.subr.bf16.mxu0 0
        %1323 = vmatpush1.bf16.xpose.msra.mxu0 0
        %1324 = vmatprep.subr.bf16.mxu0 0
        %1325 = vmatpush1.bf16.xpose.msra.mxu0 0
        %1326 = vmatprep.subr.bf16.mxu0 0
        %1327 = vmatpush1.bf16.xpose.msra.mxu0 0
        %1328 = vmatprep.mubr.bf16.mxu0 0
        %1329 = vmatmul.mubr.bf16.gmra.mrb[0].mxu0 %v1291
        %v1330 = vpop.f32.mrb[0].mxu0
        %v1331 = vadd.f32 0.0, %v1330
        %v1332 = vpop.f32.mrb[0].mxu0
        %v1333 = vpop.f32.mrb[0].mxu0
        %v1334 = vpop.f32.mrb[0].mxu0
        %1335 = vdwg.mxu0
        %v1337 = vsel %vm1197, %v896, 0
        %v1340 = vsel %vm1197, %v1046, 0
        %1342 = vmatprep.subr.bf16.mxu0 0
        %1343 = vmatpush1.bf16.xpose.msra.mxu0 %v1340
        %1344 = vmatprep.subr.bf16.mxu0 0
        %1345 = vmatpush1.bf16.xpose.msra.mxu0 0
        %1346 = vmatprep.subr.bf16.mxu0 0
        %1347 = vmatpush1.bf16.xpose.msra.mxu0 0
        %1348 = vmatprep.subr.bf16.mxu0 0
        %1349 = vmatpush1.bf16.xpose.msra.mxu0 0
        %1350 = vmatprep.subr.bf16.mxu0 0
        %1351 = vmatpush1.bf16.xpose.msra.mxu0 0
        %1352 = vmatprep.subr.bf16.mxu0 0
        %1353 = vmatpush1.bf16.xpose.msra.mxu0 0
        %1354 = vmatprep.subr.bf16.mxu0 0
        %1355 = vmatpush1.bf16.xpose.msra.mxu0 0
        %1356 = vmatprep.subr.bf16.mxu0 0
        %1357 = vmatpush1.bf16.xpose.msra.mxu0 0
        %1358 = vmatprep.subr.bf16.mxu0 0
        %1359 = vmatpush1.bf16.xpose.msra.mxu0 0
        %1360 = vmatprep.subr.bf16.mxu0 0
        %1361 = vmatpush1.bf16.xpose.msra.mxu0 0
        %1362 = vmatprep.subr.bf16.mxu0 0
        %1363 = vmatpush1.bf16.xpose.msra.mxu0 0
        %1364 = vmatprep.subr.bf16.mxu0 0
        %1365 = vmatpush1.bf16.xpose.msra.mxu0 0
        %1366 = vmatprep.subr.bf16.mxu0 0
        %1367 = vmatpush1.bf16.xpose.msra.mxu0 0
        %1368 = vmatprep.subr.bf16.mxu0 0
        %1369 = vmatpush1.bf16.xpose.msra.mxu0 0
        %1370 = vmatprep.subr.bf16.mxu0 0
        %1371 = vmatpush1.bf16.xpose.msra.mxu0 0
        %1372 = vmatprep.subr.bf16.mxu0 0
        %1373 = vmatpush1.bf16.xpose.msra.mxu0 0
        %1374 = vmatprep.mubr.bf16.mxu0 0
        %1375 = vmatmul.mubr.bf16.gmra.mrb[0].mxu0 %v1337
        %v1376 = vpop.f32.mrb[0].mxu0
        %v1377 = vadd.f32 0.0, %v1376
        %v1378 = vpop.f32.mrb[0].mxu0
        %v1379 = vpop.f32.mrb[0].mxu0
        %v1380 = vpop.f32.mrb[0].mxu0
        %1381 = vdwg.mxu0
        %v1382 = vsel %vm1197, %v1239, -inf
        %1383 = vmax.xlane.f32.xlu0 %v1382
        %v1384 = vpop.xlane.xlu0 %1383
        %v1385 = vsel %vm1197, %v1285, -inf
        %1386 = vmax.xlane.f32.xlu0 %v1385
        %v1387 = vpop.xlane.xlu0 %1386
        %v1388 = vsel %vm1197, %v1331, -inf
        %1389 = vmax.xlane.f32.xlu0 %v1388
        %v1390 = vpop.xlane.xlu0 %1389
        %v1391 = vsel %vm1197, %v1377, -inf
        %1392 = vmax.xlane.f32.xlu0 %v1391
        %v1393 = vpop.xlane.xlu0 %1392
        %v1394 = vsub.f32 %v1239, %v1384
        %v1395 = vsub.f32 %v1285, %v1387
        %v1396 = vsub.f32 %v1331, %v1390
        %v1397 = vsub.f32 %v1377, %v1393
        %v1398 = vmul.f32 %v1394, 1.442695
        %v1399 = vpow.pop %v1398
        %v1400 = vmul.f32 %v1395, 1.442695
        %v1401 = vpow.pop %v1400
        %v1402 = vmul.f32 %v1396, 1.442695
        %v1403 = vpow.pop %v1402
        %v1404 = vmul.f32 %v1397, 1.442695
        %v1405 = vpow.pop %v1404
        %v1406 = vsel %vm1197, %v1399, 0.0
        %1407 = vadd.xlane.f32.xlu0 %v1406
        %v1408 = vpop.xlane.xlu0 %1407
        %v1409 = vsel %vm1197, %v1401, 0.0
        %1410 = vadd.xlane.f32.xlu0 %v1409
        %v1411 = vpop.xlane.xlu0 %1410
        %v1412 = vsel %vm1197, %v1403, 0.0
        %1413 = vadd.xlane.f32.xlu0 %v1412
        %v1414 = vpop.xlane.xlu0 %1413
        %v1415 = vsel %vm1197, %v1405, 0.0
        %1416 = vadd.xlane.f32.xlu0 %v1415
        %v1417 = vpop.xlane.xlu0 %1416
        %v1418 = vpack.c.bf16 %v1399, %v1399
        %v1419 = vpack.c.bf16 %v1401, %v1401
        %v1420 = vpack.c.bf16 %v1403, %v1403
        %v1421 = vpack.c.bf16 %v1405, %v1405
        %v1423 = vsel %vm1197, %v1418, 0
        %vm1425 = vcmask 1043456
        %v1427 = vsel %vm1425, %v1187, 0
        %1429 = vmatprep.subr.bf16.mxu0 0
        %1430 = vmatpush1.bf16.msra.mxu0 %v1427
        %1431 = vmatprep.subr.bf16.mxu0 0
        %1432 = vmatpush1.bf16.msra.mxu0 0
        %1433 = vmatprep.subr.bf16.mxu0 0
        %1434 = vmatpush1.bf16.msra.mxu0 0
        %1435 = vmatprep.subr.bf16.mxu0 0
        %1436 = vmatpush1.bf16.msra.mxu0 0
        %1437 = vmatprep.subr.bf16.mxu0 0
        %1438 = vmatpush1.bf16.msra.mxu0 0
        %1439 = vmatprep.subr.bf16.mxu0 0
        %1440 = vmatpush1.bf16.msra.mxu0 0
        %1441 = vmatprep.subr.bf16.mxu0 0
        %1442 = vmatpush1.bf16.msra.mxu0 0
        %1443 = vmatprep.subr.bf16.mxu0 0
        %1444 = vmatpush1.bf16.msra.mxu0 0
        %1445 = vmatprep.subr.bf16.mxu0 0
        %1446 = vmatpush1.bf16.msra.mxu0 0
        %1447 = vmatprep.subr.bf16.mxu0 0
        %1448 = vmatpush1.bf16.msra.mxu0 0
        %1449 = vmatprep.subr.bf16.mxu0 0
        %1450 = vmatpush1.bf16.msra.mxu0 0
        %1451 = vmatprep.subr.bf16.mxu0 0
        %1452 = vmatpush1.bf16.msra.mxu0 0
        %1453 = vmatprep.subr.bf16.mxu0 0
        %1454 = vmatpush1.bf16.msra.mxu0 0
        %1455 = vmatprep.subr.bf16.mxu0 0
        %1456 = vmatpush1.bf16.msra.mxu0 0
        %1457 = vmatprep.subr.bf16.mxu0 0
        %1458 = vmatpush1.bf16.msra.mxu0 0
        %1459 = vmatprep.subr.bf16.mxu0 0
        %1460 = vmatpush1.bf16.msra.mxu0 0
        %1461 = vmatprep.mubr.bf16.mxu0 0
        %1462 = vmatmul.mubr.bf16.gmra.mrb[0].mxu0 %v1423
        %v1463 = vpop.f32.mrb[0].mxu0
        %v1464 = vadd.f32 0.0, %v1463
        %v1465 = vpop.f32.mrb[0].mxu0
        %v1466 = vpop.f32.mrb[0].mxu0
        %v1467 = vpop.f32.mrb[0].mxu0
        %1468 = vdwg.mxu0
        %v1470 = vsel %vm1197, %v1419, 0
        %v1473 = vsel %vm1425, %v1190, 0
        %1475 = vmatprep.subr.bf16.mxu0 0
        %1476 = vmatpush1.bf16.msra.mxu0 %v1473
        %1477 = vmatprep.subr.bf16.mxu0 0
        %1478 = vmatpush1.bf16.msra.mxu0 0
        %1479 = vmatprep.subr.bf16.mxu0 0
        %1480 = vmatpush1.bf16.msra.mxu0 0
        %1481 = vmatprep.subr.bf16.mxu0 0
        %1482 = vmatpush1.bf16.msra.mxu0 0
        %1483 = vmatprep.subr.bf16.mxu0 0
        %1484 = vmatpush1.bf16.msra.mxu0 0
        %1485 = vmatprep.subr.bf16.mxu0 0
        %1486 = vmatpush1.bf16.msra.mxu0 0
        %1487 = vmatprep.subr.bf16.mxu0 0
        %1488 = vmatpush1.bf16.msra.mxu0 0
        %1489 = vmatprep.subr.bf16.mxu0 0
        %1490 = vmatpush1.bf16.msra.mxu0 0
        %1491 = vmatprep.subr.bf16.mxu0 0
        %1492 = vmatpush1.bf16.msra.mxu0 0
        %1493 = vmatprep.subr.bf16.mxu0 0
        %1494 = vmatpush1.bf16.msra.mxu0 0
        %1495 = vmatprep.subr.bf16.mxu0 0
        %1496 = vmatpush1.bf16.msra.mxu0 0
        %1497 = vmatprep.subr.bf16.mxu0 0
        %1498 = vmatpush1.bf16.msra.mxu0 0
        %1499 = vmatprep.subr.bf16.mxu0 0
        %1500 = vmatpush1.bf16.msra.mxu0 0
        %1501 = vmatprep.subr.bf16.mxu0 0
        %1502 = vmatpush1.bf16.msra.mxu0 0
        %1503 = vmatprep.subr.bf16.mxu0 0
        %1504 = vmatpush1.bf16.msra.mxu0 0
        %1505 = vmatprep.subr.bf16.mxu0 0
        %1506 = vmatpush1.bf16.msra.mxu0 0
        %1507 = vmatprep.mubr.bf16.mxu0 0
        %1508 = vmatmul.mubr.bf16.gmra.mrb[0].mxu0 %v1470
        %v1509 = vpop.f32.mrb[0].mxu0
        %v1510 = vadd.f32 0.0, %v1509
        %v1511 = vpop.f32.mrb[0].mxu0
        %v1512 = vpop.f32.mrb[0].mxu0
        %v1513 = vpop.f32.mrb[0].mxu0
        %1514 = vdwg.mxu0
        %v1516 = vsel %vm1197, %v1420, 0
        %v1519 = vsel %vm1425, %v1193, 0
        %1521 = vmatprep.subr.bf16.mxu0 0
        %1522 = vmatpush1.bf16.msra.mxu0 %v1519
        %1523 = vmatprep.subr.bf16.mxu0 0
        %1524 = vmatpush1.bf16.msra.mxu0 0
        %1525 = vmatprep.subr.bf16.mxu0 0
        %1526 = vmatpush1.bf16.msra.mxu0 0
        %1527 = vmatprep.subr.bf16.mxu0 0
        %1528 = vmatpush1.bf16.msra.mxu0 0
        %1529 = vmatprep.subr.bf16.mxu0 0
        %1530 = vmatpush1.bf16.msra.mxu0 0
        %1531 = vmatprep.subr.bf16.mxu0 0
        %1532 = vmatpush1.bf16.msra.mxu0 0
        %1533 = vmatprep.subr.bf16.mxu0 0
        %1534 = vmatpush1.bf16.msra.mxu0 0
        %1535 = vmatprep.subr.bf16.mxu0 0
        %1536 = vmatpush1.bf16.msra.mxu0 0
        %1537 = vmatprep.subr.bf16.mxu0 0
        %1538 = vmatpush1.bf16.msra.mxu0 0
        %1539 = vmatprep.subr.bf16.mxu0 0
        %1540 = vmatpush1.bf16.msra.mxu0 0
        %1541 = vmatprep.subr.bf16.mxu0 0
        %1542 = vmatpush1.bf16.msra.mxu0 0
        %1543 = vmatprep.subr.bf16.mxu0 0
        %1544 = vmatpush1.bf16.msra.mxu0 0
        %1545 = vmatprep.subr.bf16.mxu0 0
        %1546 = vmatpush1.bf16.msra.mxu0 0
        %1547 = vmatprep.subr.bf16.mxu0 0
        %1548 = vmatpush1.bf16.msra.mxu0 0
        %1549 = vmatprep.subr.bf16.mxu0 0
        %1550 = vmatpush1.bf16.msra.mxu0 0
        %1551 = vmatprep.subr.bf16.mxu0 0
        %1552 = vmatpush1.bf16.msra.mxu0 0
        %1553 = vmatprep.mubr.bf16.mxu0 0
        %1554 = vmatmul.mubr.bf16.gmra.mrb[0].mxu0 %v1516
        %v1555 = vpop.f32.mrb[0].mxu0
        %v1556 = vadd.f32 0.0, %v1555
        %v1557 = vpop.f32.mrb[0].mxu0
        %v1558 = vpop.f32.mrb[0].mxu0
        %v1559 = vpop.f32.mrb[0].mxu0
        %1560 = vdwg.mxu0
        %v1562 = vsel %vm1197, %v1421, 0
        %v1565 = vsel %vm1425, %v1196, 0
        %1567 = vmatprep.subr.bf16.mxu0 0
        %1568 = vmatpush1.bf16.msra.mxu0 %v1565
        %1569 = vmatprep.subr.bf16.mxu0 0
        %1570 = vmatpush1.bf16.msra.mxu0 0
        %1571 = vmatprep.subr.bf16.mxu0 0
        %1572 = vmatpush1.bf16.msra.mxu0 0
        %1573 = vmatprep.subr.bf16.mxu0 0
        %1574 = vmatpush1.bf16.msra.mxu0 0
        %1575 = vmatprep.subr.bf16.mxu0 0
        %1576 = vmatpush1.bf16.msra.mxu0 0
        %1577 = vmatprep.subr.bf16.mxu0 0
        %1578 = vmatpush1.bf16.msra.mxu0 0
        %1579 = vmatprep.subr.bf16.mxu0 0
        %1580 = vmatpush1.bf16.msra.mxu0 0
        %1581 = vmatprep.subr.bf16.mxu0 0
        %1582 = vmatpush1.bf16.msra.mxu0 0
        %1583 = vmatprep.subr.bf16.mxu0 0
        %1584 = vmatpush1.bf16.msra.mxu0 0
        %1585 = vmatprep.subr.bf16.mxu0 0
        %1586 = vmatpush1.bf16.msra.mxu0 0
        %1587 = vmatprep.subr.bf16.mxu0 0
        %1588 = vmatpush1.bf16.msra.mxu0 0
        %1589 = vmatprep.subr.bf16.mxu0 0
        %1590 = vmatpush1.bf16.msra.mxu0 0
        %1591 = vmatprep.subr.bf16.mxu0 0
        %1592 = vmatpush1.bf16.msra.mxu0 0
        %1593 = vmatprep.subr.bf16.mxu0 0
        %1594 = vmatpush1.bf16.msra.mxu0 0
        %1595 = vmatprep.subr.bf16.mxu0 0
        %1596 = vmatpush1.bf16.msra.mxu0 0
        %1597 = vmatprep.subr.bf16.mxu0 0
        %1598 = vmatpush1.bf16.msra.mxu0 0
        %1599 = vmatprep.mubr.bf16.mxu0 0
        %1600 = vmatmul.mubr.bf16.gmra.mrb[0].mxu0 %v1562
        %v1601 = vpop.f32.mrb[0].mxu0
        %v1602 = vadd.f32 0.0, %v1601
        %v1603 = vpop.f32.mrb[0].mxu0
        %v1604 = vpop.f32.mrb[0].mxu0
        %v1605 = vpop.f32.mrb[0].mxu0
        %1606 = vdwg.mxu0
        %v1607 = vrcp.pop %v1408
        %v1608 = vrcp.pop %v1411
        %v1609 = vrcp.pop %v1414
        %v1610 = vrcp.pop %v1417
        %v1611 = vmul.f32 %v1464, %v1607
        %v1612 = vmul.f32 %v1510, %v1608
        %v1613 = vmul.f32 %v1556, %v1609
        %v1614 = vmul.f32 %v1602, %v1610
        %v1615 = vcombine.low %v1611, %v1613
        %v1616 = vcombine.high %v1611, %v1613
        %v1618 = vunpack.c.l.s4 1983009808
        %v1619 = vunpack.c.0.s8 %v1618
        %v1620 = vlaneseq
        %v1621 = vshrl.u32 %v1620, 7
        %v1622 = vsub.s32 %v1619, %v1621
        %v1623 = vrot.slane %v1615, %v1622
        %v1625 = vunpack.c.l.s4 1983009808
        %v1626 = vunpack.c.0.s8 %v1625
        %v1627 = vlaneseq
        %v1628 = vshrl.u32 %v1627, 7
        %v1629 = vsub.s32 %v1626, %v1628
        %v1630 = vrot.slane %v1616, %v1629
        %v1631 = vcombine.low %v1612, %v1614
        %v1632 = vcombine.high %v1612, %v1614
        %v1634 = vunpack.c.l.s4 1983009808
        %v1635 = vunpack.c.0.s8 %v1634
        %v1636 = vlaneseq
        %v1637 = vshrl.u32 %v1636, 7
        %v1638 = vsub.s32 %v1635, %v1637
        %v1639 = vrot.slane %v1631, %v1638
        %v1641 = vunpack.c.l.s4 1983009808
        %v1642 = vunpack.c.0.s8 %v1641
        %v1643 = vlaneseq
        %v1644 = vshrl.u32 %v1643, 7
        %v1645 = vsub.s32 %v1642, %v1644
        %v1646 = vrot.slane %v1632, %v1645
        %v1647 = vcombine.low %v1623, %v1639
        %v1648 = vcombine.high %v1623, %v1639
        %v1650 = vunpack.c.l.s4 1934713408
        %v1651 = vunpack.c.0.s8 %v1650
        %v1652 = vlaneseq
        %v1653 = vshrl.u32 %v1652, 7
        %v1654 = vsub.s32 %v1651, %v1653
        %v1655 = vrot.slane %v1647, %v1654
        %v1657 = vunpack.c.l.s4 1934713408
        %v1658 = vunpack.c.0.s8 %v1657
        %v1659 = vlaneseq
        %v1660 = vshrl.u32 %v1659, 7
        %v1661 = vsub.s32 %v1658, %v1660
        %v1662 = vrot.slane %v1648, %v1661
        %v1663 = vcombine.low %v1630, %v1646
        %v1664 = vcombine.high %v1630, %v1646
        %v1666 = vunpack.c.l.s4 1934713408
        %v1667 = vunpack.c.0.s8 %v1666
        %v1668 = vlaneseq
        %v1669 = vshrl.u32 %v1668, 7
        %v1670 = vsub.s32 %v1667, %v1669
        %v1671 = vrot.slane %v1663, %v1670
        %v1673 = vunpack.c.l.s4 1934713408
        %v1674 = vunpack.c.0.s8 %v1673
        %v1675 = vlaneseq
        %v1676 = vshrl.u32 %v1675, 7
        %v1677 = vsub.s32 %v1674, %v1676
        %v1678 = vrot.slane %v1664, %v1677
        %v1679 = vcombine.high %v1655, 0.0
        %v1680 = vcombine.high %v1662, 0.0
        %v1681 = vcombine.high %v1671, 0.0
        %v1682 = vcombine.high %v1678, 0.0
        %v1683 = vcombine.low %v1655, %v1662
        %v1685 = vunpack.c.l.s4 1983009808
        %v1686 = vunpack.c.0.s8 %v1685
        %v1687 = vlaneseq
        %v1688 = vshrl.u32 %v1687, 7
        %v1689 = vsub.s32 %v1686, %v1688
        %v1690 = vrot.slane %v1683, %v1689
        %v1691 = vcombine.low %v1679, %v1680
        %v1693 = vunpack.c.l.s4 1983009808
        %v1694 = vunpack.c.0.s8 %v1693
        %v1695 = vlaneseq
        %v1696 = vshrl.u32 %v1695, 7
        %v1697 = vsub.s32 %v1694, %v1696
        %v1698 = vrot.slane %v1691, %v1697
        %v1699 = vcombine.low %v1671, %v1678
        %v1701 = vunpack.c.l.s4 1983009808
        %v1702 = vunpack.c.0.s8 %v1701
        %v1703 = vlaneseq
        %v1704 = vshrl.u32 %v1703, 7
        %v1705 = vsub.s32 %v1702, %v1704
        %v1706 = vrot.slane %v1699, %v1705
        %v1707 = vcombine.low %v1681, %v1682
        %v1709 = vunpack.c.l.s4 1983009808
        %v1710 = vunpack.c.0.s8 %v1709
        %v1711 = vlaneseq
        %v1712 = vshrl.u32 %v1711, 7
        %v1713 = vsub.s32 %v1710, %v1712
        %v1714 = vrot.slane %v1707, %v1713
        %v1715 = vcombine.low %v1690, %v1698
        %v1716 = vcombine.high %v1690, %v1698
        %v1718 = vunpack.c.l.s4 1934713408
        %v1719 = vunpack.c.0.s8 %v1718
        %v1720 = vlaneseq
        %v1721 = vshrl.u32 %v1720, 7
        %v1722 = vsub.s32 %v1719, %v1721
        %v1723 = vrot.slane %v1715, %v1722
        %v1725 = vunpack.c.l.s4 1934713408
        %v1726 = vunpack.c.0.s8 %v1725
        %v1727 = vlaneseq
        %v1728 = vshrl.u32 %v1727, 7
        %v1729 = vsub.s32 %v1726, %v1728
        %v1730 = vrot.slane %v1716, %v1729
        %v1731 = vcombine.low %v1706, %v1714
        %v1732 = vcombine.high %v1706, %v1714
        %v1734 = vunpack.c.l.s4 1934713408
        %v1735 = vunpack.c.0.s8 %v1734
        %v1736 = vlaneseq
        %v1737 = vshrl.u32 %v1736, 7
        %v1738 = vsub.s32 %v1735, %v1737
        %v1739 = vrot.slane %v1731, %v1738
        %v1741 = vunpack.c.l.s4 1934713408
        %v1742 = vunpack.c.0.s8 %v1741
        %v1743 = vlaneseq
        %v1744 = vshrl.u32 %v1743, 7
        %v1745 = vsub.s32 %v1742, %v1744
        %v1746 = vrot.slane %v1732, %v1745
        %v1747 = vcombine.low %v1723, %v1739
        %v1748 = vcombine.high %v1723, %v1739
        %v1749 = vcombine.low %v1730, %v1746
        %v1750 = vcombine.high %v1730, %v1746
        %1752 = vrot.lane.b32.xlu0 %v1748, 8
        %v1753 = vpop.permute.xlu0 %1752
        %1756 = vrot.lane.b32.xlu0 %v1749, 16
        %v1757 = vpop.permute.xlu0 %1756
        %1760 = vrot.lane.b32.xlu0 %v1750, 24
        %v1761 = vpop.permute.xlu0 %1760
        %v1763 = vsel %vm1197, %v1747, %v1753
        %vm1764 = vcmask 130048
        %v1765 = vsel %vm1764, %v1763, %v1757
        %vm1766 = vcmask 195584
        %v1767 = vsel %vm1766, %v1765, %v1761
        %v1768 = vpack.c.bf16 %v1767, %v1767
        %v1769 = vld [vmem:[#allocation13] sm:$0xf]
        %v1770 = vld [vmem:[#allocation13 + $0x4] sm:$0xf]
        %v1771 = vld [vmem:[#allocation13 + $0x8] sm:$0xf]
        %v1772 = vld [vmem:[#allocation13 + $0xc] sm:$0xf]
        %v1773 = vlaneseq
        %v1774 = vshrl.u32 %v1773, 7
        %v1775 = vsub.s32 3, %v1774
        %v1776 = vrot.slane %v544, %v1775
        %v1781 = vunpack.c.l.b16 %v1769
        %v1782 = vunpack.c.l.b16 %v1770
        %v1783 = vunpack.c.l.b16 %v1771
        %v1784 = vunpack.c.l.b16 %v1772
        %v1785 = vpack.c.b16 %v1782, %v1781
        %v1786 = vpack.c.b16 %v1784, %v1783
        %v1790 = vsel %vm702, %v1768, 0
        %1792 = vmatprep.subr.bf16.mxu0 0
        %1793 = vmatpush1.bf16.msra.mxu0 %v1785
        %1794 = vmatprep.subr.bf16.mxu0 0
        %1795 = vmatpush1.bf16.msra.mxu0 %v1786
        %1796 = vmatprep.subr.bf16.mxu0 0
        %1797 = vmatpush1.bf16.msra.mxu0 0
        %1798 = vmatprep.subr.bf16.mxu0 0
        %1799 = vmatpush1.bf16.msra.mxu0 0
        %1800 = vmatprep.subr.bf16.mxu0 0
        %1801 = vmatpush1.bf16.msra.mxu0 0
        %1802 = vmatprep.subr.bf16.mxu0 0
        %1803 = vmatpush1.bf16.msra.mxu0 0
        %1804 = vmatprep.subr.bf16.mxu0 0
        %1805 = vmatpush1.bf16.msra.mxu0 0
        %1806 = vmatprep.subr.bf16.mxu0 0
        %1807 = vmatpush1.bf16.msra.mxu0 0
        %1808 = vmatprep.subr.bf16.mxu0 0
        %1809 = vmatpush1.bf16.msra.mxu0 0
        %1810 = vmatprep.subr.bf16.mxu0 0
        %1811 = vmatpush1.bf16.msra.mxu0 0
        %1812 = vmatprep.subr.bf16.mxu0 0
        %1813 = vmatpush1.bf16.msra.mxu0 0
        %1814 = vmatprep.subr.bf16.mxu0 0
        %1815 = vmatpush1.bf16.msra.mxu0 0
        %1816 = vmatprep.subr.bf16.mxu0 0
        %1817 = vmatpush1.bf16.msra.mxu0 0
        %1818 = vmatprep.subr.bf16.mxu0 0
        %1819 = vmatpush1.bf16.msra.mxu0 0
        %1820 = vmatprep.subr.bf16.mxu0 0
        %1821 = vmatpush1.bf16.msra.mxu0 0
        %1822 = vmatprep.subr.bf16.mxu0 0
        %1823 = vmatpush1.bf16.msra.mxu0 0
        %1824 = vmatprep.mubr.bf16.mxu0 0
        %1825 = vmatmul.mubr.bf16.gmra.mrb[0].mxu0 %v1790
        %v1826 = vpop.f32.mrb[0].mxu0
        %v1827 = vadd.f32 %v1776, %v1826
        %v1828 = vpop.f32.mrb[0].mxu0
        %v1829 = vpop.f32.mrb[0].mxu0
        %v1830 = vpop.f32.mrb[0].mxu0
        %1831 = vdwg.mxu0
        %v1832 = vadd.f32 %v680, %v1827
        %v1833 = vsel %vm702, %v1832, 0.0
        %1834 = vadd.xlane.f32.xlu0 %v1833
        %v1835 = vpop.xlane.xlu0 %1834
        %v1836 = vrcp.pop 32.0
        %v1837 = vmul.f32 %v1835, %v1836
        %v1838 = vsub.f32 %v1832, %v1837
        %v1839 = vmul.f32 %v1838, %v1838
        %v1840 = vsel %vm702, %v1839, 0.0
        %1841 = vadd.xlane.f32.xlu0 %v1840
        %v1842 = vpop.xlane.xlu0 %1841
        %v1843 = vmul.f32 %v1842, %v1836
        %v1844 = vadd.f32 %v1843, 1e-05
        %v1845 = vrsqrt.pop %v1844
        %v1846 = vmul.f32 %v1838, %v1845
        %v1847 = vlaneseq
        %v1848 = vshrl.u32 %v1847, 7
        %v1849 = vsub.s32 4, %v1848
        %v1850 = vrot.slane %v544, %v1849
        %v1851 = vmul.f32 %v1846, %v1850
        %v1852 = vlaneseq
        %v1853 = vshrl.u32 %v1852, 7
        %v1854 = vsub.s32 5, %v1853
        %v1855 = vrot.slane %v544, %v1854
        %v1856 = vadd.f32 %v1851, %v1855
        %v1857 = vpack.c.bf16 %v1856, %v1856
        %v1858 = vld [vmem:[#allocation15] sm:$0xf]
        %v1859 = vld [vmem:[#allocation15 + $0x4] sm:$0xf]
        %v1860 = vld [vmem:[#allocation15 + $0x8] sm:$0xf]
        %v1861 = vld [vmem:[#allocation15 + $0xc] sm:$0xf]
        %v1862 = vld [vmem:[#allocation19] sm:$0x1]
        %v1864 = vlaneseq
        %v1865 = vshrl.u32 %v1864, 7
        %v1866 = vsub.s32 0, %v1865
        %v1867 = vrot.slane %v1862, %v1866
        %v1873 = vunpack.c.l.b16 %v1858
        %v1874 = vunpack.c.l.b16 %v1859
        %v1875 = vunpack.c.l.b16 %v1860
        %v1876 = vunpack.c.l.b16 %v1861
        %v1877 = vpack.c.b16 %v1874, %v1873
        %v1878 = vpack.c.b16 %v1876, %v1875
        %v1882 = vsel %vm702, %v1857, 0
        %1884 = vmatprep.subr.bf16.mxu0 0
        %1885 = vmatpush1.bf16.msra.mxu0 %v1877
        %1886 = vmatprep.subr.bf16.mxu0 0
        %1887 = vmatpush1.bf16.msra.mxu0 %v1878
        %1888 = vmatprep.subr.bf16.mxu0 0
        %1889 = vmatpush1.bf16.msra.mxu0 0
        %1890 = vmatprep.subr.bf16.mxu0 0
        %1891 = vmatpush1.bf16.msra.mxu0 0
        %1892 = vmatprep.subr.bf16.mxu0 0
        %1893 = vmatpush1.bf16.msra.mxu0 0
        %1894 = vmatprep.subr.bf16.mxu0 0
        %1895 = vmatpush1.bf16.msra.mxu0 0
        %1896 = vmatprep.subr.bf16.mxu0 0
        %1897 = vmatpush1.bf16.msra.mxu0 0
        %1898 = vmatprep.subr.bf16.mxu0 0
        %1899 = vmatpush1.bf16.msra.mxu0 0
        %1900 = vmatprep.subr.bf16.mxu0 0
        %1901 = vmatpush1.bf16.msra.mxu0 0
        %1902 = vmatprep.subr.bf16.mxu0 0
        %1903 = vmatpush1.bf16.msra.mxu0 0
        %1904 = vmatprep.subr.bf16.mxu0 0
        %1905 = vmatpush1.bf16.msra.mxu0 0
        %1906 = vmatprep.subr.bf16.mxu0 0
        %1907 = vmatpush1.bf16.msra.mxu0 0
        %1908 = vmatprep.subr.bf16.mxu0 0
        %1909 = vmatpush1.bf16.msra.mxu0 0
        %1910 = vmatprep.subr.bf16.mxu0 0
        %1911 = vmatpush1.bf16.msra.mxu0 0
        %1912 = vmatprep.subr.bf16.mxu0 0
        %1913 = vmatpush1.bf16.msra.mxu0 0
        %1914 = vmatprep.subr.bf16.mxu0 0
        %1915 = vmatpush1.bf16.msra.mxu0 0
        %1916 = vmatprep.mubr.bf16.mxu0 0
        %1917 = vmatmul.mubr.bf16.gmra.mrb[0].mxu0 %v1882
        %v1918 = vpop.f32.mrb[0].mxu0
        %v1919 = vadd.f32 %v1867, %v1918
        %v1920 = vpop.f32.mrb[0].mxu0
        %v1921 = vpop.f32.mrb[0].mxu0
        %v1922 = vpop.f32.mrb[0].mxu0
        %1923 = vdwg.mxu0
        %v1924 = vmul.f32 %v1919, 0.5
        %v1925 = vmul.f32 %v1919, 0.70710677
        %v1926 = verf.f32.pop %v1925
        %v1927 = vadd.f32 %v1926, 1.0
        %v1928 = vmul.f32 %v1924, %v1927
        %v1929 = vpack.c.bf16 %v1928, %v1928
        %v1930 = vld [vmem:[#allocation16] sm:$0xf]
        %v1931 = vld [vmem:[#allocation16 + $0x4] sm:$0xf]
        %v1932 = vld [vmem:[#allocation16 + $0x8] sm:$0xf]
        %v1933 = vld [vmem:[#allocation16 + $0xc] sm:$0xf]
        %v1934 = vld [vmem:[#allocation16 + $0x10] sm:$0xf]
        %v1935 = vld [vmem:[#allocation16 + $0x14] sm:$0xf]
        %v1936 = vld [vmem:[#allocation16 + $0x18] sm:$0xf]
        %v1937 = vld [vmem:[#allocation16 + $0x1c] sm:$0xf]
        %v1938 = vlaneseq
        %v1939 = vshrl.u32 %v1938, 7
        %v1940 = vsub.s32 6, %v1939
        %v1941 = vrot.slane %v544, %v1940
        %v1950 = vunpack.c.l.b16 %v1930
        %v1951 = vunpack.c.l.b16 %v1931
        %v1952 = vunpack.c.l.b16 %v1932
        %v1953 = vunpack.c.l.b16 %v1933
        %v1954 = vunpack.c.l.b16 %v1934
        %v1955 = vunpack.c.l.b16 %v1935
        %v1956 = vunpack.c.l.b16 %v1936
        %v1957 = vunpack.c.l.b16 %v1937
        %v1958 = vpack.c.b16 %v1951, %v1950
        %v1959 = vpack.c.b16 %v1953, %v1952
        %v1960 = vpack.c.b16 %v1955, %v1954
        %v1961 = vpack.c.b16 %v1957, %v1956
        %vm1966 = vcmask 523264
        %v1968 = vsel %vm1966, %v1929, 0
        %1970 = vmatprep.subr.bf16.mxu0 0
        %1971 = vmatpush1.bf16.msra.mxu0 %v1958
        %1972 = vmatprep.subr.bf16.mxu0 0
        %1973 = vmatpush1.bf16.msra.mxu0 %v1959
        %1974 = vmatprep.subr.bf16.mxu0 0
        %1975 = vmatpush1.bf16.msra.mxu0 %v1960
        %1976 = vmatprep.subr.bf16.mxu0 0
        %1977 = vmatpush1.bf16.msra.mxu0 %v1961
        %1978 = vmatprep.subr.bf16.mxu0 0
        %1979 = vmatpush1.bf16.msra.mxu0 0
        %1980 = vmatprep.subr.bf16.mxu0 0
        %1981 = vmatpush1.bf16.msra.mxu0 0
        %1982 = vmatprep.subr.bf16.mxu0 0
        %1983 = vmatpush1.bf16.msra.mxu0 0
        %1984 = vmatprep.subr.bf16.mxu0 0
        %1985 = vmatpush1.bf16.msra.mxu0 0
        %1986 = vmatprep.subr.bf16.mxu0 0
        %1987 = vmatpush1.bf16.msra.mxu0 0
        %1988 = vmatprep.subr.bf16.mxu0 0
        %1989 = vmatpush1.bf16.msra.mxu0 0
        %1990 = vmatprep.subr.bf16.mxu0 0
        %1991 = vmatpush1.bf16.msra.mxu0 0
        %1992 = vmatprep.subr.bf16.mxu0 0
        %1993 = vmatpush1.bf16.msra.mxu0 0
        %1994 = vmatprep.subr.bf16.mxu0 0
        %1995 = vmatpush1.bf16.msra.mxu0 0
        %1996 = vmatprep.subr.bf16.mxu0 0
        %1997 = vmatpush1.bf16.msra.mxu0 0
        %1998 = vmatprep.subr.bf16.mxu0 0
        %1999 = vmatpush1.bf16.msra.mxu0 0
        %2000 = vmatprep.subr.bf16.mxu0 0
        %2001 = vmatpush1.bf16.msra.mxu0 0
        %2002 = vmatprep.mubr.bf16.mxu0 0
        %2003 = vmatmul.mubr.bf16.gmra.mrb[0].mxu0 %v1968
        %v2004 = vpop.f32.mrb[0].mxu0
        %v2005 = vadd.f32 %v1941, %v2004
        %v2006 = vpop.f32.mrb[0].mxu0
        %v2007 = vpop.f32.mrb[0].mxu0
        %v2008 = vpop.f32.mrb[0].mxu0
        %2009 = vdwg.mxu0
        %v2010 = vadd.f32 %v1856, %v2005
        %v2011 = vsel %vm702, %v2010, 0.0
        %2012 = vadd.xlane.f32.xlu0 %v2011
        %v2013 = vpop.xlane.xlu0 %2012
        %v2014 = vmul.f32 %v2013, %v1836
        %v2015 = vsub.f32 %v2010, %v2014
        %v2016 = vmul.f32 %v2015, %v2015
        %v2017 = vsel %vm702, %v2016, 0.0
        %2018 = vadd.xlane.f32.xlu0 %v2017
        %v2019 = vpop.xlane.xlu0 %2018
        %v2020 = vmul.f32 %v2019, %v1836
        %v2021 = vadd.f32 %v2020, 1e-05
        %v2022 = vrsqrt.pop %v2021
        %v2023 = vmul.f32 %v2015, %v2022
        %v2024 = vlaneseq
        %v2025 = vshrl.u32 %v2024, 7
        %v2026 = vsub.s32 7, %v2025
        %v2027 = vrot.slane %v544, %v2026
        %v2028 = vmul.f32 %v2023, %v2027
        %v2029 = vlaneseq
        %v2030 = vshrl.u32 %v2029, 7
        %v2031 = vsub.s32 0, %v2030
        %v2032 = vrot.slane %v545, %v2031
        %v2033 = vadd.f32 %v2028, %v2032
        %2034 = vst.msk [vmem:[%s542] sm:$0xff] %vm702, %v2033
        %s2035 = sand.u32 %s278, 1
        %s2036 = scalar_lea.sflag [#allocation6], %s2035
        %s2037 = sand.u32 %s278, 1
        %s2038 = smul.addr %s2037, 8
        %s2039 = scalar_lea.vmem [#allocation21], %s2038
        // Predicated region
        $region105: #{tpu_custom_call.1} parent=59 // pred_check
          %p2040 = pneg %p288
        $region106: #{tpu_custom_call.1} parent=59 // pred_check_branch
          %2042 = sbr.rel (%p2040) target = $region108
        $region107: #{tpu_custom_call.1} parent=59 // pred_region
          %s2044 = ssub.s32 128, 128
          %2045 = vsyncadd %s2036, %s2044
          %s2046 = sadd.s32 %s39, %s38
          %s2047 = smul.addr %s2046, 128
          %s2048 = scalar_lea.hbm %s10, %s2047
          %s2050 = sshll.u32 %s2039, 4
          %s2051 = int_to_ptr.vmem [resolvable:$true] %s2050
          %2053 = dma.vmem_to_hbm [thread:$0]  %s2051, 128, %s2048, %s2036
        $region108: #{tpu_custom_call.1} parent=59 // pred_fallthru
          _
      $region60: #{tpu_custom_call.1} parent=5 // pred_fallthru
        _
      %p2054 = scmp.le.s32.totalorder 2, %s29
      // Predicated region
      $region109: #{tpu_custom_call.1} parent=5 // pred_check
        %p2055 = pneg %p2054
      $region110: #{tpu_custom_call.1} parent=5 // pred_check_branch
        %2057 = sbr.rel (%p2055) target = $region112
      $region111: #{tpu_custom_call.1} parent=5 // pred_region
        %s2058 = ssub.s32 %s29, 2
        // Predicated region
        $region113: #{tpu_custom_call.1} parent=111 // pred_check
          %p2059 = pneg %p294
        $region114: #{tpu_custom_call.1} parent=111 // pred_check_branch
          %2061 = sbr.rel (%p2059) target = $region116
        $region115: #{tpu_custom_call.1} parent=111 // pred_region
          %s2062 = sand.u32 %s279, 1
          %s2063 = scalar_lea.sflag [#allocation6], %s2062
          %s2064 = sand.u32 %s279, 1
          %s2065 = smul.addr %s2064, 8
          %s2066 = scalar_lea.vmem [#allocation21], %s2065
          %2067 = dma.done %s2063, 128
        $region116: #{tpu_custom_call.1} parent=111 // pred_fallthru
          _
      $region112: #{tpu_custom_call.1} parent=5 // pred_fallthru
        _
    $region6: #{tpu_custom_call.1} parent=1 // loop_footer
      %s33 = sadd.s32 1, %s29
    $region7: #{tpu_custom_call.1} parent=1 // loop_footer_branch
      %28 = sbr.rel target = $region3
    $region8: #{tpu_custom_call.1} parent=1 // loop_exit
      _
    %2068 = vsyncpa [#allocation5], 1
    %s2069 = scalar_lea.sflag [#allocation5], 1
    %2070 = vsyncpa %s2069, 1
    %2071 = vsyncpa [#allocation8], 1
    %s2072 = scalar_lea.sflag [#allocation8], 1
    %2073 = vsyncpa %s2072, 1
    %2074 = vsyncpa [#allocation11], 1
    %2075 = vsyncpa [#allocation14], 1
    %2076 = vsyncpa [#allocation17], 1
    %2077 = vsyncpa [#allocation20], 1
    %2078 = vsyncpa [#allocation6], 1
    %s2079 = scalar_lea.sflag [#allocation6], 1
    %2080 = vsyncpa %s2079, 1

</llo_original>
